<compile_context>
chip_gen: v5e
topology: v5e:2x2
jax: 0.10.0
libtpu: 0.0.40
codegen_flags: <defaults>
</compile_context>

<pallas_src>
import functools

import jax
import jax.numpy as jnp
from jax.experimental import pallas as pl
from jax.experimental.pallas import tpu as pltpu

EPS = 1e-8
BINS = 32
PAIR_DIM = 128          # pairwise_state_dim hard-coded to 128 in BlockV2.__init__
SMALL_OUT = 8           # packed small-head store width: cols 0:3 xyz, col 3 plddt, rest zero
VPAD = 128              # relpos table rows padded to 128 for an aligned one-hot matmul
VMEM_LIMIT = 48 * 1024 * 1024


def _elu(y):
    # ELU(alpha=1); min() clamp avoids exp(inf) on the discarded positive branch.
    return jnp.where(y > 0.0, y, jnp.exp(jnp.minimum(y, 0.0)) - 1.0)


def _pick_tile(s, target=2048):
    """Largest divisor of s <= target that is a multiple of 16 (then 8), else full s."""
    if s <= target:
        return s
    for step in (16, 8):
        t = (target // step) * step
        while t >= step:
            if s % t == 0:
                return t
            t -= step
    return s


def _pick_div(n, target):
    """Largest divisor of n that is <= target (>= 1)."""
    t = min(n, target)
    while t > 1:
        if n % t == 0:
            return t
        t -= 1
    return 1


# ----------------------------------------------------------------------------
# ircn0: (folded IRCN) 1x1 conv + fused relpos add + ELU, plus per-tile InstanceNorm partials.
# Grid = (B, S_tiles), both axes "parallel" (stats are per-tile partials, combined in XLA).
# ----------------------------------------------------------------------------
def fr_first_kernel(idx_ref, x_ref, w_ref, b_ref, y_ref, stats_ref, *, vpad):
    t = x_ref.shape[0]
    x = x_ref[...].astype(jnp.bfloat16)                      # f32 -> bf16 cast in-kernel
    # Fused RelativePosition add: (pair + emb) @ Wf == [pair || onehot(idx)] @ [Wf ; T@Wf]
    onehot = (idx_ref[...] == jax.lax.broadcasted_iota(jnp.int32, (t, vpad), 1)
              ).astype(jnp.bfloat16)
    xc = jnp.concatenate([x, onehot], axis=1)                # (t, C+128), lane-aligned concat
    y = jnp.dot(xc, w_ref[...], preferred_element_type=jnp.float32) + b_ref[...]
    y = _elu(y)
    yb = y.astype(jnp.bfloat16)
    y_ref[...] = yb

    yf = yb.astype(jnp.float32)                              # stats match what downstream sees
    mu = jnp.mean(yf, axis=0, keepdims=True)
    d = yf - mu
    stats_ref[0:1, :] = mu
    stats_ref[1:2, :] = jnp.sum(d * d, axis=0, keepdims=True)


def fr_first_call(idx, x, fp, tile_s):
    b, s, c = x.shape
    nt = s // tile_s
    kcat = fp["wcat"].shape[0]
    return pl.pallas_call(
        functools.partial(fr_first_kernel, vpad=kcat - c),
        out_shape=(jax.ShapeDtypeStruct((b, s, c), jnp.bfloat16),
                   jax.ShapeDtypeStruct((b, nt, 2, c), jnp.float32)),
        grid=(b, nt),
        in_specs=[pl.BlockSpec((None, tile_s, 1), lambda i, j: (i, j, 0)),   # relpos idx
                  pl.BlockSpec((None, tile_s, c), lambda i, j: (i, j, 0)),   # pair (f32)
                  pl.BlockSpec((kcat, c), lambda i, j: (0, 0)),              # [Wf ; T@Wf]
                  pl.BlockSpec((1, c), lambda i, j: (0, 0))],                # bias
        out_specs=(pl.BlockSpec((None, tile_s, c), lambda i, j: (i, j, 0)),
                   pl.BlockSpec((None, None, 2, c), lambda i, j: (i, j, 0, 0))),
        compiler_params=pltpu.CompilerParams(
            dimension_semantics=("parallel", "parallel"),
            vmem_limit_bytes=VMEM_LIMIT),
    )(idx, x, fp["wcat"], fp["b"])


# ----------------------------------------------------------------------------
# Fused head + featureReduction kernel:
#   yn       = y * scale + shift                       (InstanceNorm affine from prev stage)
#   h        = yn @ [Wpair || Wxyz,plddt] (+ cad * wc) (one N=256 MXU matmul)
#   small    = h[:, C:C+8]                             (xyz / plddt, 8-lane store)
#   pair_new = ELU(h[:, :C])                           (stays in VMEM)
#   y_next   = ELU([y || pair_new] @ Wfold + b)        (one K=256 MXU matmul, folded IRCN)
#   stats    = per-tile (mean, M2) of y_next           (combined to the next affine in XLA)
# TODO(synk): Module.predDxyz_shareWeight / pLDDT / forNextBlock internals unavailable;
#             approximated as shared-weight 1x1 convs over [pair, cadist].
# ----------------------------------------------------------------------------
def fused_head_fr_kernel(*refs, has_cad, c):
    if has_cad:
        (y_ref, aff_ref, cad_ref, wh_ref, wc_ref, bh_ref,
         wf_ref, bfr_ref, ynext_ref, small_ref, stats_ref) = refs
    else:
        (y_ref, aff_ref, wh_ref, bh_ref,
         wf_ref, bfr_ref, ynext_ref, small_ref, stats_ref) = refs

    yraw = y_ref[...]                                                   # bf16 residual
    yn = yraw.astype(jnp.float32) * aff_ref[0:1, :] + aff_ref[1:2, :]
    h = jnp.dot(yn.astype(jnp.bfloat16), wh_ref[...],
                preferred_element_type=jnp.float32) + bh_ref[...]       # (t, 2C)
    if has_cad:
        h = h + cad_ref[...] * wc_ref[...]

    pair = _elu(h[:, :c])                                               # head pair output
    small = h[:, c:]                                                    # lane-aligned slice
    small_ref[...] = small[:, :SMALL_OUT]                               # xyz/plddt, no ELU

    # featureReduction on cat(residual, pair): single K=2C matmul (concat at lane boundary).
    xcat = jnp.concatenate([yraw, pair.astype(jnp.bfloat16)], axis=1)
    y2 = _elu(jnp.dot(xcat, wf_ref[...], preferred_element_type=jnp.float32)
              + bfr_ref[...])
    y2b = y2.astype(jnp.bfloat16)
    ynext_ref[...] = y2b

    y2f = y2b.astype(jnp.float32)
    mu = jnp.mean(y2f, axis=0, keepdims=True)
    d = y2f - mu
    stats_ref[0:1, :] = mu
    stats_ref[1:2, :] = jnp.sum(d * d, axis=0, keepdims=True)


def fused_call(y, aff, cad, hp, fp, tile_s):
    b, s, c = y.shape
    nt = s // tile_s
    has_cad = cad is not None

    in_specs = [pl.BlockSpec((None, tile_s, c), lambda i, j: (i, j, 0)),   # y (residual)
                pl.BlockSpec((None, 2, c), lambda i, j: (i, 0, 0))]        # affine
    args = [y, aff]
    if has_cad:
        in_specs.append(pl.BlockSpec((None, tile_s, 1), lambda i, j: (i, j, 0)))
        args.append(cad)
    in_specs.append(pl.BlockSpec((c, 2 * c), lambda i, j: (0, 0)))          # head weight
    args.append(hp["wh"])
    if has_cad:
        in_specs.append(pl.BlockSpec((1, 2 * c), lambda i, j: (0, 0)))      # cad rank-1 weight
        args.append(hp["wc"])
    in_specs.append(pl.BlockSpec((1, 2 * c), lambda i, j: (0, 0)))          # head bias
    args.append(hp["bh"])
    in_specs.append(pl.BlockSpec((2 * c, c), lambda i, j: (0, 0)))          # folded fr weight
    args.append(fp["w"])
    in_specs.append(pl.BlockSpec((1, c), lambda i, j: (0, 0)))              # fr bias
    args.append(fp["b"])

    return pl.pallas_call(
        functools.partial(fused_head_fr_kernel, has_cad=has_cad, c=c),
        out_shape=(jax.ShapeDtypeStruct((b, s, c), jnp.bfloat16),
                   jax.ShapeDtypeStruct((b, s, SMALL_OUT), jnp.float32),
                   jax.ShapeDtypeStruct((b, nt, 2, c), jnp.float32)),
        grid=(b, nt),
        in_specs=in_specs,
        out_specs=(pl.BlockSpec((None, tile_s, c), lambda i, j: (i, j, 0)),
                   pl.BlockSpec((None, tile_s, SMALL_OUT), lambda i, j: (i, j, 0)),
                   pl.BlockSpec((None, None, 2, c), lambda i, j: (i, j, 0, 0))),
        compiler_params=pltpu.CompilerParams(
            dimension_semantics=("parallel", "parallel"),
            vmem_limit_bytes=VMEM_LIMIT),
    )(*args)


# ----------------------------------------------------------------------------
# Final head (plddt5 + forNextBlock): pair_out must be materialized, no following fr_cat.
# ----------------------------------------------------------------------------
def final_head_kernel(y_ref, aff_ref, cad_ref, wh_ref, wc_ref, bh_ref,
                      pair_ref, small_ref, *, c):
    yn = y_ref[...].astype(jnp.float32) * aff_ref[0:1, :] + aff_ref[1:2, :]
    h = jnp.dot(yn.astype(jnp.bfloat16), wh_ref[...],
                preferred_element_type=jnp.float32) + bh_ref[...]
    h = h + cad_ref[...] * wc_ref[...]
    pair_ref[...] = _elu(h[:, :c])
    small = h[:, c:]
    small_ref[...] = small[:, :SMALL_OUT]


def final_head_call(y, aff, cad, hp, tile_s):
    b, s, c = y.shape
    nt = s // tile_s
    return pl.pallas_call(
        functools.partial(final_head_kernel, c=c),
        out_shape=(jax.ShapeDtypeStruct((b, s, c), jnp.float32),
                   jax.ShapeDtypeStruct((b, s, SMALL_OUT), jnp.float32)),
        grid=(b, nt),
        in_specs=[pl.BlockSpec((None, tile_s, c), lambda i, j: (i, j, 0)),
                  pl.BlockSpec((None, 2, c), lambda i, j: (i, 0, 0)),
                  pl.BlockSpec((None, tile_s, 1), lambda i, j: (i, j, 0)),
                  pl.BlockSpec((c, 2 * c), lambda i, j: (0, 0)),
                  pl.BlockSpec((1, 2 * c), lambda i, j: (0, 0)),
                  pl.BlockSpec((1, 2 * c), lambda i, j: (0, 0))],
        out_specs=(pl.BlockSpec((None, tile_s, c), lambda i, j: (i, j, 0)),
                   pl.BlockSpec((None, tile_s, SMALL_OUT), lambda i, j: (i, j, 0))),
        compiler_params=pltpu.CompilerParams(
            dimension_semantics=("parallel", "parallel"),
            vmem_limit_bytes=VMEM_LIMIT),
    )(y, aff, cad, hp["wh"], hp["wc"], hp["bh"])


# ----------------------------------------------------------------------------
# getCadistAvg, Gram-matrix form:
#   cad[b,j,k] = (1/L) * sum_i sqrt( n_i[j] + n_i[k] - 2 (P_i^T P_i)[j,k] + eps )
# with P_i = p[b,:,i,:] (padded to 8 rows).  The n_j / n_k terms are folded into the same
# MXU matmul via a 16xL augmented operand (rows 8/9 hold n and ones), so there is no
# lane<->sublane relayout.  Grid = (B, i_tiles) with the i axis "arbitrary"; the (L, L)
# output block stays resident and accumulates, scaled by 1/L on the last step.
# ----------------------------------------------------------------------------
def cadist_kernel(pi_ref, o_ref, *, inv_l):
    t = pl.program_id(1)

    @pl.when(t == 0)
    def _():
        o_ref[...] = jnp.zeros_like(o_ref)

    ti = pi_ref.shape[0]
    rid = jax.lax.broadcasted_iota(jnp.int32, (8, 1), 0)

    @pl.loop(0, ti)
    def _(ii):
        p = pi_ref[ii]                                        # (8, L) f32, rows 3..7 zero
        n = jnp.sum(p * p, axis=0, keepdims=True)             # (1, L)
        # augmented rows: a = [P ; n ; 1 ; 0...], b = [-2P ; 1 ; n ; 0...]
        aug_a = jnp.where(rid == 0, n, jnp.where(rid == 1, 1.0, 0.0))    # (8, L)
        aug_b = jnp.where(rid == 0, 1.0, jnp.where(rid == 1, n, 0.0))    # (8, L)
        a = jnp.concatenate([p, aug_a], axis=0)               # (16, L), 8-row aligned concat
        bm = jnp.concatenate([p * -2.0, aug_b], axis=0)       # (16, L)
        d2 = jax.lax.dot_general(a, bm, (((0,), (0,)), ((), ())),
                                 preferred_element_type=jnp.float32)     # (L, L)
        o_ref[...] += jnp.sqrt(jnp.maximum(d2, 0.0) + EPS)

    @pl.when(t == pl.num_programs(1) - 1)
    def _():
        o_ref[...] = o_ref[...] * inv_l


def cadist_call(predq):
    # predq: (B, L, L, 3) channel-last predxyz (predq[b,i,k,c] = p[b,c,i,k]).
    b, L = predq.shape[0], predq.shape[1]
    pi = jnp.swapaxes(predq, 2, 3)                            # (B, L, 3, L)
    pi = jnp.pad(pi, ((0, 0), (0, 0), (0, 8 - pi.shape[2]), (0, 0)))   # pad c -> 8
    tile_i = _pick_div(L, 32)
    nt = L // tile_i
    return pl.pallas_call(
        functools.partial(cadist_kernel, inv_l=1.0 / L),
        out_shape=jax.ShapeDtypeStruct((b, L, L), jnp.float32),
        grid=(b, nt),
        in_specs=[pl.BlockSpec((None, tile_i, 8, L), lambda i, t: (i, t, 0, 0))],
        out_specs=pl.BlockSpec((None, L, L), lambda i, t: (i, 0, 0)),
        compiler_params=pltpu.CompilerParams(
            dimension_semantics=("parallel", "arbitrary"),
            vmem_limit_bytes=VMEM_LIMIT),
    )(pi)


# ----------------------------------------------------------------------------
# Combine per-tile (mean, M2) partials into the InstanceNorm affine (scale, shift).
# ----------------------------------------------------------------------------
def finalize_affine(stats, gamma, beta, tile_s, total_s):
    means = stats[:, :, 0, :]                                  # (B, T, C)
    m2 = stats[:, :, 1, :]
    mean = jnp.mean(means, axis=1)                             # (B, C)
    dev = means - mean[:, None, :]
    var = (jnp.sum(m2, axis=1) + tile_s * jnp.sum(dev * dev, axis=1)) / total_s
    scale = gamma * jax.lax.rsqrt(var + 1e-5)                  # (B, C)
    shift = beta - mean * scale
    return jnp.stack([scale, shift], axis=1)                   # (B, 2, C)


# ----------------------------------------------------------------------------
# Parameter preparation: fold the IRCN triple-concat into the conv weight, fuse the relpos
# table into the ircn0 weight, pack head weights as a single (C, 2C) matrix (pair cols 0:C,
# xyz cols C:C+3, plddt col C+3), and cast matmul weights to bf16.
# ----------------------------------------------------------------------------
def prepare_params(p, C):
    bf16 = lambda a: a.astype(jnp.bfloat16)

    def fold(w, cin):
        # TODO(synk): Module.IRCN internals unavailable; approximated as channel-tripling
        # concat, hence dot([x,x,x], W) == dot(x, W0+W1+W2).
        return w[:cin] + w[cin:2 * cin] + w[2 * cin:3 * cin]

    out = {}
    w0 = fold(p["ircn"][0]["w"], C)                             # (C, C)
    tabf = jnp.dot(p["relpos_table"], w0)                       # (V, C) fused relpos add
    tabf = jnp.pad(tabf, ((0, VPAD - tabf.shape[0]), (0, 0)))
    out["fr0"] = {"wcat": bf16(jnp.concatenate([w0, tabf], axis=0)),
                  "b": p["ircn"][0]["b"],
                  "gamma": p["ircn"][0]["gamma"], "beta": p["ircn"][0]["beta"]}

    out["fr"] = []
    for k in range(1, 7):
        out["fr"].append({"w": bf16(fold(p["ircn"][k]["w"], 2 * C)),
                          "b": p["ircn"][k]["b"],
                          "gamma": p["ircn"][k]["gamma"], "beta": p["ircn"][k]["beta"]})

    def head_from(w_pair, b_pair, pd, pld):
        # TODO(synk): predDxyz_shareWeight / pLDDT / forNextBlock internals unavailable;
        # approximated as shared-weight 1x1 convs over [pair, cadist].
        wh = jnp.zeros((C + 1, 2 * C), jnp.float32)
        bh = jnp.zeros((1, 2 * C), jnp.float32)
        wh = wh.at[:, :C].set(w_pair)
        bh = bh.at[:, :C].set(b_pair)
        if pd is not None:
            wh = wh.at[:, C:C + 3].set(pd["w_xyz"])
            bh = bh.at[:, C:C + 3].set(pd["b_xyz"])
        if pld is not None:
            wh = wh.at[:, C + 3:C + 4].set(pld["w"])
            bh = bh.at[:, C + 3:C + 4].set(pld["b"])
        return {"wh": bf16(wh[:C]), "wc": wh[C:C + 1], "bh": bh}

    out["head0"] = head_from(p["pd0"]["w_pair"], p["pd0"]["b_pair"], p["pd0"], None)
    pds = [p["pd0"], p["pd0"], p["pd0"], p["pd1"], p["pd1"]]
    out["heads"] = [head_from(pds[j]["w_pair"], pds[j]["b_pair"], pds[j], p["plddt"][j])
                    for j in range(5)]
    out["head_final"] = head_from(p["fornext"]["w"], p["fornext"]["b"], None,
                                  p["plddt"][5])
    return out


# ----------------------------------------------------------------------------
# BlockV2 forward.
# ----------------------------------------------------------------------------
def block_v2_forward(params, seq_feats, pair_feats, true_aa, residx, mask, maskdiag,
                     depth=2):
    del true_aa, depth    # true_aa unused in the reference forward; attention blocks identity
    B, L, _, C = pair_feats.shape
    S = L * L
    tile_s = _pick_tile(S)
    total_s = float(S)
    kp = prepare_params(params, C)

    # RelativePosition indices (the embedding add is fused into the ircn0 kernel).
    # TODO(synk): TriangularSelfAttentionBlock source not provided; blocks treated as identity.
    diff = residx[:, None, :] - residx[:, :, None]
    diff = jnp.clip(diff, -BINS, BINS) + BINS + 1
    pair_mask = (mask[:, None, :] * mask[:, :, None]) > 0
    idx = jnp.where(pair_mask, diff, 0).astype(jnp.int32).reshape(B, S, 1)

    maskdiag_cl = jnp.transpose(maskdiag, (0, 2, 3, 1))         # (B, L, L, 1)
    x0 = pair_feats.reshape(B, S, C)                            # f32; cast in-kernel

    Predxyz, PredCadistavg, Plddt = [], [], []

    # ircn0: conv + ELU + fused relpos add -> residual y0 + per-tile stats -> affine.
    y, stats = fr_first_call(idx, x0, kp["fr0"], tile_s)
    aff = finalize_affine(stats, kp["fr0"]["gamma"], kp["fr0"]["beta"],
                          float(tile_s), total_s)

    # predDxyz0 fused with ircn1 (head pair output never hits HBM).
    y, small, stats = fused_call(y, aff, None, kp["head0"], kp["fr"][0], tile_s)
    aff = finalize_affine(stats, kp["fr"][0]["gamma"], kp["fr"][0]["beta"],
                          float(tile_s), total_s)
    predq = small[..., 0:3].reshape(B, L, L, 3) * maskdiag_cl   # channel-last predxyz

    for j in range(5):
        cad = cadist_call(predq)                                # (B, L, L)
        Predxyz.append(jnp.transpose(predq, (0, 3, 1, 2)))      # (B, 3, L, L) as in reference
        PredCadistavg.append(cad)
        cadf = cad.reshape(B, S, 1)

        # plddt_j + predDxyz (pd0 for j<3, pd1 else) fused with ircn_{j+2}.
        y, small, stats = fused_call(y, aff, cadf, kp["heads"][j], kp["fr"][j + 1], tile_s)
        aff = finalize_affine(stats, kp["fr"][j + 1]["gamma"], kp["fr"][j + 1]["beta"],
                              float(tile_s), total_s)
        Plddt.append(small[..., 3].reshape(B, L, L))
        predq = predq + small[..., 0:3].reshape(B, L, L, 3) * maskdiag_cl

    cad = cadist_call(predq)
    Predxyz.append(jnp.transpose(predq, (0, 3, 1, 2)))
    PredCadistavg.append(cad)
    cadf = cad.reshape(B, S, 1)

    # plddt5 + forNextBlock (pair_out materialized).
    pair_out, small = final_head_call(y, aff, cadf, kp["head_final"], tile_s)
    Plddt.append(small[..., 3].reshape(B, L, L))
    pair_out = pair_out.reshape(B, L, L, C)

    return Predxyz, PredCadistavg, Plddt, seq_feats, pair_out


# ----------------------------------------------------------------------------
# Deterministic parameter init (synthetic weights, torch-like shapes per module __init__).
# ----------------------------------------------------------------------------
def init_params(key, C):
    ks = iter(jax.random.split(key, 64))

    def norm(shape, scale=0.05):
        return jax.random.normal(next(ks), shape, jnp.float32) * scale

    def ircn(cin):
        return {"w": norm((3 * cin, C)), "b": norm((1, C)),
                "gamma": 1.0 + norm((1, C), 0.1), "beta": norm((1, C), 0.1)}

    def preddxyz():
        return {"w_xyz": norm((C + 1, 3)), "b_xyz": norm((1, 3)),
                "w_pair": norm((C + 1, C)), "b_pair": norm((1, C))}

    def plddt():
        return {"w": norm((C + 1, 1)), "b": norm((1, 1))}

    return {
        "relpos_table": norm((2 * BINS + 2, PAIR_DIM), 0.02),   # nn.Embedding(66, 128)
        "ircn": [ircn(C)] + [ircn(2 * C) for _ in range(6)],    # ircn0..ircn6
        "pd0": preddxyz(),
        "pd1": preddxyz(),
        "plddt": [plddt() for _ in range(6)],
        "fornext": {"w": norm((C + 1, C)), "b": norm((1, C))},
    }


if __name__ == "__main__":
    B, L, depth = 2, 8, 2
    C = PAIR_DIM          # BlockV2 wiring requires channel == pairwise_state_dim == 128
    SEQ_DIM = 1024

    key = jax.random.PRNGKey(0)
    kparams, k1, k2, k3 = jax.random.split(key, 4)

    params = init_params(kparams, C)

    seq_feats = jax.random.normal(k1, (B, L, SEQ_DIM), jnp.float32) * 0.1
    pair_feats = jax.random.normal(k2, (B, L, L, C), jnp.float32) * 0.1
    true_aa = jax.random.randint(k3, (B, L), 0, 20, jnp.int32)
    residx = jnp.broadcast_to(jnp.arange(L, dtype=jnp.int32), (B, L))
    mask = jnp.ones((B, L), jnp.float32).at[1, -2:].set(0.0)
    maskdiag = jnp.broadcast_to(
        (1.0 - jnp.eye(L, dtype=jnp.float32))[None, None], (B, 1, L, L))

    fwd = jax.jit(block_v2_forward, static_argnames=("depth",))
    outs = fwd(params, seq_feats, pair_feats, true_aa, residx, mask, maskdiag, depth=depth)
    jax.block_until_ready(outs)
    print("KERNEL_OK")
</pallas_src>

<mosaic_0001>
module attributes {stable_mosaic.version = 11 : i64} {
  func.func @fr_first_kernel(%arg0: i32, %arg1: i32, %arg2: memref<1x64x1xi32, #tpu.memory_space<vmem>>, %arg3: memref<1x64x128xf32, #tpu.memory_space<vmem>>, %arg4: memref<256x128xbf16, #tpu.memory_space<vmem>>, %arg5: memref<1x128xf32, #tpu.memory_space<vmem>>, %arg6: memref<1x64x128xbf16, #tpu.memory_space<vmem>>, %arg7: memref<1x1x2x128xf32, #tpu.memory_space<vmem>>) attributes {dimension_semantics = [#tpu.dimension_semantics<parallel>, #tpu.dimension_semantics<parallel>], iteration_bounds = array<i64: 2, 1>, scalar_prefetch = 0 : i64, scratch_operands = 0 : i64, tpu.core_type = #tpu.core_type<tc>, window_params = [{transform_indices = @transform_0, window_bounds = array<i64: 1, 64, 1>}, {transform_indices = @transform_1, window_bounds = array<i64: 1, 64, 128>}, {pipeline_mode = #tpu.pipeline_mode<synchronous>, transform_indices = @transform_2, window_bounds = array<i64: 256, 128>}, {pipeline_mode = #tpu.pipeline_mode<synchronous>, transform_indices = @transform_3, window_bounds = array<i64: 1, 128>}, {transform_indices = @transform_4, window_bounds = array<i64: 1, 64, 128>}, {transform_indices = @transform_5, window_bounds = array<i64: 1, 1, 2, 128>}]} {
    %c0 = arith.constant 0 : index
    %c0_0 = arith.constant 0 : index
    %c0_1 = arith.constant 0 : index
    %0 = vector.load %arg3[%c0, %c0_0, %c0_1] : memref<1x64x128xf32, #tpu.memory_space<vmem>>, vector<1x64x128xf32>
    %1 = vector.shape_cast %0 : vector<1x64x128xf32> to vector<64x128xf32>
    %2 = arith.truncf %1 : vector<64x128xf32> to vector<64x128xbf16>
    %c0_2 = arith.constant 0 : index
    %c0_3 = arith.constant 0 : index
    %c0_4 = arith.constant 0 : index
    %3 = vector.load %arg2[%c0_2, %c0_3, %c0_4] : memref<1x64x1xi32, #tpu.memory_space<vmem>>, vector<1x64x1xi32>
    %4 = vector.shape_cast %3 : vector<1x64x1xi32> to vector<64x1xi32>
    %5 = tpu.iota {dimensions = array<i32: 1>} : vector<64x128xi32>
    %6 = vector.broadcast %4 : vector<64x1xi32> to vector<64x128xi32>
    %7 = arith.cmpi eq, %6, %5 : vector<64x128xi32>
    %8 = arith.extui %7 : vector<64x128xi1> to vector<64x128xi32>
    %9 = arith.sitofp %8 : vector<64x128xi32> to vector<64x128xf32>
    %10 = arith.truncf %9 : vector<64x128xf32> to vector<64x128xbf16>
    %11 = tpu.concatenate %2, %10 in 1 : vector<64x128xbf16>, vector<64x128xbf16> -> vector<64x256xbf16>
    %c0_5 = arith.constant 0 : index
    %c0_6 = arith.constant 0 : index
    %12 = vector.load %arg4[%c0_5, %c0_6] : memref<256x128xbf16, #tpu.memory_space<vmem>>, vector<256x128xbf16>
    %cst = arith.constant dense<0.000000e+00> : vector<64x128xf32>
    %13 = tpu.matmul %11, %12, %cst {dimension_numbers = #tpu.dot_dimension_numbers<[1], [0], [0], [1], [0, 0, 1, 1], [], []>} : vector<64x256xbf16>, vector<256x128xbf16>, vector<64x128xf32> -> vector<64x128xf32>
    %c0_7 = arith.constant 0 : index
    %c0_8 = arith.constant 0 : index
    %14 = vector.load %arg5[%c0_7, %c0_8] : memref<1x128xf32, #tpu.memory_space<vmem>>, vector<1x128xf32>
    %15 = vector.broadcast %14 : vector<1x128xf32> to vector<64x128xf32>
    %16 = arith.addf %13, %15 : vector<64x128xf32>
    %cst_9 = arith.constant 0.000000e+00 : f32
    %17 = vector.broadcast %cst_9 : f32 to vector<64x128xf32>
    %18 = arith.cmpf ogt, %16, %17 : vector<64x128xf32>
    %cst_10 = arith.constant 0.000000e+00 : f32
    %19 = vector.broadcast %cst_10 : f32 to vector<64x128xf32>
    %20 = arith.minimumf %16, %19 : vector<64x128xf32>
    %21 = math.exp %20 : vector<64x128xf32>
    %cst_11 = arith.constant 1.000000e+00 : f32
    %22 = vector.broadcast %cst_11 : f32 to vector<64x128xf32>
    %23 = arith.subf %21, %22 : vector<64x128xf32>
    %24 = arith.select %18, %16, %23 : vector<64x128xi1>, vector<64x128xf32>
    %25 = arith.truncf %24 : vector<64x128xf32> to vector<64x128xbf16>
    %c0_12 = arith.constant 0 : index
    %c0_13 = arith.constant 0 : index
    %c0_14 = arith.constant 0 : index
    %26 = vector.load %arg6[%c0_12, %c0_13, %c0_14] : memref<1x64x128xbf16, #tpu.memory_space<vmem>>, vector<1x64x128xbf16>
    %27 = vector.shape_cast %26 : vector<1x64x128xbf16> to vector<64x128xbf16>
    %28 = vector.shape_cast %25 : vector<64x128xbf16> to vector<1x64x128xbf16>
    tpu.vector_store %arg6[%c0_12, %c0_13, %c0_14], %28 {strides = array<i32>} : memref<1x64x128xbf16, #tpu.memory_space<vmem>>, vector<1x64x128xbf16>,
    %29 = arith.extf %25 : vector<64x128xbf16> to vector<64x128xf32>
    %cst_15 = arith.constant dense<0.000000e+00> : vector<128xf32>
    %30 = vector.multi_reduction <add>, %29, %cst_15 [0] : vector<64x128xf32> to vector<128xf32>
    %31 = vector.shape_cast %30 : vector<128xf32> to vector<1x128xf32>
    %cst_16 = arith.constant 6.400000e+01 : f32
    %32 = vector.broadcast %cst_16 : f32 to vector<1x128xf32>
    %33 = arith.divf %31, %32 : vector<1x128xf32>
    %34 = vector.broadcast %33 : vector<1x128xf32> to vector<64x128xf32>
    %35 = arith.subf %29, %34 : vector<64x128xf32>
    %c0_17 = arith.constant 0 : index
    %c0_18 = arith.constant 0 : index
    %c0_19 = arith.constant 0 : index
    %c0_20 = arith.constant 0 : index
    %36 = vector.load %arg7[%c0_17, %c0_18, %c0_19, %c0_20] : memref<1x1x2x128xf32, #tpu.memory_space<vmem>>, vector<1x1x1x128xf32>
    %37 = vector.shape_cast %36 : vector<1x1x1x128xf32> to vector<1x128xf32>
    %38 = vector.shape_cast %33 : vector<1x128xf32> to vector<1x1x1x128xf32>
    tpu.vector_store %arg7[%c0_17, %c0_18, %c0_19, %c0_20], %38 {strides = array<i32>} : memref<1x1x2x128xf32, #tpu.memory_space<vmem>>, vector<1x1x1x128xf32>,
    %39 = arith.mulf %35, %35 : vector<64x128xf32>
    %cst_21 = arith.constant dense<0.000000e+00> : vector<128xf32>
    %40 = vector.multi_reduction <add>, %39, %cst_21 [0] : vector<64x128xf32> to vector<128xf32>
    %41 = vector.shape_cast %40 : vector<128xf32> to vector<1x128xf32>
    %c0_22 = arith.constant 0 : index
    %c0_23 = arith.constant 0 : index
    %c1 = arith.constant 1 : index
    %c0_24 = arith.constant 0 : index
    %42 = vector.load %arg7[%c0_22, %c0_23, %c1, %c0_24] : memref<1x1x2x128xf32, #tpu.memory_space<vmem>>, vector<1x1x1x128xf32>
    %43 = vector.shape_cast %42 : vector<1x1x1x128xf32> to vector<1x128xf32>
    %44 = vector.shape_cast %41 : vector<1x128xf32> to vector<1x1x1x128xf32>
    tpu.vector_store %arg7[%c0_22, %c0_23, %c1, %c0_24], %44 {strides = array<i32>} : memref<1x1x2x128xf32, #tpu.memory_space<vmem>>, vector<1x1x1x128xf32>,
    return
  }
  func.func @transform_0(%arg0: i32, %arg1: i32) -> (i32, i32, i32) {
    %c0_i32 = arith.constant 0 : i32
    %c0_i32_0 = arith.constant 0 : i32
    return %arg0, %arg1, %c0_i32 : i32, i32, i32
  }
  func.func @transform_1(%arg0: i32, %arg1: i32) -> (i32, i32, i32) {
    %c0_i32 = arith.constant 0 : i32
    %c0_i32_0 = arith.constant 0 : i32
    return %arg0, %arg1, %c0_i32 : i32, i32, i32
  }
  func.func @transform_2(%arg0: i32, %arg1: i32) -> (i32, i32) {
    %c0_i32 = arith.constant 0 : i32
    %c0_i32_0 = arith.constant 0 : i32
    %c0_i32_1 = arith.constant 0 : i32
    return %c0_i32, %c0_i32_0 : i32, i32
  }
  func.func @transform_3(%arg0: i32, %arg1: i32) -> (i32, i32) {
    %c0_i32 = arith.constant 0 : i32
    %c0_i32_0 = arith.constant 0 : i32
    %c0_i32_1 = arith.constant 0 : i32
    return %c0_i32, %c0_i32_0 : i32, i32
  }
  func.func @transform_4(%arg0: i32, %arg1: i32) -> (i32, i32, i32) {
    %c0_i32 = arith.constant 0 : i32
    %c0_i32_0 = arith.constant 0 : i32
    return %arg0, %arg1, %c0_i32 : i32, i32, i32
  }
  func.func @transform_5(%arg0: i32, %arg1: i32) -> (i32, i32, i32, i32) {
    %c0_i32 = arith.constant 0 : i32
    %c0_i32_0 = arith.constant 0 : i32
    %c0_i32_1 = arith.constant 0 : i32
    return %arg0, %arg1, %c0_i32, %c0_i32_0 : i32, i32, i32, i32
  }
}

module attributes {stable_mosaic.version = 11 : i64} {
  func.func @fused_head_fr_kernel(%arg0: i32, %arg1: i32, %arg2: memref<1x64x128xbf16, #tpu.memory_space<vmem>>, %arg3: memref<1x2x128xf32, #tpu.memory_space<vmem>>, %arg4: memref<128x256xbf16, #tpu.memory_space<vmem>>, %arg5: memref<1x256xf32, #tpu.memory_space<vmem>>, %arg6: memref<256x128xbf16, #tpu.memory_space<vmem>>, %arg7: memref<1x128xf32, #tpu.memory_space<vmem>>, %arg8: memref<1x64x128xbf16, #tpu.memory_space<vmem>>, %arg9: memref<1x64x8xf32, #tpu.memory_space<vmem>>, %arg10: memref<1x1x2x128xf32, #tpu.memory_space<vmem>>) attributes {dimension_semantics = [#tpu.dimension_semantics<parallel>, #tpu.dimension_semantics<parallel>], iteration_bounds = array<i64: 2, 1>, scalar_prefetch = 0 : i64, scratch_operands = 0 : i64, tpu.core_type = #tpu.core_type<tc>, window_params = [{transform_indices = @transform_0, window_bounds = array<i64: 1, 64, 128>}, {transform_indices = @transform_1, window_bounds = array<i64: 1, 2, 128>}, {pipeline_mode = #tpu.pipeline_mode<synchronous>, transform_indices = @transform_2, window_bounds = array<i64: 128, 256>}, {pipeline_mode = #tpu.pipeline_mode<synchronous>, transform_indices = @transform_3, window_bounds = array<i64: 1, 256>}, {pipeline_mode = #tpu.pipeline_mode<synchronous>, transform_indices = @transform_4, window_bounds = array<i64: 256, 128>}, {pipeline_mode = #tpu.pipeline_mode<synchronous>, transform_indices = @transform_5, window_bounds = array<i64: 1, 128>}, {transform_indices = @transform_6, window_bounds = array<i64: 1, 64, 128>}, {transform_indices = @transform_7, window_bounds = array<i64: 1, 64, 8>}, {transform_indices = @transform_8, window_bounds = array<i64: 1, 1, 2, 128>}]} {
    %c0 = arith.constant 0 : index
    %c0_0 = arith.constant 0 : index
    %c0_1 = arith.constant 0 : index
    %0 = vector.load %arg2[%c0, %c0_0, %c0_1] : memref<1x64x128xbf16, #tpu.memory_space<vmem>>, vector<1x64x128xbf16>
    %1 = vector.shape_cast %0 : vector<1x64x128xbf16> to vector<64x128xbf16>
    %2 = arith.extf %1 : vector<64x128xbf16> to vector<64x128xf32>
    %c0_2 = arith.constant 0 : index
    %c0_3 = arith.constant 0 : index
    %c0_4 = arith.constant 0 : index
    %3 = vector.load %arg3[%c0_2, %c0_3, %c0_4] : memref<1x2x128xf32, #tpu.memory_space<vmem>>, vector<1x1x128xf32>
    %4 = vector.shape_cast %3 : vector<1x1x128xf32> to vector<1x128xf32>
    %5 = vector.broadcast %4 : vector<1x128xf32> to vector<64x128xf32>
    %6 = arith.mulf %2, %5 : vector<64x128xf32>
    %c0_5 = arith.constant 0 : index
    %c1 = arith.constant 1 : index
    %c0_6 = arith.constant 0 : index
    %7 = vector.load %arg3[%c0_5, %c1, %c0_6] : memref<1x2x128xf32, #tpu.memory_space<vmem>>, vector<1x1x128xf32>
    %8 = vector.shape_cast %7 : vector<1x1x128xf32> to vector<1x128xf32>
    %9 = vector.broadcast %8 : vector<1x128xf32> to vector<64x128xf32>
    %10 = arith.addf %6, %9 : vector<64x128xf32>
    %11 = arith.truncf %10 : vector<64x128xf32> to vector<64x128xbf16>
    %c0_7 = arith.constant 0 : index
    %c0_8 = arith.constant 0 : index
    %12 = vector.load %arg4[%c0_7, %c0_8] : memref<128x256xbf16, #tpu.memory_space<vmem>>, vector<128x256xbf16>
    %cst = arith.constant dense<0.000000e+00> : vector<64x256xf32>
    %13 = tpu.matmul %11, %12, %cst {dimension_numbers = #tpu.dot_dimension_numbers<[1], [0], [0], [1], [0, 0, 1, 1], [], []>} : vector<64x128xbf16>, vector<128x256xbf16>, vector<64x256xf32> -> vector<64x256xf32>
    %c0_9 = arith.constant 0 : index
    %c0_10 = arith.constant 0 : index
    %14 = vector.load %arg5[%c0_9, %c0_10] : memref<1x256xf32, #tpu.memory_space<vmem>>, vector<1x256xf32>
    %15 = vector.broadcast %14 : vector<1x256xf32> to vector<64x256xf32>
    %16 = arith.addf %13, %15 : vector<64x256xf32>
    %17 = vector.extract_strided_slice %16 {offsets = [0, 0], sizes = [64, 128], strides = [1, 1]} : vector<64x256xf32> to vector<64x128xf32>
    %cst_11 = arith.constant 0.000000e+00 : f32
    %18 = vector.broadcast %cst_11 : f32 to vector<64x128xf32>
    %19 = arith.cmpf ogt, %17, %18 : vector<64x128xf32>
    %cst_12 = arith.constant 0.000000e+00 : f32
    %20 = vector.broadcast %cst_12 : f32 to vector<64x128xf32>
    %21 = arith.minimumf %17, %20 : vector<64x128xf32>
    %22 = math.exp %21 : vector<64x128xf32>
    %cst_13 = arith.constant 1.000000e+00 : f32
    %23 = vector.broadcast %cst_13 : f32 to vector<64x128xf32>
    %24 = arith.subf %22, %23 : vector<64x128xf32>
    %25 = arith.select %19, %17, %24 : vector<64x128xi1>, vector<64x128xf32>
    %26 = vector.extract_strided_slice %16 {offsets = [0, 128], sizes = [64, 128], strides = [1, 1]} : vector<64x256xf32> to vector<64x128xf32>
    %27 = vector.extract_strided_slice %26 {offsets = [0, 0], sizes = [64, 8], strides = [1, 1]} : vector<64x128xf32> to vector<64x8xf32>
    %c0_14 = arith.constant 0 : index
    %c0_15 = arith.constant 0 : index
    %c0_16 = arith.constant 0 : index
    %28 = vector.load %arg9[%c0_14, %c0_15, %c0_16] : memref<1x64x8xf32, #tpu.memory_space<vmem>>, vector<1x64x8xf32>
    %29 = vector.shape_cast %28 : vector<1x64x8xf32> to vector<64x8xf32>
    %30 = vector.shape_cast %27 : vector<64x8xf32> to vector<1x64x8xf32>
    tpu.vector_store %arg9[%c0_14, %c0_15, %c0_16], %30 {strides = array<i32>} : memref<1x64x8xf32, #tpu.memory_space<vmem>>, vector<1x64x8xf32>,
    %31 = arith.truncf %25 : vector<64x128xf32> to vector<64x128xbf16>
    %32 = tpu.concatenate %1, %31 in 1 : vector<64x128xbf16>, vector<64x128xbf16> -> vector<64x256xbf16>
    %c0_17 = arith.constant 0 : index
    %c0_18 = arith.constant 0 : index
    %33 = vector.load %arg6[%c0_17, %c0_18] : memref<256x128xbf16, #tpu.memory_space<vmem>>, vector<256x128xbf16>
    %cst_19 = arith.constant dense<0.000000e+00> : vector<64x128xf32>
    %34 = tpu.matmul %32, %33, %cst_19 {dimension_numbers = #tpu.dot_dimension_numbers<[1], [0], [0], [1], [0, 0, 1, 1], [], []>} : vector<64x256xbf16>, vector<256x128xbf16>, vector<64x128xf32> -> vector<64x128xf32>
    %c0_20 = arith.constant 0 : index
    %c0_21 = arith.constant 0 : index
    %35 = vector.load %arg7[%c0_20, %c0_21] : memref<1x128xf32, #tpu.memory_space<vmem>>, vector<1x128xf32>
    %36 = vector.broadcast %35 : vector<1x128xf32> to vector<64x128xf32>
    %37 = arith.addf %34, %36 : vector<64x128xf32>
    %cst_22 = arith.constant 0.000000e+00 : f32
    %38 = vector.broadcast %cst_22 : f32 to vector<64x128xf32>
    %39 = arith.cmpf ogt, %37, %38 : vector<64x128xf32>
    %cst_23 = arith.constant 0.000000e+00 : f32
    %40 = vector.broadcast %cst_23 : f32 to vector<64x128xf32>
    %41 = arith.minimumf %37, %40 : vector<64x128xf32>
    %42 = math.exp %41 : vector<64x128xf32>
    %cst_24 = arith.constant 1.000000e+00 : f32
    %43 = vector.broadcast %cst_24 : f32 to vector<64x128xf32>
    %44 = arith.subf %42, %43 : vector<64x128xf32>
    %45 = arith.select %39, %37, %44 : vector<64x128xi1>, vector<64x128xf32>
    %46 = arith.truncf %45 : vector<64x128xf32> to vector<64x128xbf16>
    %c0_25 = arith.constant 0 : index
    %c0_26 = arith.constant 0 : index
    %c0_27 = arith.constant 0 : index
    %47 = vector.load %arg8[%c0_25, %c0_26, %c0_27] : memref<1x64x128xbf16, #tpu.memory_space<vmem>>, vector<1x64x128xbf16>
    %48 = vector.shape_cast %47 : vector<1x64x128xbf16> to vector<64x128xbf16>
    %49 = vector.shape_cast %46 : vector<64x128xbf16> to vector<1x64x128xbf16>
    tpu.vector_store %arg8[%c0_25, %c0_26, %c0_27], %49 {strides = array<i32>} : memref<1x64x128xbf16, #tpu.memory_space<vmem>>, vector<1x64x128xbf16>,
    %50 = arith.extf %46 : vector<64x128xbf16> to vector<64x128xf32>
    %cst_28 = arith.constant dense<0.000000e+00> : vector<128xf32>
    %51 = vector.multi_reduction <add>, %50, %cst_28 [0] : vector<64x128xf32> to vector<128xf32>
    %52 = vector.shape_cast %51 : vector<128xf32> to vector<1x128xf32>
    %cst_29 = arith.constant 6.400000e+01 : f32
    %53 = vector.broadcast %cst_29 : f32 to vector<1x128xf32>
    %54 = arith.divf %52, %53 : vector<1x128xf32>
    %55 = vector.broadcast %54 : vector<1x128xf32> to vector<64x128xf32>
    %56 = arith.subf %50, %55 : vector<64x128xf32>
    %c0_30 = arith.constant 0 : index
    %c0_31 = arith.constant 0 : index
    %c0_32 = arith.constant 0 : index
    %c0_33 = arith.constant 0 : index
    %57 = vector.load %arg10[%c0_30, %c0_31, %c0_32, %c0_33] : memref<1x1x2x128xf32, #tpu.memory_space<vmem>>, vector<1x1x1x128xf32>
    %58 = vector.shape_cast %57 : vector<1x1x1x128xf32> to vector<1x128xf32>
    %59 = vector.shape_cast %54 : vector<1x128xf32> to vector<1x1x1x128xf32>
    tpu.vector_store %arg10[%c0_30, %c0_31, %c0_32, %c0_33], %59 {strides = array<i32>} : memref<1x1x2x128xf32, #tpu.memory_space<vmem>>, vector<1x1x1x128xf32>,
    %60 = arith.mulf %56, %56 : vector<64x128xf32>
    %cst_34 = arith.constant dense<0.000000e+00> : vector<128xf32>
    %61 = vector.multi_reduction <add>, %60, %cst_34 [0] : vector<64x128xf32> to vector<128xf32>
    %62 = vector.shape_cast %61 : vector<128xf32> to vector<1x128xf32>
    %c0_35 = arith.constant 0 : index
    %c0_36 = arith.constant 0 : index
    %c1_37 = arith.constant 1 : index
    %c0_38 = arith.constant 0 : index
    %63 = vector.load %arg10[%c0_35, %c0_36, %c1_37, %c0_38] : memref<1x1x2x128xf32, #tpu.memory_space<vmem>>, vector<1x1x1x128xf32>
    %64 = vector.shape_cast %63 : vector<1x1x1x128xf32> to vector<1x128xf32>
    %65 = vector.shape_cast %62 : vector<1x128xf32> to vector<1x1x1x128xf32>
    tpu.vector_store %arg10[%c0_35, %c0_36, %c1_37, %c0_38], %65 {strides = array<i32>} : memref<1x1x2x128xf32, #tpu.memory_space<vmem>>, vector<1x1x1x128xf32>,
    return
  }
  func.func @transform_0(%arg0: i32, %arg1: i32) -> (i32, i32, i32) {
    %c0_i32 = arith.constant 0 : i32
    %c0_i32_0 = arith.constant 0 : i32
    return %arg0, %arg1, %c0_i32 : i32, i32, i32
  }
  func.func @transform_1(%arg0: i32, %arg1: i32) -> (i32, i32, i32) {
    %c0_i32 = arith.constant 0 : i32
    %c0_i32_0 = arith.constant 0 : i32
    %c0_i32_1 = arith.constant 0 : i32
    return %arg0, %c0_i32, %c0_i32_0 : i32, i32, i32
  }
  func.func @transform_2(%arg0: i32, %arg1: i32) -> (i32, i32) {
    %c0_i32 = arith.constant 0 : i32
    %c0_i32_0 = arith.constant 0 : i32
    %c0_i32_1 = arith.constant 0 : i32
    return %c0_i32, %c0_i32_0 : i32, i32
  }
  func.func @transform_3(%arg0: i32, %arg1: i32) -> (i32, i32) {
    %c0_i32 = arith.constant 0 : i32
    %c0_i32_0 = arith.constant 0 : i32
    %c0_i32_1 = arith.constant 0 : i32
    return %c0_i32, %c0_i32_0 : i32, i32
  }
  func.func @transform_4(%arg0: i32, %arg1: i32) -> (i32, i32) {
    %c0_i32 = arith.constant 0 : i32
    %c0_i32_0 = arith.constant 0 : i32
    %c0_i32_1 = arith.constant 0 : i32
    return %c0_i32, %c0_i32_0 : i32, i32
  }
  func.func @transform_5(%arg0: i32, %arg1: i32) -> (i32, i32) {
    %c0_i32 = arith.constant 0 : i32
    %c0_i32_0 = arith.constant 0 : i32
    %c0_i32_1 = arith.constant 0 : i32
    return %c0_i32, %c0_i32_0 : i32, i32
  }
  func.func @transform_6(%arg0: i32, %arg1: i32) -> (i32, i32, i32) {
    %c0_i32 = arith.constant 0 : i32
    %c0_i32_0 = arith.constant 0 : i32
    return %arg0, %arg1, %c0_i32 : i32, i32, i32
  }
  func.func @transform_7(%arg0: i32, %arg1: i32) -> (i32, i32, i32) {
    %c0_i32 = arith.constant 0 : i32
    %c0_i32_0 = arith.constant 0 : i32
    return %arg0, %arg1, %c0_i32 : i32, i32, i32
  }
  func.func @transform_8(%arg0: i32, %arg1: i32) -> (i32, i32, i32, i32) {
    %c0_i32 = arith.constant 0 : i32
    %c0_i32_0 = arith.constant 0 : i32
    %c0_i32_1 = arith.constant 0 : i32
    return %arg0, %arg1, %c0_i32, %c0_i32_0 : i32, i32, i32, i32
  }
}

module attributes {stable_mosaic.version = 11 : i64} {
  func.func @cadist_kernel(%arg0: i32, %arg1: i32, %arg2: memref<1x8x8x8xf32, #tpu.memory_space<vmem>>, %arg3: memref<1x8x8xf32, #tpu.memory_space<vmem>>) attributes {dimension_semantics = [#tpu.dimension_semantics<parallel>, #tpu.dimension_semantics<arbitrary>], iteration_bounds = array<i64: 2, 1>, scalar_prefetch = 0 : i64, scratch_operands = 0 : i64, tpu.core_type = #tpu.core_type<tc>, window_params = [{transform_indices = @transform_0, window_bounds = array<i64: 1, 8, 8, 8>}, {transform_indices = @transform_1, window_bounds = array<i64: 1, 8, 8>}]} {
    %c0_i32 = arith.constant 0 : i32
    %0 = arith.cmpi eq, %arg1, %c0_i32 : i32
    %1 = arith.extui %0 : i1 to i32
    %c0_i32_0 = arith.constant 0 : i32
    %2 = arith.cmpi ne, %1, %c0_i32_0 : i32
    scf.if %2 {
      %cst = arith.constant 0.000000e+00 : f32
      %8 = vector.broadcast %cst : f32 to vector<8x8xf32>
      %c0 = arith.constant 0 : index
      %c0_5 = arith.constant 0 : index
      %c0_6 = arith.constant 0 : index
      %9 = vector.load %arg3[%c0, %c0_5, %c0_6] : memref<1x8x8xf32, #tpu.memory_space<vmem>>, vector<1x8x8xf32>
      %10 = vector.shape_cast %9 : vector<1x8x8xf32> to vector<8x8xf32>
      %11 = vector.shape_cast %8 : vector<8x8xf32> to vector<1x8x8xf32>
      tpu.vector_store %arg3[%c0, %c0_5, %c0_6], %11 {strides = array<i32>} : memref<1x8x8xf32, #tpu.memory_space<vmem>>, vector<1x8x8xf32>,
    } else {
    }
    %3 = tpu.iota {dimensions = array<i32: 0>} : vector<8x1xi32>
    %c0_i32_1 = arith.constant 0 : i32
    %c8_i32 = arith.constant 8 : i32
    %4 = arith.addi %c0_i32_1, %c8_i32 : i32
    %c1_i32 = arith.constant 1 : i32
    scf.for %arg4 = %c0_i32_1 to %4 step %c1_i32  : i32 {
      %c1_i32_5 = arith.constant 1 : i32
      %8 = arith.muli %arg4, %c1_i32_5 : i32
      %c0_i32_6 = arith.constant 0 : i32
      %9 = arith.addi %c0_i32_6, %8 : i32
      %c0 = arith.constant 0 : index
      %10 = arith.index_cast %9 : i32 to index
      %c0_7 = arith.constant 0 : index
      %c0_8 = arith.constant 0 : index
      %11 = vector.load %arg2[%c0, %10, %c0_7, %c0_8] : memref<1x8x8x8xf32, #tpu.memory_space<vmem>>, vector<1x1x8x8xf32>
      %12 = vector.shape_cast %11 : vector<1x1x8x8xf32> to vector<8x8xf32>
      %13 = arith.mulf %12, %12 : vector<8x8xf32>
      %cst = arith.constant dense<0.000000e+00> : vector<8xf32>
      %14 = vector.multi_reduction <add>, %13, %cst [0] : vector<8x8xf32> to vector<8xf32>
      %15 = vector.shape_cast %14 : vector<8xf32> to vector<1x8xf32>
      %c0_i32_9 = arith.constant 0 : i32
      %16 = vector.broadcast %c0_i32_9 : i32 to vector<8x1xi32>
      %17 = arith.cmpi eq, %3, %16 : vector<8x1xi32>
      %c1_i32_10 = arith.constant 1 : i32
      %18 = vector.broadcast %c1_i32_10 : i32 to vector<8x1xi32>
      %19 = arith.cmpi eq, %3, %18 : vector<8x1xi32>
      %cst_11 = arith.constant 1.000000e+00 : f32
      %cst_12 = arith.constant 0.000000e+00 : f32
      %20 = vector.broadcast %cst_11 : f32 to vector<8x1xf32>
      %21 = vector.broadcast %cst_12 : f32 to vector<8x1xf32>
      %22 = arith.select %19, %20, %21 : vector<8x1xi1>, vector<8x1xf32>
      %23 = vector.shape_cast %17 : vector<8x1xi1> to vector<8x1xi1>
      %24 = vector.broadcast %23 : vector<8x1xi1> to vector<8x8xi1>
      %25 = vector.shape_cast %15 : vector<1x8xf32> to vector<1x8xf32>
      %26 = vector.broadcast %25 : vector<1x8xf32> to vector<8x8xf32>
      %27 = vector.shape_cast %22 : vector<8x1xf32> to vector<8x1xf32>
      %28 = vector.broadcast %27 : vector<8x1xf32> to vector<8x8xf32>
      %29 = arith.select %24, %26, %28 : vector<8x8xi1>, vector<8x8xf32>
      %c0_i32_13 = arith.constant 0 : i32
      %30 = vector.broadcast %c0_i32_13 : i32 to vector<8x1xi32>
      %31 = arith.cmpi eq, %3, %30 : vector<8x1xi32>
      %c1_i32_14 = arith.constant 1 : i32
      %32 = vector.broadcast %c1_i32_14 : i32 to vector<8x1xi32>
      %33 = arith.cmpi eq, %3, %32 : vector<8x1xi32>
      %cst_15 = arith.constant 0.000000e+00 : f32
      %34 = vector.shape_cast %33 : vector<8x1xi1> to vector<8x1xi1>
      %35 = vector.broadcast %34 : vector<8x1xi1> to vector<8x8xi1>
      %36 = vector.shape_cast %15 : vector<1x8xf32> to vector<1x8xf32>
      %37 = vector.broadcast %36 : vector<1x8xf32> to vector<8x8xf32>
      %38 = vector.broadcast %cst_15 : f32 to vector<8x8xf32>
      %39 = arith.select %35, %37, %38 : vector<8x8xi1>, vector<8x8xf32>
      %cst_16 = arith.constant 1.000000e+00 : f32
      %40 = vector.shape_cast %31 : vector<8x1xi1> to vector<8x1xi1>
      %41 = vector.broadcast %40 : vector<8x1xi1> to vector<8x8xi1>
      %42 = vector.broadcast %cst_16 : f32 to vector<8x8xf32>
      %43 = arith.select %41, %42, %39 : vector<8x8xi1>, vector<8x8xf32>
      %44 = tpu.concatenate %12, %29 in 0 : vector<8x8xf32>, vector<8x8xf32> -> vector<16x8xf32>
      %cst_17 = arith.constant -2.000000e+00 : f32
      %45 = vector.broadcast %cst_17 : f32 to vector<8x8xf32>
      %46 = arith.mulf %12, %45 : vector<8x8xf32>
      %47 = tpu.concatenate %46, %43 in 0 : vector<8x8xf32>, vector<8x8xf32> -> vector<16x8xf32>
      %cst_18 = arith.constant dense<0.000000e+00> : vector<8x8xf32>
      %48 = tpu.matmul %44, %47, %cst_18 {dimension_numbers = #tpu.dot_dimension_numbers<[0], [0], [1], [1], [0, 1, 1, 1], [], []>} : vector<16x8xf32>, vector<16x8xf32>, vector<8x8xf32> -> vector<8x8xf32>
      %c0_19 = arith.constant 0 : index
      %c0_20 = arith.constant 0 : index
      %c0_21 = arith.constant 0 : index
      %49 = vector.load %arg3[%c0_19, %c0_20, %c0_21] : memref<1x8x8xf32, #tpu.memory_space<vmem>>, vector<1x8x8xf32>
      %50 = vector.shape_cast %49 : vector<1x8x8xf32> to vector<8x8xf32>
      %cst_22 = arith.constant 0.000000e+00 : f32
      %51 = vector.broadcast %cst_22 : f32 to vector<8x8xf32>
      %52 = arith.maximumf %48, %51 : vector<8x8xf32>
      %cst_23 = arith.constant 9.99999993E-9 : f32
      %53 = vector.broadcast %cst_23 : f32 to vector<8x8xf32>
      %54 = arith.addf %52, %53 : vector<8x8xf32>
      %55 = math.sqrt %54 : vector<8x8xf32>
      %56 = arith.addf %50, %55 : vector<8x8xf32>
      %c0_24 = arith.constant 0 : index
      %c0_25 = arith.constant 0 : index
      %c0_26 = arith.constant 0 : index
      %57 = vector.load %arg3[%c0_24, %c0_25, %c0_26] : memref<1x8x8xf32, #tpu.memory_space<vmem>>, vector<1x8x8xf32>
      %58 = vector.shape_cast %57 : vector<1x8x8xf32> to vector<8x8xf32>
      %59 = vector.shape_cast %56 : vector<8x8xf32> to vector<1x8x8xf32>
      tpu.vector_store %arg3[%c0_24, %c0_25, %c0_26], %59 {strides = array<i32>} : memref<1x8x8xf32, #tpu.memory_space<vmem>>, vector<1x8x8xf32>,
    }
    %c8_i32_2 = arith.constant 8 : i32
    %c0_i32_3 = arith.constant 0 : i32
    %5 = arith.cmpi eq, %arg1, %c0_i32_3 : i32
    %6 = arith.extui %5 : i1 to i32
    %c0_i32_4 = arith.constant 0 : i32
    %7 = arith.cmpi ne, %6, %c0_i32_4 : i32
    scf.if %7 {
      %c0 = arith.constant 0 : index
      %c0_5 = arith.constant 0 : index
      %c0_6 = arith.constant 0 : index
      %8 = vector.load %arg3[%c0, %c0_5, %c0_6] : memref<1x8x8xf32, #tpu.memory_space<vmem>>, vector<1x8x8xf32>
      %9 = vector.shape_cast %8 : vector<1x8x8xf32> to vector<8x8xf32>
      %cst = arith.constant 1.250000e-01 : f32
      %10 = vector.broadcast %cst : f32 to vector<8x8xf32>
      %11 = arith.mulf %9, %10 : vector<8x8xf32>
      %c0_7 = arith.constant 0 : index
      %c0_8 = arith.constant 0 : index
      %c0_9 = arith.constant 0 : index
      %12 = vector.load %arg3[%c0_7, %c0_8, %c0_9] : memref<1x8x8xf32, #tpu.memory_space<vmem>>, vector<1x8x8xf32>
      %13 = vector.shape_cast %12 : vector<1x8x8xf32> to vector<8x8xf32>
      %14 = vector.shape_cast %11 : vector<8x8xf32> to vector<1x8x8xf32>
      tpu.vector_store %arg3[%c0_7, %c0_8, %c0_9], %14 {strides = array<i32>} : memref<1x8x8xf32, #tpu.memory_space<vmem>>, vector<1x8x8xf32>,
    } else {
    }
    return
  }
  func.func @transform_0(%arg0: i32, %arg1: i32) -> (i32, i32, i32, i32) {
    %c0_i32 = arith.constant 0 : i32
    %c0_i32_0 = arith.constant 0 : i32
    %c0_i32_1 = arith.constant 0 : i32
    return %arg0, %arg1, %c0_i32, %c0_i32_0 : i32, i32, i32, i32
  }
  func.func @transform_1(%arg0: i32, %arg1: i32) -> (i32, i32, i32) {
    %c0_i32 = arith.constant 0 : i32
    %c0_i32_0 = arith.constant 0 : i32
    %c0_i32_1 = arith.constant 0 : i32
    return %arg0, %c0_i32, %c0_i32_0 : i32, i32, i32
  }
}

module attributes {stable_mosaic.version = 11 : i64} {
  func.func @fused_head_fr_kernel(%arg0: i32, %arg1: i32, %arg2: memref<1x64x128xbf16, #tpu.memory_space<vmem>>, %arg3: memref<1x2x128xf32, #tpu.memory_space<vmem>>, %arg4: memref<1x64x1xf32, #tpu.memory_space<vmem>>, %arg5: memref<128x256xbf16, #tpu.memory_space<vmem>>, %arg6: memref<1x256xf32, #tpu.memory_space<vmem>>, %arg7: memref<1x256xf32, #tpu.memory_space<vmem>>, %arg8: memref<256x128xbf16, #tpu.memory_space<vmem>>, %arg9: memref<1x128xf32, #tpu.memory_space<vmem>>, %arg10: memref<1x64x128xbf16, #tpu.memory_space<vmem>>, %arg11: memref<1x64x8xf32, #tpu.memory_space<vmem>>, %arg12: memref<1x1x2x128xf32, #tpu.memory_space<vmem>>) attributes {dimension_semantics = [#tpu.dimension_semantics<parallel>, #tpu.dimension_semantics<parallel>], iteration_bounds = array<i64: 2, 1>, scalar_prefetch = 0 : i64, scratch_operands = 0 : i64, tpu.core_type = #tpu.core_type<tc>, window_params = [{transform_indices = @transform_0, window_bounds = array<i64: 1, 64, 128>}, {transform_indices = @transform_1, window_bounds = array<i64: 1, 2, 128>}, {transform_indices = @transform_2, window_bounds = array<i64: 1, 64, 1>}, {pipeline_mode = #tpu.pipeline_mode<synchronous>, transform_indices = @transform_3, window_bounds = array<i64: 128, 256>}, {pipeline_mode = #tpu.pipeline_mode<synchronous>, transform_indices = @transform_4, window_bounds = array<i64: 1, 256>}, {pipeline_mode = #tpu.pipeline_mode<synchronous>, transform_indices = @transform_5, window_bounds = array<i64: 1, 256>}, {pipeline_mode = #tpu.pipeline_mode<synchronous>, transform_indices = @transform_6, window_bounds = array<i64: 256, 128>}, {pipeline_mode = #tpu.pipeline_mode<synchronous>, transform_indices = @transform_7, window_bounds = array<i64: 1, 128>}, {transform_indices = @transform_8, window_bounds = array<i64: 1, 64, 128>}, {transform_indices = @transform_9, window_bounds = array<i64: 1, 64, 8>}, {transform_indices = @transform_10, window_bounds = array<i64: 1, 1, 2, 128>}]} {
    %c0 = arith.constant 0 : index
    %c0_0 = arith.constant 0 : index
    %c0_1 = arith.constant 0 : index
    %0 = vector.load %arg2[%c0, %c0_0, %c0_1] : memref<1x64x128xbf16, #tpu.memory_space<vmem>>, vector<1x64x128xbf16>
    %1 = vector.shape_cast %0 : vector<1x64x128xbf16> to vector<64x128xbf16>
    %2 = arith.extf %1 : vector<64x128xbf16> to vector<64x128xf32>
    %c0_2 = arith.constant 0 : index
    %c0_3 = arith.constant 0 : index
    %c0_4 = arith.constant 0 : index
    %3 = vector.load %arg3[%c0_2, %c0_3, %c0_4] : memref<1x2x128xf32, #tpu.memory_space<vmem>>, vector<1x1x128xf32>
    %4 = vector.shape_cast %3 : vector<1x1x128xf32> to vector<1x128xf32>
    %5 = vector.broadcast %4 : vector<1x128xf32> to vector<64x128xf32>
    %6 = arith.mulf %2, %5 : vector<64x128xf32>
    %c0_5 = arith.constant 0 : index
    %c1 = arith.constant 1 : index
    %c0_6 = arith.constant 0 : index
    %7 = vector.load %arg3[%c0_5, %c1, %c0_6] : memref<1x2x128xf32, #tpu.memory_space<vmem>>, vector<1x1x128xf32>
    %8 = vector.shape_cast %7 : vector<1x1x128xf32> to vector<1x128xf32>
    %9 = vector.broadcast %8 : vector<1x128xf32> to vector<64x128xf32>
    %10 = arith.addf %6, %9 : vector<64x128xf32>
    %11 = arith.truncf %10 : vector<64x128xf32> to vector<64x128xbf16>
    %c0_7 = arith.constant 0 : index
    %c0_8 = arith.constant 0 : index
    %12 = vector.load %arg5[%c0_7, %c0_8] : memref<128x256xbf16, #tpu.memory_space<vmem>>, vector<128x256xbf16>
    %cst = arith.constant dense<0.000000e+00> : vector<64x256xf32>
    %13 = tpu.matmul %11, %12, %cst {dimension_numbers = #tpu.dot_dimension_numbers<[1], [0], [0], [1], [0, 0, 1, 1], [], []>} : vector<64x128xbf16>, vector<128x256xbf16>, vector<64x256xf32> -> vector<64x256xf32>
    %c0_9 = arith.constant 0 : index
    %c0_10 = arith.constant 0 : index
    %14 = vector.load %arg7[%c0_9, %c0_10] : memref<1x256xf32, #tpu.memory_space<vmem>>, vector<1x256xf32>
    %15 = vector.broadcast %14 : vector<1x256xf32> to vector<64x256xf32>
    %16 = arith.addf %13, %15 : vector<64x256xf32>
    %c0_11 = arith.constant 0 : index
    %c0_12 = arith.constant 0 : index
    %c0_13 = arith.constant 0 : index
    %17 = vector.load %arg4[%c0_11, %c0_12, %c0_13] : memref<1x64x1xf32, #tpu.memory_space<vmem>>, vector<1x64x1xf32>
    %18 = vector.shape_cast %17 : vector<1x64x1xf32> to vector<64x1xf32>
    %c0_14 = arith.constant 0 : index
    %c0_15 = arith.constant 0 : index
    %19 = vector.load %arg6[%c0_14, %c0_15] : memref<1x256xf32, #tpu.memory_space<vmem>>, vector<1x256xf32>
    %20 = vector.broadcast %18 : vector<64x1xf32> to vector<64x256xf32>
    %21 = vector.broadcast %19 : vector<1x256xf32> to vector<64x256xf32>
    %22 = arith.mulf %20, %21 : vector<64x256xf32>
    %23 = arith.addf %16, %22 : vector<64x256xf32>
    %24 = vector.extract_strided_slice %23 {offsets = [0, 0], sizes = [64, 128], strides = [1, 1]} : vector<64x256xf32> to vector<64x128xf32>
    %cst_16 = arith.constant 0.000000e+00 : f32
    %25 = vector.broadcast %cst_16 : f32 to vector<64x128xf32>
    %26 = arith.cmpf ogt, %24, %25 : vector<64x128xf32>
    %cst_17 = arith.constant 0.000000e+00 : f32
    %27 = vector.broadcast %cst_17 : f32 to vector<64x128xf32>
    %28 = arith.minimumf %24, %27 : vector<64x128xf32>
    %29 = math.exp %28 : vector<64x128xf32>
    %cst_18 = arith.constant 1.000000e+00 : f32
    %30 = vector.broadcast %cst_18 : f32 to vector<64x128xf32>
    %31 = arith.subf %29, %30 : vector<64x128xf32>
    %32 = arith.select %26, %24, %31 : vector<64x128xi1>, vector<64x128xf32>
    %33 = vector.extract_strided_slice %23 {offsets = [0, 128], sizes = [64, 128], strides = [1, 1]} : vector<64x256xf32> to vector<64x128xf32>
    %34 = vector.extract_strided_slice %33 {offsets = [0, 0], sizes = [64, 8], strides = [1, 1]} : vector<64x128xf32> to vector<64x8xf32>
    %c0_19 = arith.constant 0 : index
    %c0_20 = arith.constant 0 : index
    %c0_21 = arith.constant 0 : index
    %35 = vector.load %arg11[%c0_19, %c0_20, %c0_21] : memref<1x64x8xf32, #tpu.memory_space<vmem>>, vector<1x64x8xf32>
    %36 = vector.shape_cast %35 : vector<1x64x8xf32> to vector<64x8xf32>
    %37 = vector.shape_cast %34 : vector<64x8xf32> to vector<1x64x8xf32>
    tpu.vector_store %arg11[%c0_19, %c0_20, %c0_21], %37 {strides = array<i32>} : memref<1x64x8xf32, #tpu.memory_space<vmem>>, vector<1x64x8xf32>,
    %38 = arith.truncf %32 : vector<64x128xf32> to vector<64x128xbf16>
    %39 = tpu.concatenate %1, %38 in 1 : vector<64x128xbf16>, vector<64x128xbf16> -> vector<64x256xbf16>
    %c0_22 = arith.constant 0 : index
    %c0_23 = arith.constant 0 : index
    %40 = vector.load %arg8[%c0_22, %c0_23] : memref<256x128xbf16, #tpu.memory_space<vmem>>, vector<256x128xbf16>
    %cst_24 = arith.constant dense<0.000000e+00> : vector<64x128xf32>
    %41 = tpu.matmul %39, %40, %cst_24 {dimension_numbers = #tpu.dot_dimension_numbers<[1], [0], [0], [1], [0, 0, 1, 1], [], []>} : vector<64x256xbf16>, vector<256x128xbf16>, vector<64x128xf32> -> vector<64x128xf32>
    %c0_25 = arith.constant 0 : index
    %c0_26 = arith.constant 0 : index
    %42 = vector.load %arg9[%c0_25, %c0_26] : memref<1x128xf32, #tpu.memory_space<vmem>>, vector<1x128xf32>
    %43 = vector.broadcast %42 : vector<1x128xf32> to vector<64x128xf32>
    %44 = arith.addf %41, %43 : vector<64x128xf32>
    %cst_27 = arith.constant 0.000000e+00 : f32
    %45 = vector.broadcast %cst_27 : f32 to vector<64x128xf32>
    %46 = arith.cmpf ogt, %44, %45 : vector<64x128xf32>
    %cst_28 = arith.constant 0.000000e+00 : f32
    %47 = vector.broadcast %cst_28 : f32 to vector<64x128xf32>
    %48 = arith.minimumf %44, %47 : vector<64x128xf32>
    %49 = math.exp %48 : vector<64x128xf32>
    %cst_29 = arith.constant 1.000000e+00 : f32
    %50 = vector.broadcast %cst_29 : f32 to vector<64x128xf32>
    %51 = arith.subf %49, %50 : vector<64x128xf32>
    %52 = arith.select %46, %44, %51 : vector<64x128xi1>, vector<64x128xf32>
    %53 = arith.truncf %52 : vector<64x128xf32> to vector<64x128xbf16>
    %c0_30 = arith.constant 0 : index
    %c0_31 = arith.constant 0 : index
    %c0_32 = arith.constant 0 : index
    %54 = vector.load %arg10[%c0_30, %c0_31, %c0_32] : memref<1x64x128xbf16, #tpu.memory_space<vmem>>, vector<1x64x128xbf16>
    %55 = vector.shape_cast %54 : vector<1x64x128xbf16> to vector<64x128xbf16>
    %56 = vector.shape_cast %53 : vector<64x128xbf16> to vector<1x64x128xbf16>
    tpu.vector_store %arg10[%c0_30, %c0_31, %c0_32], %56 {strides = array<i32>} : memref<1x64x128xbf16, #tpu.memory_space<vmem>>, vector<1x64x128xbf16>,
    %57 = arith.extf %53 : vector<64x128xbf16> to vector<64x128xf32>
    %cst_33 = arith.constant dense<0.000000e+00> : vector<128xf32>
    %58 = vector.multi_reduction <add>, %57, %cst_33 [0] : vector<64x128xf32> to vector<128xf32>
    %59 = vector.shape_cast %58 : vector<128xf32> to vector<1x128xf32>
    %cst_34 = arith.constant 6.400000e+01 : f32
    %60 = vector.broadcast %cst_34 : f32 to vector<1x128xf32>
    %61 = arith.divf %59, %60 : vector<1x128xf32>
    %62 = vector.broadcast %61 : vector<1x128xf32> to vector<64x128xf32>
    %63 = arith.subf %57, %62 : vector<64x128xf32>
    %c0_35 = arith.constant 0 : index
    %c0_36 = arith.constant 0 : index
    %c0_37 = arith.constant 0 : index
    %c0_38 = arith.constant 0 : index
    %64 = vector.load %arg12[%c0_35, %c0_36, %c0_37, %c0_38] : memref<1x1x2x128xf32, #tpu.memory_space<vmem>>, vector<1x1x1x128xf32>
    %65 = vector.shape_cast %64 : vector<1x1x1x128xf32> to vector<1x128xf32>
    %66 = vector.shape_cast %61 : vector<1x128xf32> to vector<1x1x1x128xf32>
    tpu.vector_store %arg12[%c0_35, %c0_36, %c0_37, %c0_38], %66 {strides = array<i32>} : memref<1x1x2x128xf32, #tpu.memory_space<vmem>>, vector<1x1x1x128xf32>,
    %67 = arith.mulf %63, %63 : vector<64x128xf32>
    %cst_39 = arith.constant dense<0.000000e+00> : vector<128xf32>
    %68 = vector.multi_reduction <add>, %67, %cst_39 [0] : vector<64x128xf32> to vector<128xf32>
    %69 = vector.shape_cast %68 : vector<128xf32> to vector<1x128xf32>
    %c0_40 = arith.constant 0 : index
    %c0_41 = arith.constant 0 : index
    %c1_42 = arith.constant 1 : index
    %c0_43 = arith.constant 0 : index
    %70 = vector.load %arg12[%c0_40, %c0_41, %c1_42, %c0_43] : memref<1x1x2x128xf32, #tpu.memory_space<vmem>>, vector<1x1x1x128xf32>
    %71 = vector.shape_cast %70 : vector<1x1x1x128xf32> to vector<1x128xf32>
    %72 = vector.shape_cast %69 : vector<1x128xf32> to vector<1x1x1x128xf32>
    tpu.vector_store %arg12[%c0_40, %c0_41, %c1_42, %c0_43], %72 {strides = array<i32>} : memref<1x1x2x128xf32, #tpu.memory_space<vmem>>, vector<1x1x1x128xf32>,
    return
  }
  func.func @transform_0(%arg0: i32, %arg1: i32) -> (i32, i32, i32) {
    %c0_i32 = arith.constant 0 : i32
    %c0_i32_0 = arith.constant 0 : i32
    return %arg0, %arg1, %c0_i32 : i32, i32, i32
  }
  func.func @transform_1(%arg0: i32, %arg1: i32) -> (i32, i32, i32) {
    %c0_i32 = arith.constant 0 : i32
    %c0_i32_0 = arith.constant 0 : i32
    %c0_i32_1 = arith.constant 0 : i32
    return %arg0, %c0_i32, %c0_i32_0 : i32, i32, i32
  }
  func.func @transform_2(%arg0: i32, %arg1: i32) -> (i32, i32, i32) {
    %c0_i32 = arith.constant 0 : i32
    %c0_i32_0 = arith.constant 0 : i32
    return %arg0, %arg1, %c0_i32 : i32, i32, i32
  }
  func.func @transform_3(%arg0: i32, %arg1: i32) -> (i32, i32) {
    %c0_i32 = arith.constant 0 : i32
    %c0_i32_0 = arith.constant 0 : i32
    %c0_i32_1 = arith.constant 0 : i32
    return %c0_i32, %c0_i32_0 : i32, i32
  }
  func.func @transform_4(%arg0: i32, %arg1: i32) -> (i32, i32) {
    %c0_i32 = arith.constant 0 : i32
    %c0_i32_0 = arith.constant 0 : i32
    %c0_i32_1 = arith.constant 0 : i32
    return %c0_i32, %c0_i32_0 : i32, i32
  }
  func.func @transform_5(%arg0: i32, %arg1: i32) -> (i32, i32) {
    %c0_i32 = arith.constant 0 : i32
    %c0_i32_0 = arith.constant 0 : i32
    %c0_i32_1 = arith.constant 0 : i32
    return %c0_i32, %c0_i32_0 : i32, i32
  }
  func.func @transform_6(%arg0: i32, %arg1: i32) -> (i32, i32) {
    %c0_i32 = arith.constant 0 : i32
    %c0_i32_0 = arith.constant 0 : i32
    %c0_i32_1 = arith.constant 0 : i32
    return %c0_i32, %c0_i32_0 : i32, i32
  }
  func.func @transform_7(%arg0: i32, %arg1: i32) -> (i32, i32) {
    %c0_i32 = arith.constant 0 : i32
    %c0_i32_0 = arith.constant 0 : i32
    %c0_i32_1 = arith.constant 0 : i32
    return %c0_i32, %c0_i32_0 : i32, i32
  }
  func.func @transform_8(%arg0: i32, %arg1: i32) -> (i32, i32, i32) {
    %c0_i32 = arith.constant 0 : i32
    %c0_i32_0 = arith.constant 0 : i32
    return %arg0, %arg1, %c0_i32 : i32, i32, i32
  }
  func.func @transform_9(%arg0: i32, %arg1: i32) -> (i32, i32, i32) {
    %c0_i32 = arith.constant 0 : i32
    %c0_i32_0 = arith.constant 0 : i32
    return %arg0, %arg1, %c0_i32 : i32, i32, i32
  }
  func.func @transform_10(%arg0: i32, %arg1: i32) -> (i32, i32, i32, i32) {
    %c0_i32 = arith.constant 0 : i32
    %c0_i32_0 = arith.constant 0 : i32
    %c0_i32_1 = arith.constant 0 : i32
    return %arg0, %arg1, %c0_i32, %c0_i32_0 : i32, i32, i32, i32
  }
}

module attributes {stable_mosaic.version = 11 : i64} {
  func.func @final_head_kernel(%arg0: i32, %arg1: i32, %arg2: memref<1x64x128xbf16, #tpu.memory_space<vmem>>, %arg3: memref<1x2x128xf32, #tpu.memory_space<vmem>>, %arg4: memref<1x64x1xf32, #tpu.memory_space<vmem>>, %arg5: memref<128x256xbf16, #tpu.memory_space<vmem>>, %arg6: memref<1x256xf32, #tpu.memory_space<vmem>>, %arg7: memref<1x256xf32, #tpu.memory_space<vmem>>, %arg8: memref<1x64x128xf32, #tpu.memory_space<vmem>>, %arg9: memref<1x64x8xf32, #tpu.memory_space<vmem>>) attributes {dimension_semantics = [#tpu.dimension_semantics<parallel>, #tpu.dimension_semantics<parallel>], iteration_bounds = array<i64: 2, 1>, scalar_prefetch = 0 : i64, scratch_operands = 0 : i64, tpu.core_type = #tpu.core_type<tc>, window_params = [{transform_indices = @transform_0, window_bounds = array<i64: 1, 64, 128>}, {transform_indices = @transform_1, window_bounds = array<i64: 1, 2, 128>}, {transform_indices = @transform_2, window_bounds = array<i64: 1, 64, 1>}, {pipeline_mode = #tpu.pipeline_mode<synchronous>, transform_indices = @transform_3, window_bounds = array<i64: 128, 256>}, {pipeline_mode = #tpu.pipeline_mode<synchronous>, transform_indices = @transform_4, window_bounds = array<i64: 1, 256>}, {pipeline_mode = #tpu.pipeline_mode<synchronous>, transform_indices = @transform_5, window_bounds = array<i64: 1, 256>}, {transform_indices = @transform_6, window_bounds = array<i64: 1, 64, 128>}, {transform_indices = @transform_7, window_bounds = array<i64: 1, 64, 8>}]} {
    %c0 = arith.constant 0 : index
    %c0_0 = arith.constant 0 : index
    %c0_1 = arith.constant 0 : index
    %0 = vector.load %arg2[%c0, %c0_0, %c0_1] : memref<1x64x128xbf16, #tpu.memory_space<vmem>>, vector<1x64x128xbf16>
    %1 = vector.shape_cast %0 : vector<1x64x128xbf16> to vector<64x128xbf16>
    %2 = arith.extf %1 : vector<64x128xbf16> to vector<64x128xf32>
    %c0_2 = arith.constant 0 : index
    %c0_3 = arith.constant 0 : index
    %c0_4 = arith.constant 0 : index
    %3 = vector.load %arg3[%c0_2, %c0_3, %c0_4] : memref<1x2x128xf32, #tpu.memory_space<vmem>>, vector<1x1x128xf32>
    %4 = vector.shape_cast %3 : vector<1x1x128xf32> to vector<1x128xf32>
    %5 = vector.broadcast %4 : vector<1x128xf32> to vector<64x128xf32>
    %6 = arith.mulf %2, %5 : vector<64x128xf32>
    %c0_5 = arith.constant 0 : index
    %c1 = arith.constant 1 : index
    %c0_6 = arith.constant 0 : index
    %7 = vector.load %arg3[%c0_5, %c1, %c0_6] : memref<1x2x128xf32, #tpu.memory_space<vmem>>, vector<1x1x128xf32>
    %8 = vector.shape_cast %7 : vector<1x1x128xf32> to vector<1x128xf32>
    %9 = vector.broadcast %8 : vector<1x128xf32> to vector<64x128xf32>
    %10 = arith.addf %6, %9 : vector<64x128xf32>
    %11 = arith.truncf %10 : vector<64x128xf32> to vector<64x128xbf16>
    %c0_7 = arith.constant 0 : index
    %c0_8 = arith.constant 0 : index
    %12 = vector.load %arg5[%c0_7, %c0_8] : memref<128x256xbf16, #tpu.memory_space<vmem>>, vector<128x256xbf16>
    %cst = arith.constant dense<0.000000e+00> : vector<64x256xf32>
    %13 = tpu.matmul %11, %12, %cst {dimension_numbers = #tpu.dot_dimension_numbers<[1], [0], [0], [1], [0, 0, 1, 1], [], []>} : vector<64x128xbf16>, vector<128x256xbf16>, vector<64x256xf32> -> vector<64x256xf32>
    %c0_9 = arith.constant 0 : index
    %c0_10 = arith.constant 0 : index
    %14 = vector.load %arg7[%c0_9, %c0_10] : memref<1x256xf32, #tpu.memory_space<vmem>>, vector<1x256xf32>
    %15 = vector.broadcast %14 : vector<1x256xf32> to vector<64x256xf32>
    %16 = arith.addf %13, %15 : vector<64x256xf32>
    %c0_11 = arith.constant 0 : index
    %c0_12 = arith.constant 0 : index
    %c0_13 = arith.constant 0 : index
    %17 = vector.load %arg4[%c0_11, %c0_12, %c0_13] : memref<1x64x1xf32, #tpu.memory_space<vmem>>, vector<1x64x1xf32>
    %18 = vector.shape_cast %17 : vector<1x64x1xf32> to vector<64x1xf32>
    %c0_14 = arith.constant 0 : index
    %c0_15 = arith.constant 0 : index
    %19 = vector.load %arg6[%c0_14, %c0_15] : memref<1x256xf32, #tpu.memory_space<vmem>>, vector<1x256xf32>
    %20 = vector.broadcast %18 : vector<64x1xf32> to vector<64x256xf32>
    %21 = vector.broadcast %19 : vector<1x256xf32> to vector<64x256xf32>
    %22 = arith.mulf %20, %21 : vector<64x256xf32>
    %23 = arith.addf %16, %22 : vector<64x256xf32>
    %24 = vector.extract_strided_slice %23 {offsets = [0, 0], sizes = [64, 128], strides = [1, 1]} : vector<64x256xf32> to vector<64x128xf32>
    %cst_16 = arith.constant 0.000000e+00 : f32
    %25 = vector.broadcast %cst_16 : f32 to vector<64x128xf32>
    %26 = arith.cmpf ogt, %24, %25 : vector<64x128xf32>
    %cst_17 = arith.constant 0.000000e+00 : f32
    %27 = vector.broadcast %cst_17 : f32 to vector<64x128xf32>
    %28 = arith.minimumf %24, %27 : vector<64x128xf32>
    %29 = math.exp %28 : vector<64x128xf32>
    %cst_18 = arith.constant 1.000000e+00 : f32
    %30 = vector.broadcast %cst_18 : f32 to vector<64x128xf32>
    %31 = arith.subf %29, %30 : vector<64x128xf32>
    %32 = arith.select %26, %24, %31 : vector<64x128xi1>, vector<64x128xf32>
    %c0_19 = arith.constant 0 : index
    %c0_20 = arith.constant 0 : index
    %c0_21 = arith.constant 0 : index
    %33 = vector.load %arg8[%c0_19, %c0_20, %c0_21] : memref<1x64x128xf32, #tpu.memory_space<vmem>>, vector<1x64x128xf32>
    %34 = vector.shape_cast %33 : vector<1x64x128xf32> to vector<64x128xf32>
    %35 = vector.shape_cast %32 : vector<64x128xf32> to vector<1x64x128xf32>
    tpu.vector_store %arg8[%c0_19, %c0_20, %c0_21], %35 {strides = array<i32>} : memref<1x64x128xf32, #tpu.memory_space<vmem>>, vector<1x64x128xf32>,
    %36 = vector.extract_strided_slice %23 {offsets = [0, 128], sizes = [64, 128], strides = [1, 1]} : vector<64x256xf32> to vector<64x128xf32>
    %37 = vector.extract_strided_slice %36 {offsets = [0, 0], sizes = [64, 8], strides = [1, 1]} : vector<64x128xf32> to vector<64x8xf32>
    %c0_22 = arith.constant 0 : index
    %c0_23 = arith.constant 0 : index
    %c0_24 = arith.constant 0 : index
    %38 = vector.load %arg9[%c0_22, %c0_23, %c0_24] : memref<1x64x8xf32, #tpu.memory_space<vmem>>, vector<1x64x8xf32>
    %39 = vector.shape_cast %38 : vector<1x64x8xf32> to vector<64x8xf32>
    %40 = vector.shape_cast %37 : vector<64x8xf32> to vector<1x64x8xf32>
    tpu.vector_store %arg9[%c0_22, %c0_23, %c0_24], %40 {strides = array<i32>} : memref<1x64x8xf32, #tpu.memory_space<vmem>>, vector<1x64x8xf32>,
    return
  }
  func.func @transform_0(%arg0: i32, %arg1: i32) -> (i32, i32, i32) {
    %c0_i32 = arith.constant 0 : i32
    %c0_i32_0 = arith.constant 0 : i32
    return %arg0, %arg1, %c0_i32 : i32, i32, i32
  }
  func.func @transform_1(%arg0: i32, %arg1: i32) -> (i32, i32, i32) {
    %c0_i32 = arith.constant 0 : i32
    %c0_i32_0 = arith.constant 0 : i32
    %c0_i32_1 = arith.constant 0 : i32
    return %arg0, %c0_i32, %c0_i32_0 : i32, i32, i32
  }
  func.func @transform_2(%arg0: i32, %arg1: i32) -> (i32, i32, i32) {
    %c0_i32 = arith.constant 0 : i32
    %c0_i32_0 = arith.constant 0 : i32
    return %arg0, %arg1, %c0_i32 : i32, i32, i32
  }
  func.func @transform_3(%arg0: i32, %arg1: i32) -> (i32, i32) {
    %c0_i32 = arith.constant 0 : i32
    %c0_i32_0 = arith.constant 0 : i32
    %c0_i32_1 = arith.constant 0 : i32
    return %c0_i32, %c0_i32_0 : i32, i32
  }
  func.func @transform_4(%arg0: i32, %arg1: i32) -> (i32, i32) {
    %c0_i32 = arith.constant 0 : i32
    %c0_i32_0 = arith.constant 0 : i32
    %c0_i32_1 = arith.constant 0 : i32
    return %c0_i32, %c0_i32_0 : i32, i32
  }
  func.func @transform_5(%arg0: i32, %arg1: i32) -> (i32, i32) {
    %c0_i32 = arith.constant 0 : i32
    %c0_i32_0 = arith.constant 0 : i32
    %c0_i32_1 = arith.constant 0 : i32
    return %c0_i32, %c0_i32_0 : i32, i32
  }
  func.func @transform_6(%arg0: i32, %arg1: i32) -> (i32, i32, i32) {
    %c0_i32 = arith.constant 0 : i32
    %c0_i32_0 = arith.constant 0 : i32
    return %arg0, %arg1, %c0_i32 : i32, i32, i32
  }
  func.func @transform_7(%arg0: i32, %arg1: i32) -> (i32, i32, i32) {
    %c0_i32 = arith.constant 0 : i32
    %c0_i32_0 = arith.constant 0 : i32
    return %arg0, %arg1, %c0_i32 : i32, i32, i32
  }
}

</mosaic_0001>

<llo_original>
// kernel: block_v2_forward.14
$region0: #{block_v2_forward.14}
  #allocation0 [shape = 'u32[]', space=smem, size = 0x4, offset = 0x4, fixed_abs, tag = 'smem constant byte address 0x4 - core index']
  #allocation1 [shape = 'u32[72,128]{1,0:T(1,128)}', space=vmem, size = 0x9000, scoped, tag = 'internal scratch']
  %s0 = inlined_call_operand.vmem [shape: s32[2,64,1], index: 0, kind: input, shape index: {}]
  %s1 = inlined_call_operand.vmem [shape: f32[2,64,128], index: 1, kind: input, shape index: {}]
  %s2 = inlined_call_operand.vmem [shape: bf16[256,128], index: 2, kind: input, shape index: {}]
  %s3 = inlined_call_operand.vmem [shape: f32[1,128], index: 3, kind: input, shape index: {}]
  %s4 = inlined_call_operand.vmem [shape: bf16[2,64,128], index: 4, kind: output, shape index: {0}]
  %s5 = inlined_call_operand.vmem [shape: f32[2,1,2,128], index: 5, kind: output, shape index: {1}]
  %6 = xla_tuple %s4, %s5
  %s7 = sld [smem:[#allocation0]]
  $region57: #{block_v2_forward.14} parent=0
    _
  %s9 = ssub.s32 1, %s7
  %s10 = scalar_select 0, %s9, %s7
  loop: start=0, step=1, limit=4
  $region2: #{block_v2_forward.14} parent=0 // loop_pre_header
    _
  $region3: #{block_v2_forward.14} parent=0 // loop_header
    %s12 = sphi 0, %s16
    %p13 = scmp.ge.s32.totalorder %s12, 4
    %s19 = sphi 0, %s31
    %s20 = sphi 0, %s27
    %s21 = sphi 0, %s19
    %s22 = sphi 0, %s20
    %s23 = sphi 0, %s21
    %s24 = sphi 0, %s22
    %s36 = sphi 0, %s38
    %s39 = sphi 0, %s36
    %s40 = sphi 0, %s39
    %s56 = sphi 0, %s40
    %s64 = sphi 0, %s66
    %s67 = sphi 0, %s64
    %s68 = sphi 0, %s67
    %s84 = sphi 0, %s68
    %s88 = sphi 0, %s88
    %s90 = sphi 0, %s88
    %s91 = sphi 0, %s90
    %s105 = sphi 0, %s91
    %s109 = sphi 0, %s109
    %s111 = sphi 0, %s109
    %s112 = sphi 0, %s111
    %s126 = sphi 0, %s112
    %s134 = sphi 0, %s136
    %s137 = sphi 0, %s134
    %s138 = sphi 0, %s137
    %s154 = sphi 0, %s138
    %s162 = sphi 0, %s164
    %s165 = sphi 0, %s162
    %s166 = sphi 0, %s165
    %s182 = sphi 0, %s166
  $region4: #{block_v2_forward.14} parent=0 // loop_header_branch
    %15 = sbr.rel (%p13) target = $region8
  $region5: #{block_v2_forward.14} parent=0 // loop_body
    %s17 = ssub.s32 %s12, 1
    %s18 = ssub.s32 %s12, 2
    %s25 = sadd.s32 1, %s20
    %p26 = scmp.ge.s32.totalorder %s25, 1
    %s27 = scalar_select %p26, 0, %s25
    %s28 = sadd.s32 1, %s19
    %s29 = scalar_select %p26, %s28, %s19
    %p30 = scmp.ge.s32.totalorder %s29, 2
    %s31 = scalar_select %p30, 0, %s29
    %s32 = ssub.s32 %s19, %s31
    %s33 = ssub.s32 %s20, %s27
    %s34 = sor.u32 %s32, %s33
    %p35 = scmp.eq.s32.totalorder %s34, 0
    %s37 = sadd.s32 %s36, 1
    %s38 = scalar_select %p35, %s36, %s37
    %p41 = pneg %p35
    %p42 = scmp.eq.s32.totalorder %s12, 1
    %p43 = por %p41, %p42
    %p44 = scmp.ne.s32.totalorder %s36, %s39
    %p45 = scmp.eq.s32.totalorder %s12, 0
    %p46 = por %p44, %p45
    %p47 = scmp.ne.s32.totalorder %s36, %s39
    %p48 = scmp.eq.s32.totalorder %s17, 1
    %p49 = por %p47, %p48
    %p50 = scmp.ne.s32.totalorder %s39, %s40
    %p51 = scmp.eq.s32.totalorder %s17, 0
    %p52 = por %p50, %p51
    %p53 = scmp.ne.s32.totalorder %s39, %s40
    %p54 = scmp.eq.s32.totalorder %s18, 1
    %p55 = por %p53, %p54
    %p57 = scmp.ne.s32.totalorder %s40, %s56
    %p58 = scmp.eq.s32.totalorder %s18, 0
    %p59 = por %p57, %p58
    %s60 = ssub.s32 %s19, %s31
    %s61 = ssub.s32 %s20, %s27
    %s62 = sor.u32 %s60, %s61
    %p63 = scmp.eq.s32.totalorder %s62, 0
    %s65 = sadd.s32 %s64, 1
    %s66 = scalar_select %p63, %s64, %s65
    %p69 = pneg %p63
    %p70 = scmp.eq.s32.totalorder %s12, 1
    %p71 = por %p69, %p70
    %p72 = scmp.ne.s32.totalorder %s64, %s67
    %p73 = scmp.eq.s32.totalorder %s12, 0
    %p74 = por %p72, %p73
    %p75 = scmp.ne.s32.totalorder %s64, %s67
    %p76 = scmp.eq.s32.totalorder %s17, 1
    %p77 = por %p75, %p76
    %p78 = scmp.ne.s32.totalorder %s67, %s68
    %p79 = scmp.eq.s32.totalorder %s17, 0
    %p80 = por %p78, %p79
    %p81 = scmp.ne.s32.totalorder %s67, %s68
    %p82 = scmp.eq.s32.totalorder %s18, 1
    %p83 = por %p81, %p82
    %p85 = scmp.ne.s32.totalorder %s68, %s84
    %p86 = scmp.eq.s32.totalorder %s18, 0
    %p87 = por %p85, %p86
    %s89 = sadd.s32 %s88, 1
    %p92 = scmp.eq.s32.totalorder %s12, 1
    %p93 = scmp.ne.s32.totalorder %s88, %s90
    %p94 = scmp.eq.s32.totalorder %s12, 0
    %p95 = por %p93, %p94
    %p96 = scmp.ne.s32.totalorder %s88, %s90
    %p97 = scmp.eq.s32.totalorder %s17, 1
    %p98 = por %p96, %p97
    %p99 = scmp.ne.s32.totalorder %s90, %s91
    %p100 = scmp.eq.s32.totalorder %s17, 0
    %p101 = por %p99, %p100
    %p102 = scmp.ne.s32.totalorder %s90, %s91
    %p103 = scmp.eq.s32.totalorder %s18, 1
    %p104 = por %p102, %p103
    %p106 = scmp.ne.s32.totalorder %s91, %s105
    %p107 = scmp.eq.s32.totalorder %s18, 0
    %p108 = por %p106, %p107
    %s110 = sadd.s32 %s109, 1
    %p113 = scmp.eq.s32.totalorder %s12, 1
    %p114 = scmp.ne.s32.totalorder %s109, %s111
    %p115 = scmp.eq.s32.totalorder %s12, 0
    %p116 = por %p114, %p115
    %p117 = scmp.ne.s32.totalorder %s109, %s111
    %p118 = scmp.eq.s32.totalorder %s17, 1
    %p119 = por %p117, %p118
    %p120 = scmp.ne.s32.totalorder %s111, %s112
    %p121 = scmp.eq.s32.totalorder %s17, 0
    %p122 = por %p120, %p121
    %p123 = scmp.ne.s32.totalorder %s111, %s112
    %p124 = scmp.eq.s32.totalorder %s18, 1
    %p125 = por %p123, %p124
    %p127 = scmp.ne.s32.totalorder %s112, %s126
    %p128 = scmp.eq.s32.totalorder %s18, 0
    %p129 = por %p127, %p128
    %s130 = ssub.s32 %s19, %s31
    %s131 = ssub.s32 %s20, %s27
    %s132 = sor.u32 %s130, %s131
    %p133 = scmp.eq.s32.totalorder %s132, 0
    %s135 = sadd.s32 %s134, 1
    %s136 = scalar_select %p133, %s134, %s135
    %p139 = pneg %p133
    %p140 = scmp.eq.s32.totalorder %s12, 1
    %p141 = por %p139, %p140
    %p142 = scmp.ne.s32.totalorder %s134, %s137
    %p143 = scmp.eq.s32.totalorder %s12, 0
    %p144 = por %p142, %p143
    %p145 = scmp.ne.s32.totalorder %s134, %s137
    %p146 = scmp.eq.s32.totalorder %s17, 1
    %p147 = por %p145, %p146
    %p148 = scmp.ne.s32.totalorder %s137, %s138
    %p149 = scmp.eq.s32.totalorder %s17, 0
    %p150 = por %p148, %p149
    %p151 = scmp.ne.s32.totalorder %s137, %s138
    %p152 = scmp.eq.s32.totalorder %s18, 1
    %p153 = por %p151, %p152
    %p155 = scmp.ne.s32.totalorder %s138, %s154
    %p156 = scmp.eq.s32.totalorder %s18, 0
    %p157 = por %p155, %p156
    %s158 = ssub.s32 %s19, %s31
    %s159 = ssub.s32 %s20, %s27
    %s160 = sor.u32 %s158, %s159
    %p161 = scmp.eq.s32.totalorder %s160, 0
    %s163 = sadd.s32 %s162, 1
    %s164 = scalar_select %p161, %s162, %s163
    %p167 = pneg %p161
    %p168 = scmp.eq.s32.totalorder %s12, 1
    %p169 = por %p167, %p168
    %p170 = scmp.ne.s32.totalorder %s162, %s165
    %p171 = scmp.eq.s32.totalorder %s12, 0
    %p172 = por %p170, %p171
    %p173 = scmp.ne.s32.totalorder %s162, %s165
    %p174 = scmp.eq.s32.totalorder %s17, 1
    %p175 = por %p173, %p174
    %p176 = scmp.ne.s32.totalorder %s165, %s166
    %p177 = scmp.eq.s32.totalorder %s17, 0
    %p178 = por %p176, %p177
    %p179 = scmp.ne.s32.totalorder %s165, %s166
    %p180 = scmp.eq.s32.totalorder %s18, 1
    %p181 = por %p179, %p180
    %p183 = scmp.ne.s32.totalorder %s166, %s182
    %p184 = scmp.eq.s32.totalorder %s18, 0
    %p185 = por %p183, %p184
    %p186 = scmp.le.s32.totalorder 1, %s12
    %p187 = scmp.lt.s32.totalorder %s12, 3
    %p188 = pnand %p186, %p187
    %p189 = pneg %p188
    // Predicated region
    $region9: #{block_v2_forward.14} parent=5 // pred_check
      _
    $region10: #{block_v2_forward.14} parent=5 // pred_check_branch
      %191 = sbr.rel (%p188) target = $region12
    $region11: #{block_v2_forward.14} parent=5 // pred_region
      %s192 = ssub.s32 %s12, 1
      // Predicated region
      $region13: #{block_v2_forward.14} parent=11 // pred_check
        %p193 = pneg %p101
      $region14: #{block_v2_forward.14} parent=11 // pred_check_branch
        %195 = sbr.rel (%p193) target = $region16
      $region15: #{block_v2_forward.14} parent=11 // pred_region
        _
      $region16: #{block_v2_forward.14} parent=11 // pred_fallthru
        _
      // Predicated region
      $region17: #{block_v2_forward.14} parent=11 // pred_check
        %p196 = pneg %p122
      $region18: #{block_v2_forward.14} parent=11 // pred_check_branch
        %198 = sbr.rel (%p196) target = $region20
      $region19: #{block_v2_forward.14} parent=11 // pred_region
        _
      $region20: #{block_v2_forward.14} parent=11 // pred_fallthru
        _
    $region12: #{block_v2_forward.14} parent=5 // pred_fallthru
      _
    %p199 = scmp.lt.s32.totalorder %s12, 2
    // Predicated region
    $region21: #{block_v2_forward.14} parent=5 // pred_check
      %p200 = pneg %p199
    $region22: #{block_v2_forward.14} parent=5 // pred_check_branch
      %202 = sbr.rel (%p200) target = $region24
    $region23: #{block_v2_forward.14} parent=5 // pred_region
      // Predicated region
      $region25: #{block_v2_forward.14} parent=23 // pred_check
        %p203 = pneg %p46
      $region26: #{block_v2_forward.14} parent=23 // pred_check_branch
        %205 = sbr.rel (%p203) target = $region28
      $region27: #{block_v2_forward.14} parent=23 // pred_region
        %s206 = smul.u32 8, %s20
        %p207 = scmp.lt.s32.totalorder %s19, 1
        %s208 = scalar_select %p207, %s19, 1
        %p209 = scmp.lt.s32.totalorder %s206, 7
        %s210 = scalar_select %p209, %s206, 7
        %s211 = smul.addr %s208, 8
        %s212 = sadd.s32 %s210, %s211
        %s213 = smul.addr %s212, 8
        %s214 = scalar_lea.vmem %s0, %s213
        %s215 = smul.u32 8, %s20
      $region28: #{block_v2_forward.14} parent=23 // pred_fallthru
        _
      // Predicated region
      $region29: #{block_v2_forward.14} parent=23 // pred_check
        %p216 = pneg %p74
      $region30: #{block_v2_forward.14} parent=23 // pred_check_branch
        %218 = sbr.rel (%p216) target = $region32
      $region31: #{block_v2_forward.14} parent=23 // pred_region
        %s219 = smul.u32 8, %s20
        %p220 = scmp.lt.s32.totalorder %s19, 1
        %s221 = scalar_select %p220, %s19, 1
        %p222 = scmp.lt.s32.totalorder %s219, 7
        %s223 = scalar_select %p222, %s219, 7
        %s224 = smul.addr %s221, 8
        %s225 = sadd.s32 %s223, %s224
        %s226 = smul.addr %s225, 8
        %s227 = scalar_lea.vmem %s1, %s226
        %s228 = smul.u32 8, %s20
      $region32: #{block_v2_forward.14} parent=23 // pred_fallthru
        _
    $region24: #{block_v2_forward.14} parent=5 // pred_fallthru
      _
    %p229 = scmp.le.s32.totalorder 1, %s12
    %p230 = scmp.lt.s32.totalorder %s12, 3
    %p231 = pnand %p229, %p230
    %p232 = pneg %p231
    // Predicated region
    $region33: #{block_v2_forward.14} parent=5 // pred_check
      _
    $region34: #{block_v2_forward.14} parent=5 // pred_check_branch
      %234 = sbr.rel (%p231) target = $region36
    $region35: #{block_v2_forward.14} parent=5 // pred_region
      %s235 = ssub.s32 %s12, 1
      %s236 = smul.u32 8, %s22
      %p237 = scmp.lt.s32.totalorder %s21, 1
      %s238 = scalar_select %p237, %s21, 1
      %p239 = scmp.lt.s32.totalorder %s236, 7
      %s240 = scalar_select %p239, %s236, 7
      %s241 = smul.addr %s238, 8
      %s242 = sadd.s32 %s240, %s241
      %s243 = smul.addr %s242, 8
      %s244 = scalar_lea.vmem %s0, %s243
      %p245 = pneg %p52
      %p246 = pneg %p49
      %s247 = smul.u32 8, %s22
      %p248 = scmp.lt.s32.totalorder %s21, 1
      %s249 = scalar_select %p248, %s21, 1
      %p250 = scmp.lt.s32.totalorder %s247, 7
      %s251 = scalar_select %p250, %s247, 7
      %s252 = smul.addr %s249, 8
      %s253 = sadd.s32 %s251, %s252
      %s254 = smul.addr %s253, 8
      %s255 = scalar_lea.vmem %s1, %s254
      %p256 = pneg %p80
      %p257 = pneg %p77
      %p258 = pneg %p101
      %p259 = pneg %p98
      %p260 = pneg %p122
      %p261 = pneg %p119
      %p262 = pneg %p150
      %p263 = pneg %p147
      %s264 = smul.u32 8, %s22
      %p265 = scmp.lt.s32.totalorder %s21, 1
      %s266 = scalar_select %p265, %s21, 1
      %p267 = scmp.lt.s32.totalorder %s264, 7
      %s268 = scalar_select %p267, %s264, 7
      %s269 = smul.addr %s266, 8
      %s270 = sadd.s32 %s268, %s269
      %s271 = smul.addr %s270, 4
      %s272 = scalar_lea.vmem %s4, %s271
      %p273 = pneg %p178
      %p274 = pneg %p175
      %p275 = scmp.lt.s32.totalorder %s21, 1
      %s276 = scalar_select %p275, %s21, 1
      %p277 = scmp.lt.s32.totalorder %s22, 0
      %s278 = scalar_select %p277, %s22, 0
      %s279 = sadd.s32 %s278, %s276
      %s280 = smul.addr %s279, 2
      %s281 = scalar_lea.vmem %s5, %s280
      %s282 = smul.u32 8, %s22
      %p283 = scmp.lt.s32.totalorder %s21, 1
      %s284 = scalar_select %p283, %s21, 1
      %p285 = scmp.lt.s32.totalorder %s282, 7
      %s286 = scalar_select %p285, %s282, 7
      %s287 = smul.addr %s284, 8
      %s288 = sadd.s32 %s286, %s287
      %s289 = smul.addr %s288, 8
      %s290 = scalar_lea.vmem %s0, %s289
      %s291 = smul.u32 8, %s22
      %s292 = smul.u32 8, %s22
      %p293 = scmp.lt.s32.totalorder %s21, 1
      %s294 = scalar_select %p293, %s21, 1
      %p295 = scmp.lt.s32.totalorder %s292, 7
      %s296 = scalar_select %p295, %s292, 7
      %s297 = smul.addr %s294, 8
      %s298 = sadd.s32 %s296, %s297
      %s299 = smul.addr %s298, 8
      %s300 = scalar_lea.vmem %s1, %s299
      %s301 = smul.u32 8, %s22
      %s302 = smul.u32 8, %s22
      %p303 = scmp.lt.s32.totalorder %s21, 1
      %s304 = scalar_select %p303, %s21, 1
      %p305 = scmp.lt.s32.totalorder %s302, 7
      %s306 = scalar_select %p305, %s302, 7
      %s307 = smul.addr %s304, 8
      %s308 = sadd.s32 %s306, %s307
      %s309 = smul.addr %s308, 4
      %s310 = scalar_lea.vmem %s4, %s309
      %s311 = smul.u32 8, %s22
      %p312 = scmp.lt.s32.totalorder %s21, 1
      %s313 = scalar_select %p312, %s21, 1
      %p314 = scmp.lt.s32.totalorder %s22, 0
      %s315 = scalar_select %p314, %s22, 0
      %s316 = sadd.s32 %s315, %s313
      %s317 = smul.addr %s316, 2
      %s318 = scalar_lea.vmem %s5, %s317
      %v319 = vld [vmem:[%s300] sm:$0xff]
      %v320 = vld [vmem:[%s300 + $0x8] sm:$0xff]
      %v321 = vld [vmem:[%s300 + $0x10] sm:$0xff]
      %v322 = vld [vmem:[%s300 + $0x18] sm:$0xff]
      %v323 = vld [vmem:[%s300 + $0x20] sm:$0xff]
      %v324 = vld [vmem:[%s300 + $0x28] sm:$0xff]
      %v325 = vld [vmem:[%s300 + $0x30] sm:$0xff]
      %v326 = vld [vmem:[%s300 + $0x38] sm:$0xff]
      %v327 = vpack.c.bf16 %v319, %v319
      %v328 = vpack.c.bf16 %v320, %v320
      %v329 = vpack.c.bf16 %v321, %v321
      %v330 = vpack.c.bf16 %v322, %v322
      %v331 = vpack.c.bf16 %v323, %v323
      %v332 = vpack.c.bf16 %v324, %v324
      %v333 = vpack.c.bf16 %v325, %v325
      %v334 = vpack.c.bf16 %v326, %v326
      %v335 = vld [vmem:[%s290] sm:$0xff]
      %v336 = vld [vmem:[%s290 + $0x8] sm:$0xff]
      %v337 = vld [vmem:[%s290 + $0x10] sm:$0xff]
      %v338 = vld [vmem:[%s290 + $0x18] sm:$0xff]
      %v339 = vld [vmem:[%s290 + $0x20] sm:$0xff]
      %v340 = vld [vmem:[%s290 + $0x28] sm:$0xff]
      %v341 = vld [vmem:[%s290 + $0x30] sm:$0xff]
      %v342 = vld [vmem:[%s290 + $0x38] sm:$0xff]
      %v343 = vlaneseq
      %v344 = vand.u32 %v343, 127
      %345 = vset.pattern.permute.xlu0 0
      %346 = vperm.xlu0 %345, %v335
      %v347 = vpop.permute.xlu0 %346
      %348 = vset.pattern.permute.xlu0 0
      %349 = vperm.xlu0 %348, %v336
      %v350 = vpop.permute.xlu0 %349
      %351 = vset.pattern.permute.xlu0 0
      %352 = vperm.xlu0 %351, %v337
      %v353 = vpop.permute.xlu0 %352
      %354 = vset.pattern.permute.xlu0 0
      %355 = vperm.xlu0 %354, %v338
      %v356 = vpop.permute.xlu0 %355
      %357 = vset.pattern.permute.xlu0 0
      %358 = vperm.xlu0 %357, %v339
      %v359 = vpop.permute.xlu0 %358
      %360 = vset.pattern.permute.xlu0 0
      %361 = vperm.xlu0 %360, %v340
      %v362 = vpop.permute.xlu0 %361
      %363 = vset.pattern.permute.xlu0 0
      %364 = vperm.xlu0 %363, %v341
      %v365 = vpop.permute.xlu0 %364
      %366 = vset.pattern.permute.xlu0 0
      %367 = vperm.xlu0 %366, %v342
      %v368 = vpop.permute.xlu0 %367
      %vm369 = vcmp.eq.s32.totalorder %v347, %v344
      %vm370 = vcmp.eq.s32.totalorder %v350, %v344
      %vm371 = vcmp.eq.s32.totalorder %v353, %v344
      %vm372 = vcmp.eq.s32.totalorder %v356, %v344
      %vm373 = vcmp.eq.s32.totalorder %v359, %v344
      %vm374 = vcmp.eq.s32.totalorder %v362, %v344
      %vm375 = vcmp.eq.s32.totalorder %v365, %v344
      %vm376 = vcmp.eq.s32.totalorder %v368, %v344
      %v377 = vsel %vm369, 1, 0
      %v378 = vsel %vm370, 1, 0
      %v379 = vsel %vm371, 1, 0
      %v380 = vsel %vm372, 1, 0
      %v381 = vsel %vm373, 1, 0
      %v382 = vsel %vm374, 1, 0
      %v383 = vsel %vm375, 1, 0
      %v384 = vsel %vm376, 1, 0
      %v385 = vcvt.s32.f32 %v377
      %v386 = vcvt.s32.f32 %v378
      %v387 = vcvt.s32.f32 %v379
      %v388 = vcvt.s32.f32 %v380
      %v389 = vcvt.s32.f32 %v381
      %v390 = vcvt.s32.f32 %v382
      %v391 = vcvt.s32.f32 %v383
      %v392 = vcvt.s32.f32 %v384
      %v393 = vpack.c.bf16 %v385, %v385
      %v394 = vpack.c.bf16 %v386, %v386
      %v395 = vpack.c.bf16 %v387, %v387
      %v396 = vpack.c.bf16 %v388, %v388
      %v397 = vpack.c.bf16 %v389, %v389
      %v398 = vpack.c.bf16 %v390, %v390
      %v399 = vpack.c.bf16 %v391, %v391
      %v400 = vpack.c.bf16 %v392, %v392
      %v409 = vunpack.c.l.b16 %v327
      %v410 = vunpack.c.l.b16 %v328
      %v411 = vunpack.c.l.b16 %v329
      %v412 = vunpack.c.l.b16 %v330
      %v413 = vunpack.c.l.b16 %v331
      %v414 = vunpack.c.l.b16 %v332
      %v415 = vunpack.c.l.b16 %v333
      %v416 = vunpack.c.l.b16 %v334
      %v417 = vpack.c.b16 %v410, %v409
      %v418 = vpack.c.b16 %v412, %v411
      %v419 = vpack.c.b16 %v414, %v413
      %v420 = vpack.c.b16 %v416, %v415
      %v433 = vunpack.c.l.b16 %v393
      %v434 = vunpack.c.l.b16 %v394
      %v435 = vunpack.c.l.b16 %v395
      %v436 = vunpack.c.l.b16 %v396
      %v437 = vunpack.c.l.b16 %v397
      %v438 = vunpack.c.l.b16 %v398
      %v439 = vunpack.c.l.b16 %v399
      %v440 = vunpack.c.l.b16 %v400
      %v441 = vpack.c.b16 %v434, %v433
      %v442 = vpack.c.b16 %v436, %v435
      %v443 = vpack.c.b16 %v438, %v437
      %v444 = vpack.c.b16 %v440, %v439
      %v449 = vld [vmem:[%s2] sm:$0xf]
      %v450 = vld [vmem:[%s2 + $0x4] sm:$0xf]
      %v451 = vld [vmem:[%s2 + $0x8] sm:$0xf]
      %v452 = vld [vmem:[%s2 + $0xc] sm:$0xf]
      %v453 = vld [vmem:[%s2 + $0x10] sm:$0xf]
      %v454 = vld [vmem:[%s2 + $0x14] sm:$0xf]
      %v455 = vld [vmem:[%s2 + $0x18] sm:$0xf]
      %v456 = vld [vmem:[%s2 + $0x1c] sm:$0xf]
      %v457 = vld [vmem:[%s2 + $0x20] sm:$0xf]
      %v458 = vld [vmem:[%s2 + $0x24] sm:$0xf]
      %v459 = vld [vmem:[%s2 + $0x28] sm:$0xf]
      %v460 = vld [vmem:[%s2 + $0x2c] sm:$0xf]
      %v461 = vld [vmem:[%s2 + $0x30] sm:$0xf]
      %v462 = vld [vmem:[%s2 + $0x34] sm:$0xf]
      %v463 = vld [vmem:[%s2 + $0x38] sm:$0xf]
      %v464 = vld [vmem:[%s2 + $0x3c] sm:$0xf]
      %v465 = vld [vmem:[%s2 + $0x40] sm:$0xf]
      %v466 = vld [vmem:[%s2 + $0x44] sm:$0xf]
      %v467 = vld [vmem:[%s2 + $0x48] sm:$0xf]
      %v468 = vld [vmem:[%s2 + $0x4c] sm:$0xf]
      %v469 = vld [vmem:[%s2 + $0x50] sm:$0xf]
      %v470 = vld [vmem:[%s2 + $0x54] sm:$0xf]
      %v471 = vld [vmem:[%s2 + $0x58] sm:$0xf]
      %v472 = vld [vmem:[%s2 + $0x5c] sm:$0xf]
      %v473 = vld [vmem:[%s2 + $0x60] sm:$0xf]
      %v474 = vld [vmem:[%s2 + $0x64] sm:$0xf]
      %v475 = vld [vmem:[%s2 + $0x68] sm:$0xf]
      %v476 = vld [vmem:[%s2 + $0x6c] sm:$0xf]
      %v477 = vld [vmem:[%s2 + $0x70] sm:$0xf]
      %v478 = vld [vmem:[%s2 + $0x74] sm:$0xf]
      %v479 = vld [vmem:[%s2 + $0x78] sm:$0xf]
      %v480 = vld [vmem:[%s2 + $0x7c] sm:$0xf]
      %v481 = vld [vmem:[%s3] sm:$0x1]
      %v483 = vperm.slane %v481, 0
      %v517 = vunpack.c.l.b16 %v449
      %v518 = vunpack.c.l.b16 %v450
      %v519 = vunpack.c.l.b16 %v451
      %v520 = vunpack.c.l.b16 %v452
      %v521 = vunpack.c.l.b16 %v453
      %v522 = vunpack.c.l.b16 %v454
      %v523 = vunpack.c.l.b16 %v455
      %v524 = vunpack.c.l.b16 %v456
      %v525 = vunpack.c.l.b16 %v457
      %v526 = vunpack.c.l.b16 %v458
      %v527 = vunpack.c.l.b16 %v459
      %v528 = vunpack.c.l.b16 %v460
      %v529 = vunpack.c.l.b16 %v461
      %v530 = vunpack.c.l.b16 %v462
      %v531 = vunpack.c.l.b16 %v463
      %v532 = vunpack.c.l.b16 %v464
      %v533 = vunpack.c.l.b16 %v465
      %v534 = vunpack.c.l.b16 %v466
      %v535 = vunpack.c.l.b16 %v467
      %v536 = vunpack.c.l.b16 %v468
      %v537 = vunpack.c.l.b16 %v469
      %v538 = vunpack.c.l.b16 %v470
      %v539 = vunpack.c.l.b16 %v471
      %v540 = vunpack.c.l.b16 %v472
      %v541 = vunpack.c.l.b16 %v473
      %v542 = vunpack.c.l.b16 %v474
      %v543 = vunpack.c.l.b16 %v475
      %v544 = vunpack.c.l.b16 %v476
      %v545 = vunpack.c.l.b16 %v477
      %v546 = vunpack.c.l.b16 %v478
      %v547 = vunpack.c.l.b16 %v479
      %v548 = vunpack.c.l.b16 %v480
      %v549 = vpack.c.b16 %v518, %v517
      %v550 = vpack.c.b16 %v520, %v519
      %v551 = vpack.c.b16 %v522, %v521
      %v552 = vpack.c.b16 %v524, %v523
      %v553 = vpack.c.b16 %v526, %v525
      %v554 = vpack.c.b16 %v528, %v527
      %v555 = vpack.c.b16 %v530, %v529
      %v556 = vpack.c.b16 %v532, %v531
      %v557 = vpack.c.b16 %v534, %v533
      %v558 = vpack.c.b16 %v536, %v535
      %v559 = vpack.c.b16 %v538, %v537
      %v560 = vpack.c.b16 %v540, %v539
      %v561 = vpack.c.b16 %v542, %v541
      %v562 = vpack.c.b16 %v544, %v543
      %v563 = vpack.c.b16 %v546, %v545
      %v564 = vpack.c.b16 %v548, %v547
      %581 = vmatpush.bf16.msra.mxu0 %v556
      %582 = vmatpush.bf16.msra.mxu0 %v555
      %583 = vmatpush.bf16.msra.mxu0 %v554
      %584 = vmatpush.bf16.msra.mxu0 %v553
      %585 = vmatpush.bf16.msra.mxu0 %v552
      %586 = vmatpush.bf16.msra.mxu0 %v551
      %587 = vmatpush.bf16.msra.mxu0 %v550
      %588 = vmatpush.bf16.msra.mxu0 %v549
      %589 = vmatmul.bf16.gmra.mxu0 %v417
      %v590 = vpop.f32.mrf.mxu0
      %v591 = vadd.f32 %v483, %v590
      %v592 = vpop.f32.mrf.mxu0
      %v593 = vadd.f32 %v483, %v592
      %594 = vmatmul.bf16.gmra.mxu0 %v418
      %v595 = vpop.f32.mrf.mxu0
      %v596 = vadd.f32 %v483, %v595
      %v597 = vpop.f32.mrf.mxu0
      %v598 = vadd.f32 %v483, %v597
      %599 = vmatmul.bf16.gmra.mxu0 %v419
      %v600 = vpop.f32.mrf.mxu0
      %v601 = vadd.f32 %v483, %v600
      %v602 = vpop.f32.mrf.mxu0
      %v603 = vadd.f32 %v483, %v602
      %604 = vmatmul.bf16.gmra.mxu0 %v420
      %v605 = vpop.f32.mrf.mxu0
      %v606 = vadd.f32 %v483, %v605
      %v607 = vpop.f32.mrf.mxu0
      %v608 = vadd.f32 %v483, %v607
      %609 = vdwg.mxu0
      %610 = vmatpush.bf16.msra.mxu0 %v564
      %611 = vmatpush.bf16.msra.mxu0 %v563
      %612 = vmatpush.bf16.msra.mxu0 %v562
      %613 = vmatpush.bf16.msra.mxu0 %v561
      %614 = vmatpush.bf16.msra.mxu0 %v560
      %615 = vmatpush.bf16.msra.mxu0 %v559
      %616 = vmatpush.bf16.msra.mxu0 %v558
      %617 = vmatpush.bf16.msra.mxu0 %v557
      %618 = vmatmul.bf16.gmra.mxu0 %v441
      %v619 = vpop.f32.mrf.mxu0
      %v620 = vadd.f32 %v591, %v619
      %v621 = vpop.f32.mrf.mxu0
      %v622 = vadd.f32 %v593, %v621
      %623 = vmatmul.bf16.gmra.mxu0 %v442
      %v624 = vpop.f32.mrf.mxu0
      %v625 = vadd.f32 %v596, %v624
      %v626 = vpop.f32.mrf.mxu0
      %v627 = vadd.f32 %v598, %v626
      %628 = vmatmul.bf16.gmra.mxu0 %v443
      %v629 = vpop.f32.mrf.mxu0
      %v630 = vadd.f32 %v601, %v629
      %v631 = vpop.f32.mrf.mxu0
      %v632 = vadd.f32 %v603, %v631
      %633 = vmatmul.bf16.gmra.mxu0 %v444
      %v634 = vpop.f32.mrf.mxu0
      %v635 = vadd.f32 %v606, %v634
      %v636 = vpop.f32.mrf.mxu0
      %v637 = vadd.f32 %v608, %v636
      %638 = vdwg.mxu0
      %vm639 = vcmp.gt.f32.partialorder %v620, 0.0
      %vm640 = vcmp.gt.f32.partialorder %v622, 0.0
      %vm641 = vcmp.gt.f32.partialorder %v625, 0.0
      %vm642 = vcmp.gt.f32.partialorder %v627, 0.0
      %vm643 = vcmp.gt.f32.partialorder %v630, 0.0
      %vm644 = vcmp.gt.f32.partialorder %v632, 0.0
      %vm645 = vcmp.gt.f32.partialorder %v635, 0.0
      %vm646 = vcmp.gt.f32.partialorder %v637, 0.0
      %v647 = vmin.f32 %v620, 0.0
      %v648 = vmin.f32 %v622, 0.0
      %v649 = vmin.f32 %v625, 0.0
      %v650 = vmin.f32 %v627, 0.0
      %v651 = vmin.f32 %v630, 0.0
      %v652 = vmin.f32 %v632, 0.0
      %v653 = vmin.f32 %v635, 0.0
      %v654 = vmin.f32 %v637, 0.0
      %v655 = vmul.f32 %v647, 1.442695
      %v656 = vpow.pop %v655
      %v657 = vmul.f32 %v648, 1.442695
      %v658 = vpow.pop %v657
      %v659 = vmul.f32 %v649, 1.442695
      %v660 = vpow.pop %v659
      %v661 = vmul.f32 %v650, 1.442695
      %v662 = vpow.pop %v661
      %v663 = vmul.f32 %v651, 1.442695
      %v664 = vpow.pop %v663
      %v665 = vmul.f32 %v652, 1.442695
      %v666 = vpow.pop %v665
      %v667 = vmul.f32 %v653, 1.442695
      %v668 = vpow.pop %v667
      %v669 = vmul.f32 %v654, 1.442695
      %v670 = vpow.pop %v669
      %v671 = vsub.f32 %v656, 1.0
      %v672 = vsub.f32 %v658, 1.0
      %v673 = vsub.f32 %v660, 1.0
      %v674 = vsub.f32 %v662, 1.0
      %v675 = vsub.f32 %v664, 1.0
      %v676 = vsub.f32 %v666, 1.0
      %v677 = vsub.f32 %v668, 1.0
      %v678 = vsub.f32 %v670, 1.0
      %v679 = vsel %vm639, %v620, %v671
      %v680 = vsel %vm640, %v622, %v672
      %v681 = vsel %vm641, %v625, %v673
      %v682 = vsel %vm642, %v627, %v674
      %v683 = vsel %vm643, %v630, %v675
      %v684 = vsel %vm644, %v632, %v676
      %v685 = vsel %vm645, %v635, %v677
      %v686 = vsel %vm646, %v637, %v678
      %v687 = vpack.c.bf16 %v679, %v679
      %v688 = vpack.c.bf16 %v680, %v680
      %v689 = vpack.c.bf16 %v681, %v681
      %v690 = vpack.c.bf16 %v682, %v682
      %v691 = vpack.c.bf16 %v683, %v683
      %v692 = vpack.c.bf16 %v684, %v684
      %v693 = vpack.c.bf16 %v685, %v685
      %v694 = vpack.c.bf16 %v686, %v686
      %695 = vst [vmem:[%s310] sm:$0xf] %v687
      %696 = vst [vmem:[%s310 + $0x4] sm:$0xf] %v688
      %697 = vst [vmem:[%s310 + $0x8] sm:$0xf] %v689
      %698 = vst [vmem:[%s310 + $0xc] sm:$0xf] %v690
      %699 = vst [vmem:[%s310 + $0x10] sm:$0xf] %v691
      %700 = vst [vmem:[%s310 + $0x14] sm:$0xf] %v692
      %701 = vst [vmem:[%s310 + $0x18] sm:$0xf] %v693
      %702 = vst [vmem:[%s310 + $0x1c] sm:$0xf] %v694
      %v703 = vunpack.c.l.bf16 %v687
      %v704 = vunpack.c.l.bf16 %v688
      %v705 = vunpack.c.l.bf16 %v689
      %v706 = vunpack.c.l.bf16 %v690
      %v707 = vunpack.c.l.bf16 %v691
      %v708 = vunpack.c.l.bf16 %v692
      %v709 = vunpack.c.l.bf16 %v693
      %v710 = vunpack.c.l.bf16 %v694
      %v711 = vadd.f32 %v703, %v704
      %v712 = vadd.f32 %v711, %v705
      %v713 = vadd.f32 %v712, %v706
      %v714 = vadd.f32 %v713, %v707
      %v715 = vadd.f32 %v714, %v708
      %v716 = vadd.f32 %v715, %v709
      %v717 = vadd.f32 %v716, %v710
      %v718 = vrot.slane %v717, 4
      %v719 = vadd.f32 %v717, %v718
      %v720 = vrot.slane %v719, 2
      %v721 = vadd.f32 %v719, %v720
      %v722 = vrot.slane %v721, 1
      %v723 = vadd.f32 %v721, %v722
      %v724 = vrcp.pop 64.0
      %v725 = vmul.f32 64.0, %v724
      %v726 = vsub.f32 1.0, %v725
      %v727 = vmul.f32 %v724, %v726
      %v728 = vadd.f32 %v724, %v727
      %vm729 = vweird.f32 %v724
      %v730 = vsel %vm729, %v724, %v728
      %v731 = vmul.f32 %v723, %v730
      %v732 = vsub.f32 %v703, %v731
      %v733 = vsub.f32 %v704, %v731
      %v734 = vsub.f32 %v705, %v731
      %v735 = vsub.f32 %v706, %v731
      %v736 = vsub.f32 %v707, %v731
      %v737 = vsub.f32 %v708, %v731
      %v738 = vsub.f32 %v709, %v731
      %v739 = vsub.f32 %v710, %v731
      %740 = vst [vmem:[%s318] sm:$0x1] %v731
      %v741 = vmul.f32 %v732, %v732
      %v742 = vmul.f32 %v733, %v733
      %v743 = vmul.f32 %v734, %v734
      %v744 = vmul.f32 %v735, %v735
      %v745 = vmul.f32 %v736, %v736
      %v746 = vmul.f32 %v737, %v737
      %v747 = vmul.f32 %v738, %v738
      %v748 = vmul.f32 %v739, %v739
      %v749 = vadd.f32 %v741, %v742
      %v750 = vadd.f32 %v749, %v743
      %v751 = vadd.f32 %v750, %v744
      %v752 = vadd.f32 %v751, %v745
      %v753 = vadd.f32 %v752, %v746
      %v754 = vadd.f32 %v753, %v747
      %v755 = vadd.f32 %v754, %v748
      %v756 = vrot.slane %v755, 4
      %v757 = vadd.f32 %v755, %v756
      %v758 = vrot.slane %v757, 2
      %v759 = vadd.f32 %v757, %v758
      %v760 = vrot.slane %v759, 1
      %v761 = vadd.f32 %v759, %v760
      %762 = vst [vmem:[%s318 + $0x1] sm:$0x1] %v761
      %s763 = smul.u32 8, %s22
      %p764 = scmp.lt.s32.totalorder %s21, 1
      %s765 = scalar_select %p764, %s21, 1
      %p766 = scmp.lt.s32.totalorder %s763, 7
      %s767 = scalar_select %p766, %s763, 7
      %s768 = smul.addr %s765, 8
      %s769 = sadd.s32 %s767, %s768
      %s770 = smul.addr %s769, 4
      %s771 = scalar_lea.vmem %s4, %s770
      %p772 = scmp.lt.s32.totalorder %s21, 1
      %s773 = scalar_select %p772, %s21, 1
      %p774 = scmp.lt.s32.totalorder %s22, 0
      %s775 = scalar_select %p774, %s22, 0
      %s776 = sadd.s32 %s775, %s773
      %s777 = smul.addr %s776, 2
      %s778 = scalar_lea.vmem %s5, %s777
      // Predicated region
      $region37: #{block_v2_forward.14} parent=35 // pred_check
        %p779 = pneg %p147
      $region38: #{block_v2_forward.14} parent=35 // pred_check_branch
        %781 = sbr.rel (%p779) target = $region40
      $region39: #{block_v2_forward.14} parent=35 // pred_region
        %s782 = smul.u32 8, %s22
      $region40: #{block_v2_forward.14} parent=35 // pred_fallthru
        _
      // Predicated region
      $region41: #{block_v2_forward.14} parent=35 // pred_check
        %p783 = pneg %p175
      $region42: #{block_v2_forward.14} parent=35 // pred_check_branch
        %785 = sbr.rel (%p783) target = $region44
      $region43: #{block_v2_forward.14} parent=35 // pred_region
        _
      $region44: #{block_v2_forward.14} parent=35 // pred_fallthru
        _
    $region36: #{block_v2_forward.14} parent=5 // pred_fallthru
      _
    %p786 = scmp.le.s32.totalorder 2, %s12
    // Predicated region
    $region45: #{block_v2_forward.14} parent=5 // pred_check
      %p787 = pneg %p786
    $region46: #{block_v2_forward.14} parent=5 // pred_check_branch
      %789 = sbr.rel (%p787) target = $region48
    $region47: #{block_v2_forward.14} parent=5 // pred_region
      %s790 = ssub.s32 %s12, 2
      // Predicated region
      $region49: #{block_v2_forward.14} parent=47 // pred_check
        %p791 = pneg %p153
      $region50: #{block_v2_forward.14} parent=47 // pred_check_branch
        %793 = sbr.rel (%p791) target = $region52
      $region51: #{block_v2_forward.14} parent=47 // pred_region
        %s794 = smul.u32 8, %s24
        %p795 = scmp.lt.s32.totalorder %s23, 1
        %s796 = scalar_select %p795, %s23, 1
        %p797 = scmp.lt.s32.totalorder %s794, 7
        %s798 = scalar_select %p797, %s794, 7
        %s799 = smul.addr %s796, 8
        %s800 = sadd.s32 %s798, %s799
        %s801 = smul.addr %s800, 4
        %s802 = scalar_lea.vmem %s4, %s801
      $region52: #{block_v2_forward.14} parent=47 // pred_fallthru
        _
      // Predicated region
      $region53: #{block_v2_forward.14} parent=47 // pred_check
        %p803 = pneg %p181
      $region54: #{block_v2_forward.14} parent=47 // pred_check_branch
        %805 = sbr.rel (%p803) target = $region56
      $region55: #{block_v2_forward.14} parent=47 // pred_region
        %p806 = scmp.lt.s32.totalorder %s23, 1
        %s807 = scalar_select %p806, %s23, 1
        %p808 = scmp.lt.s32.totalorder %s24, 0
        %s809 = scalar_select %p808, %s24, 0
        %s810 = sadd.s32 %s809, %s807
        %s811 = smul.addr %s810, 2
        %s812 = scalar_lea.vmem %s5, %s811
      $region56: #{block_v2_forward.14} parent=47 // pred_fallthru
        _
    $region48: #{block_v2_forward.14} parent=5 // pred_fallthru
      _
  $region6: #{block_v2_forward.14} parent=0 // loop_footer
    %s16 = sadd.s32 1, %s12
  $region7: #{block_v2_forward.14} parent=0 // loop_footer_branch
    %11 = sbr.rel target = $region3
  $region8: #{block_v2_forward.14} parent=0 // loop_exit
    _

// kernel: block_v2_forward.15
$region0: #{block_v2_forward.15}
  #allocation0 [shape = 'u32[]', space=smem, size = 0x4, offset = 0x4, fixed_abs, tag = 'smem constant byte address 0x4 - core index']
  #allocation1 [shape = 'u32[72,128]{1,0:T(1,128)}', space=vmem, size = 0x9000, scoped, tag = 'internal scratch']
  %s0 = inlined_call_operand.vmem [shape: bf16[2,64,128], index: 0, kind: input, shape index: {}]
  %s1 = inlined_call_operand.vmem [shape: f32[2,2,128], index: 1, kind: input, shape index: {}]
  %s2 = inlined_call_operand.vmem [shape: bf16[128,256], index: 2, kind: input, shape index: {}]
  %s3 = inlined_call_operand.vmem [shape: f32[1,256], index: 3, kind: input, shape index: {}]
  %s4 = inlined_call_operand.vmem [shape: bf16[256,128], index: 4, kind: input, shape index: {}]
  %s5 = inlined_call_operand.vmem [shape: f32[1,128], index: 5, kind: input, shape index: {}]
  %s6 = inlined_call_operand.vmem [shape: bf16[2,64,128], index: 6, kind: output, shape index: {0}]
  %s7 = inlined_call_operand.vmem [shape: f32[2,64,8], index: 7, kind: output, shape index: {1}]
  %s8 = inlined_call_operand.vmem [shape: f32[2,1,2,128], index: 8, kind: output, shape index: {2}]
  %9 = xla_tuple %s6, %s7, %s8
  %s10 = sld [smem:[#allocation0]]
  $region73: #{block_v2_forward.15} parent=0
    _
  %s12 = ssub.s32 1, %s10
  %s13 = scalar_select 0, %s12, %s10
  loop: start=0, step=1, limit=4
  $region2: #{block_v2_forward.15} parent=0 // loop_pre_header
    _
  $region3: #{block_v2_forward.15} parent=0 // loop_header
    %s15 = sphi 0, %s19
    %p16 = scmp.ge.s32.totalorder %s15, 4
    %s22 = sphi 0, %s34
    %s23 = sphi 0, %s30
    %s24 = sphi 0, %s22
    %s25 = sphi 0, %s23
    %s26 = sphi 0, %s24
    %s27 = sphi 0, %s25
    %s39 = sphi 0, %s41
    %s42 = sphi 0, %s39
    %s43 = sphi 0, %s42
    %s59 = sphi 0, %s43
    %s65 = sphi 0, %s67
    %s68 = sphi 0, %s65
    %s69 = sphi 0, %s68
    %s85 = sphi 0, %s69
    %s89 = sphi 0, %s89
    %s91 = sphi 0, %s89
    %s92 = sphi 0, %s91
    %s106 = sphi 0, %s92
    %s110 = sphi 0, %s110
    %s112 = sphi 0, %s110
    %s113 = sphi 0, %s112
    %s127 = sphi 0, %s113
    %s131 = sphi 0, %s131
    %s133 = sphi 0, %s131
    %s134 = sphi 0, %s133
    %s148 = sphi 0, %s134
    %s152 = sphi 0, %s152
    %s154 = sphi 0, %s152
    %s155 = sphi 0, %s154
    %s169 = sphi 0, %s155
    %s177 = sphi 0, %s179
    %s180 = sphi 0, %s177
    %s181 = sphi 0, %s180
    %s197 = sphi 0, %s181
    %s205 = sphi 0, %s207
    %s208 = sphi 0, %s205
    %s209 = sphi 0, %s208
    %s225 = sphi 0, %s209
    %s233 = sphi 0, %s235
    %s236 = sphi 0, %s233
    %s237 = sphi 0, %s236
    %s253 = sphi 0, %s237
  $region4: #{block_v2_forward.15} parent=0 // loop_header_branch
    %18 = sbr.rel (%p16) target = $region8
  $region5: #{block_v2_forward.15} parent=0 // loop_body
    %s20 = ssub.s32 %s15, 1
    %s21 = ssub.s32 %s15, 2
    %s28 = sadd.s32 1, %s23
    %p29 = scmp.ge.s32.totalorder %s28, 1
    %s30 = scalar_select %p29, 0, %s28
    %s31 = sadd.s32 1, %s22
    %s32 = scalar_select %p29, %s31, %s22
    %p33 = scmp.ge.s32.totalorder %s32, 2
    %s34 = scalar_select %p33, 0, %s32
    %s35 = ssub.s32 %s22, %s34
    %s36 = ssub.s32 %s23, %s30
    %s37 = sor.u32 %s35, %s36
    %p38 = scmp.eq.s32.totalorder %s37, 0
    %s40 = sadd.s32 %s39, 1
    %s41 = scalar_select %p38, %s39, %s40
    %p44 = pneg %p38
    %p45 = scmp.eq.s32.totalorder %s15, 1
    %p46 = por %p44, %p45
    %p47 = scmp.ne.s32.totalorder %s39, %s42
    %p48 = scmp.eq.s32.totalorder %s15, 0
    %p49 = por %p47, %p48
    %p50 = scmp.ne.s32.totalorder %s39, %s42
    %p51 = scmp.eq.s32.totalorder %s20, 1
    %p52 = por %p50, %p51
    %p53 = scmp.ne.s32.totalorder %s42, %s43
    %p54 = scmp.eq.s32.totalorder %s20, 0
    %p55 = por %p53, %p54
    %p56 = scmp.ne.s32.totalorder %s42, %s43
    %p57 = scmp.eq.s32.totalorder %s21, 1
    %p58 = por %p56, %p57
    %p60 = scmp.ne.s32.totalorder %s43, %s59
    %p61 = scmp.eq.s32.totalorder %s21, 0
    %p62 = por %p60, %p61
    %s63 = ssub.s32 %s22, %s34
    %p64 = scmp.eq.s32.totalorder %s63, 0
    %s66 = sadd.s32 %s65, 1
    %s67 = scalar_select %p64, %s65, %s66
    %p70 = pneg %p64
    %p71 = scmp.eq.s32.totalorder %s15, 1
    %p72 = por %p70, %p71
    %p73 = scmp.ne.s32.totalorder %s65, %s68
    %p74 = scmp.eq.s32.totalorder %s15, 0
    %p75 = por %p73, %p74
    %p76 = scmp.ne.s32.totalorder %s65, %s68
    %p77 = scmp.eq.s32.totalorder %s20, 1
    %p78 = por %p76, %p77
    %p79 = scmp.ne.s32.totalorder %s68, %s69
    %p80 = scmp.eq.s32.totalorder %s20, 0
    %p81 = por %p79, %p80
    %p82 = scmp.ne.s32.totalorder %s68, %s69
    %p83 = scmp.eq.s32.totalorder %s21, 1
    %p84 = por %p82, %p83
    %p86 = scmp.ne.s32.totalorder %s69, %s85
    %p87 = scmp.eq.s32.totalorder %s21, 0
    %p88 = por %p86, %p87
    %s90 = sadd.s32 %s89, 1
    %p93 = scmp.eq.s32.totalorder %s15, 1
    %p94 = scmp.ne.s32.totalorder %s89, %s91
    %p95 = scmp.eq.s32.totalorder %s15, 0
    %p96 = por %p94, %p95
    %p97 = scmp.ne.s32.totalorder %s89, %s91
    %p98 = scmp.eq.s32.totalorder %s20, 1
    %p99 = por %p97, %p98
    %p100 = scmp.ne.s32.totalorder %s91, %s92
    %p101 = scmp.eq.s32.totalorder %s20, 0
    %p102 = por %p100, %p101
    %p103 = scmp.ne.s32.totalorder %s91, %s92
    %p104 = scmp.eq.s32.totalorder %s21, 1
    %p105 = por %p103, %p104
    %p107 = scmp.ne.s32.totalorder %s92, %s106
    %p108 = scmp.eq.s32.totalorder %s21, 0
    %p109 = por %p107, %p108
    %s111 = sadd.s32 %s110, 1
    %p114 = scmp.eq.s32.totalorder %s15, 1
    %p115 = scmp.ne.s32.totalorder %s110, %s112
    %p116 = scmp.eq.s32.totalorder %s15, 0
    %p117 = por %p115, %p116
    %p118 = scmp.ne.s32.totalorder %s110, %s112
    %p119 = scmp.eq.s32.totalorder %s20, 1
    %p120 = por %p118, %p119
    %p121 = scmp.ne.s32.totalorder %s112, %s113
    %p122 = scmp.eq.s32.totalorder %s20, 0
    %p123 = por %p121, %p122
    %p124 = scmp.ne.s32.totalorder %s112, %s113
    %p125 = scmp.eq.s32.totalorder %s21, 1
    %p126 = por %p124, %p125
    %p128 = scmp.ne.s32.totalorder %s113, %s127
    %p129 = scmp.eq.s32.totalorder %s21, 0
    %p130 = por %p128, %p129
    %s132 = sadd.s32 %s131, 1
    %p135 = scmp.eq.s32.totalorder %s15, 1
    %p136 = scmp.ne.s32.totalorder %s131, %s133
    %p137 = scmp.eq.s32.totalorder %s15, 0
    %p138 = por %p136, %p137
    %p139 = scmp.ne.s32.totalorder %s131, %s133
    %p140 = scmp.eq.s32.totalorder %s20, 1
    %p141 = por %p139, %p140
    %p142 = scmp.ne.s32.totalorder %s133, %s134
    %p143 = scmp.eq.s32.totalorder %s20, 0
    %p144 = por %p142, %p143
    %p145 = scmp.ne.s32.totalorder %s133, %s134
    %p146 = scmp.eq.s32.totalorder %s21, 1
    %p147 = por %p145, %p146
    %p149 = scmp.ne.s32.totalorder %s134, %s148
    %p150 = scmp.eq.s32.totalorder %s21, 0
    %p151 = por %p149, %p150
    %s153 = sadd.s32 %s152, 1
    %p156 = scmp.eq.s32.totalorder %s15, 1
    %p157 = scmp.ne.s32.totalorder %s152, %s154
    %p158 = scmp.eq.s32.totalorder %s15, 0
    %p159 = por %p157, %p158
    %p160 = scmp.ne.s32.totalorder %s152, %s154
    %p161 = scmp.eq.s32.totalorder %s20, 1
    %p162 = por %p160, %p161
    %p163 = scmp.ne.s32.totalorder %s154, %s155
    %p164 = scmp.eq.s32.totalorder %s20, 0
    %p165 = por %p163, %p164
    %p166 = scmp.ne.s32.totalorder %s154, %s155
    %p167 = scmp.eq.s32.totalorder %s21, 1
    %p168 = por %p166, %p167
    %p170 = scmp.ne.s32.totalorder %s155, %s169
    %p171 = scmp.eq.s32.totalorder %s21, 0
    %p172 = por %p170, %p171
    %s173 = ssub.s32 %s22, %s34
    %s174 = ssub.s32 %s23, %s30
    %s175 = sor.u32 %s173, %s174
    %p176 = scmp.eq.s32.totalorder %s175, 0
    %s178 = sadd.s32 %s177, 1
    %s179 = scalar_select %p176, %s177, %s178
    %p182 = pneg %p176
    %p183 = scmp.eq.s32.totalorder %s15, 1
    %p184 = por %p182, %p183
    %p185 = scmp.ne.s32.totalorder %s177, %s180
    %p186 = scmp.eq.s32.totalorder %s15, 0
    %p187 = por %p185, %p186
    %p188 = scmp.ne.s32.totalorder %s177, %s180
    %p189 = scmp.eq.s32.totalorder %s20, 1
    %p190 = por %p188, %p189
    %p191 = scmp.ne.s32.totalorder %s180, %s181
    %p192 = scmp.eq.s32.totalorder %s20, 0
    %p193 = por %p191, %p192
    %p194 = scmp.ne.s32.totalorder %s180, %s181
    %p195 = scmp.eq.s32.totalorder %s21, 1
    %p196 = por %p194, %p195
    %p198 = scmp.ne.s32.totalorder %s181, %s197
    %p199 = scmp.eq.s32.totalorder %s21, 0
    %p200 = por %p198, %p199
    %s201 = ssub.s32 %s22, %s34
    %s202 = ssub.s32 %s23, %s30
    %s203 = sor.u32 %s201, %s202
    %p204 = scmp.eq.s32.totalorder %s203, 0
    %s206 = sadd.s32 %s205, 1
    %s207 = scalar_select %p204, %s205, %s206
    %p210 = pneg %p204
    %p211 = scmp.eq.s32.totalorder %s15, 1
    %p212 = por %p210, %p211
    %p213 = scmp.ne.s32.totalorder %s205, %s208
    %p214 = scmp.eq.s32.totalorder %s15, 0
    %p215 = por %p213, %p214
    %p216 = scmp.ne.s32.totalorder %s205, %s208
    %p217 = scmp.eq.s32.totalorder %s20, 1
    %p218 = por %p216, %p217
    %p219 = scmp.ne.s32.totalorder %s208, %s209
    %p220 = scmp.eq.s32.totalorder %s20, 0
    %p221 = por %p219, %p220
    %p222 = scmp.ne.s32.totalorder %s208, %s209
    %p223 = scmp.eq.s32.totalorder %s21, 1
    %p224 = por %p222, %p223
    %p226 = scmp.ne.s32.totalorder %s209, %s225
    %p227 = scmp.eq.s32.totalorder %s21, 0
    %p228 = por %p226, %p227
    %s229 = ssub.s32 %s22, %s34
    %s230 = ssub.s32 %s23, %s30
    %s231 = sor.u32 %s229, %s230
    %p232 = scmp.eq.s32.totalorder %s231, 0
    %s234 = sadd.s32 %s233, 1
    %s235 = scalar_select %p232, %s233, %s234
    %p238 = pneg %p232
    %p239 = scmp.eq.s32.totalorder %s15, 1
    %p240 = por %p238, %p239
    %p241 = scmp.ne.s32.totalorder %s233, %s236
    %p242 = scmp.eq.s32.totalorder %s15, 0
    %p243 = por %p241, %p242
    %p244 = scmp.ne.s32.totalorder %s233, %s236
    %p245 = scmp.eq.s32.totalorder %s20, 1
    %p246 = por %p244, %p245
    %p247 = scmp.ne.s32.totalorder %s236, %s237
    %p248 = scmp.eq.s32.totalorder %s20, 0
    %p249 = por %p247, %p248
    %p250 = scmp.ne.s32.totalorder %s236, %s237
    %p251 = scmp.eq.s32.totalorder %s21, 1
    %p252 = por %p250, %p251
    %p254 = scmp.ne.s32.totalorder %s237, %s253
    %p255 = scmp.eq.s32.totalorder %s21, 0
    %p256 = por %p254, %p255
    %p257 = scmp.le.s32.totalorder 1, %s15
    %p258 = scmp.lt.s32.totalorder %s15, 3
    %p259 = pnand %p257, %p258
    %p260 = pneg %p259
    // Predicated region
    $region9: #{block_v2_forward.15} parent=5 // pred_check
      _
    $region10: #{block_v2_forward.15} parent=5 // pred_check_branch
      %262 = sbr.rel (%p259) target = $region12
    $region11: #{block_v2_forward.15} parent=5 // pred_region
      %s263 = ssub.s32 %s15, 1
      // Predicated region
      $region13: #{block_v2_forward.15} parent=11 // pred_check
        %p264 = pneg %p102
      $region14: #{block_v2_forward.15} parent=11 // pred_check_branch
        %266 = sbr.rel (%p264) target = $region16
      $region15: #{block_v2_forward.15} parent=11 // pred_region
        _
      $region16: #{block_v2_forward.15} parent=11 // pred_fallthru
        _
      // Predicated region
      $region17: #{block_v2_forward.15} parent=11 // pred_check
        %p267 = pneg %p123
      $region18: #{block_v2_forward.15} parent=11 // pred_check_branch
        %269 = sbr.rel (%p267) target = $region20
      $region19: #{block_v2_forward.15} parent=11 // pred_region
        _
      $region20: #{block_v2_forward.15} parent=11 // pred_fallthru
        _
      // Predicated region
      $region21: #{block_v2_forward.15} parent=11 // pred_check
        %p270 = pneg %p144
      $region22: #{block_v2_forward.15} parent=11 // pred_check_branch
        %272 = sbr.rel (%p270) target = $region24
      $region23: #{block_v2_forward.15} parent=11 // pred_region
        _
      $region24: #{block_v2_forward.15} parent=11 // pred_fallthru
        _
      // Predicated region
      $region25: #{block_v2_forward.15} parent=11 // pred_check
        %p273 = pneg %p165
      $region26: #{block_v2_forward.15} parent=11 // pred_check_branch
        %275 = sbr.rel (%p273) target = $region28
      $region27: #{block_v2_forward.15} parent=11 // pred_region
        _
      $region28: #{block_v2_forward.15} parent=11 // pred_fallthru
        _
    $region12: #{block_v2_forward.15} parent=5 // pred_fallthru
      _
    %p276 = scmp.lt.s32.totalorder %s15, 2
    // Predicated region
    $region29: #{block_v2_forward.15} parent=5 // pred_check
      %p277 = pneg %p276
    $region30: #{block_v2_forward.15} parent=5 // pred_check_branch
      %279 = sbr.rel (%p277) target = $region32
    $region31: #{block_v2_forward.15} parent=5 // pred_region
      // Predicated region
      $region33: #{block_v2_forward.15} parent=31 // pred_check
        %p280 = pneg %p49
      $region34: #{block_v2_forward.15} parent=31 // pred_check_branch
        %282 = sbr.rel (%p280) target = $region36
      $region35: #{block_v2_forward.15} parent=31 // pred_region
        %s283 = smul.u32 8, %s23
        %p284 = scmp.lt.s32.totalorder %s22, 1
        %s285 = scalar_select %p284, %s22, 1
        %p286 = scmp.lt.s32.totalorder %s283, 7
        %s287 = scalar_select %p286, %s283, 7
        %s288 = smul.addr %s285, 8
        %s289 = sadd.s32 %s287, %s288
        %s290 = smul.addr %s289, 4
        %s291 = scalar_lea.vmem %s0, %s290
        %s292 = smul.u32 8, %s23
      $region36: #{block_v2_forward.15} parent=31 // pred_fallthru
        _
      // Predicated region
      $region37: #{block_v2_forward.15} parent=31 // pred_check
        %p293 = pneg %p75
      $region38: #{block_v2_forward.15} parent=31 // pred_check_branch
        %295 = sbr.rel (%p293) target = $region40
      $region39: #{block_v2_forward.15} parent=31 // pred_region
        %p296 = scmp.lt.s32.totalorder %s22, 1
        %s297 = scalar_select %p296, %s22, 1
        %s298 = smul.addr %s297, 2
        %s299 = scalar_lea.vmem %s1, %s298
      $region40: #{block_v2_forward.15} parent=31 // pred_fallthru
        _
    $region32: #{block_v2_forward.15} parent=5 // pred_fallthru
      _
    %p300 = scmp.le.s32.totalorder 1, %s15
    %p301 = scmp.lt.s32.totalorder %s15, 3
    %p302 = pnand %p300, %p301
    %p303 = pneg %p302
    // Predicated region
    $region41: #{block_v2_forward.15} parent=5 // pred_check
      _
    $region42: #{block_v2_forward.15} parent=5 // pred_check_branch
      %305 = sbr.rel (%p302) target = $region44
    $region43: #{block_v2_forward.15} parent=5 // pred_region
      %s306 = ssub.s32 %s15, 1
      %s307 = smul.u32 8, %s25
      %p308 = scmp.lt.s32.totalorder %s24, 1
      %s309 = scalar_select %p308, %s24, 1
      %p310 = scmp.lt.s32.totalorder %s307, 7
      %s311 = scalar_select %p310, %s307, 7
      %s312 = smul.addr %s309, 8
      %s313 = sadd.s32 %s311, %s312
      %s314 = smul.addr %s313, 4
      %s315 = scalar_lea.vmem %s0, %s314
      %p316 = pneg %p55
      %p317 = pneg %p52
      %p318 = scmp.lt.s32.totalorder %s24, 1
      %s319 = scalar_select %p318, %s24, 1
      %s320 = smul.addr %s319, 2
      %s321 = scalar_lea.vmem %s1, %s320
      %p322 = pneg %p81
      %p323 = pneg %p78
      %p324 = pneg %p102
      %p325 = pneg %p99
      %p326 = pneg %p123
      %p327 = pneg %p120
      %p328 = pneg %p144
      %p329 = pneg %p141
      %p330 = pneg %p165
      %p331 = pneg %p162
      %p332 = pneg %p193
      %p333 = pneg %p190
      %s334 = smul.u32 8, %s25
      %p335 = scmp.lt.s32.totalorder %s24, 1
      %s336 = scalar_select %p335, %s24, 1
      %p337 = scmp.lt.s32.totalorder %s334, 7
      %s338 = scalar_select %p337, %s334, 7
      %s339 = smul.addr %s336, 8
      %s340 = sadd.s32 %s338, %s339
      %s341 = smul.addr %s340, 4
      %s342 = scalar_lea.vmem %s6, %s341
      %p343 = pneg %p221
      %p344 = pneg %p218
      %s345 = smul.u32 8, %s25
      %p346 = scmp.lt.s32.totalorder %s24, 1
      %s347 = scalar_select %p346, %s24, 1
      %p348 = scmp.lt.s32.totalorder %s345, 7
      %s349 = scalar_select %p348, %s345, 7
      %s350 = smul.addr %s347, 8
      %s351 = sadd.s32 %s349, %s350
      %s352 = smul.addr %s351, 8
      %s353 = scalar_lea.vmem %s7, %s352
      %p354 = pneg %p249
      %p355 = pneg %p246
      %p356 = scmp.lt.s32.totalorder %s24, 1
      %s357 = scalar_select %p356, %s24, 1
      %p358 = scmp.lt.s32.totalorder %s25, 0
      %s359 = scalar_select %p358, %s25, 0
      %s360 = sadd.s32 %s359, %s357
      %s361 = smul.addr %s360, 2
      %s362 = scalar_lea.vmem %s8, %s361
      %s363 = smul.u32 8, %s25
      %p364 = scmp.lt.s32.totalorder %s24, 1
      %s365 = scalar_select %p364, %s24, 1
      %p366 = scmp.lt.s32.totalorder %s363, 7
      %s367 = scalar_select %p366, %s363, 7
      %s368 = smul.addr %s365, 8
      %s369 = sadd.s32 %s367, %s368
      %s370 = smul.addr %s369, 4
      %s371 = scalar_lea.vmem %s0, %s370
      %s372 = smul.u32 8, %s25
      %p373 = scmp.lt.s32.totalorder %s24, 1
      %s374 = scalar_select %p373, %s24, 1
      %s375 = smul.addr %s374, 2
      %s376 = scalar_lea.vmem %s1, %s375
      %s377 = smul.u32 8, %s25
      %p378 = scmp.lt.s32.totalorder %s24, 1
      %s379 = scalar_select %p378, %s24, 1
      %p380 = scmp.lt.s32.totalorder %s377, 7
      %s381 = scalar_select %p380, %s377, 7
      %s382 = smul.addr %s379, 8
      %s383 = sadd.s32 %s381, %s382
      %s384 = smul.addr %s383, 4
      %s385 = scalar_lea.vmem %s6, %s384
      %s386 = smul.u32 8, %s25
      %s387 = smul.u32 8, %s25
      %p388 = scmp.lt.s32.totalorder %s24, 1
      %s389 = scalar_select %p388, %s24, 1
      %p390 = scmp.lt.s32.totalorder %s387, 7
      %s391 = scalar_select %p390, %s387, 7
      %s392 = smul.addr %s389, 8
      %s393 = sadd.s32 %s391, %s392
      %s394 = smul.addr %s393, 8
      %s395 = scalar_lea.vmem %s7, %s394
      %s396 = smul.u32 8, %s25
      %p397 = scmp.lt.s32.totalorder %s24, 1
      %s398 = scalar_select %p397, %s24, 1
      %p399 = scmp.lt.s32.totalorder %s25, 0
      %s400 = scalar_select %p399, %s25, 0
      %s401 = sadd.s32 %s400, %s398
      %s402 = smul.addr %s401, 2
      %s403 = scalar_lea.vmem %s8, %s402
      %v404 = vld [vmem:[%s371] sm:$0xf]
      %v405 = vld [vmem:[%s371 + $0x4] sm:$0xf]
      %v406 = vld [vmem:[%s371 + $0x8] sm:$0xf]
      %v407 = vld [vmem:[%s371 + $0xc] sm:$0xf]
      %v408 = vld [vmem:[%s371 + $0x10] sm:$0xf]
      %v409 = vld [vmem:[%s371 + $0x14] sm:$0xf]
      %v410 = vld [vmem:[%s371 + $0x18] sm:$0xf]
      %v411 = vld [vmem:[%s371 + $0x1c] sm:$0xf]
      %v412 = vunpack.c.l.bf16 %v404
      %v413 = vunpack.c.l.bf16 %v405
      %v414 = vunpack.c.l.bf16 %v406
      %v415 = vunpack.c.l.bf16 %v407
      %v416 = vunpack.c.l.bf16 %v408
      %v417 = vunpack.c.l.bf16 %v409
      %v418 = vunpack.c.l.bf16 %v410
      %v419 = vunpack.c.l.bf16 %v411
      %v420 = vld [vmem:[%s376] sm:$0x1]
      %v421 = vperm.slane %v420, 0
      %v422 = vmul.f32 %v412, %v421
      %v423 = vmul.f32 %v413, %v421
      %v424 = vmul.f32 %v414, %v421
      %v425 = vmul.f32 %v415, %v421
      %v426 = vmul.f32 %v416, %v421
      %v427 = vmul.f32 %v417, %v421
      %v428 = vmul.f32 %v418, %v421
      %v429 = vmul.f32 %v419, %v421
      %v430 = vld [vmem:[%s376 + $0x1] sm:$0x1]
      %v431 = vperm.slane %v430, 0
      %v432 = vadd.f32 %v422, %v431
      %v433 = vadd.f32 %v423, %v431
      %v434 = vadd.f32 %v424, %v431
      %v435 = vadd.f32 %v425, %v431
      %v436 = vadd.f32 %v426, %v431
      %v437 = vadd.f32 %v427, %v431
      %v438 = vadd.f32 %v428, %v431
      %v439 = vadd.f32 %v429, %v431
      %v440 = vpack.c.bf16 %v433, %v432
      %v441 = vpack.c.bf16 %v435, %v434
      %v442 = vpack.c.bf16 %v437, %v436
      %v443 = vpack.c.bf16 %v439, %v438
      %v444 = vld [vmem:[%s2] sm:$0xff]
      %v445 = vld [vmem:[%s2 + $0x8] sm:$0xff]
      %v446 = vld [vmem:[%s2 + $0x10] sm:$0xff]
      %v447 = vld [vmem:[%s2 + $0x18] sm:$0xff]
      %v448 = vld [vmem:[%s2 + $0x20] sm:$0xff]
      %v449 = vld [vmem:[%s2 + $0x28] sm:$0xff]
      %v450 = vld [vmem:[%s2 + $0x30] sm:$0xff]
      %v451 = vld [vmem:[%s2 + $0x38] sm:$0xff]
      %v452 = vld [vmem:[%s2 + $0x40] sm:$0xff]
      %v453 = vld [vmem:[%s2 + $0x48] sm:$0xff]
      %v454 = vld [vmem:[%s2 + $0x50] sm:$0xff]
      %v455 = vld [vmem:[%s2 + $0x58] sm:$0xff]
      %v456 = vld [vmem:[%s2 + $0x60] sm:$0xff]
      %v457 = vld [vmem:[%s2 + $0x68] sm:$0xff]
      %v458 = vld [vmem:[%s2 + $0x70] sm:$0xff]
      %v459 = vld [vmem:[%s2 + $0x78] sm:$0xff]
      %v460 = vld [vmem:[%s3] sm:$0x3]
      %v462 = vperm.slane %v460, 0
      %v463 = vperm.slane %v460, 1
      %v482 = vunpack.c.l.b16 %v444
      %v483 = vunpack.c.h.b16 %v444
      %v484 = vunpack.c.l.b16 %v445
      %v485 = vunpack.c.h.b16 %v445
      %v486 = vunpack.c.l.b16 %v446
      %v487 = vunpack.c.h.b16 %v446
      %v488 = vunpack.c.l.b16 %v447
      %v489 = vunpack.c.h.b16 %v447
      %v490 = vunpack.c.l.b16 %v448
      %v491 = vunpack.c.h.b16 %v448
      %v492 = vunpack.c.l.b16 %v449
      %v493 = vunpack.c.h.b16 %v449
      %v494 = vunpack.c.l.b16 %v450
      %v495 = vunpack.c.h.b16 %v450
      %v496 = vunpack.c.l.b16 %v451
      %v497 = vunpack.c.h.b16 %v451
      %v498 = vunpack.c.l.b16 %v452
      %v499 = vunpack.c.h.b16 %v452
      %v500 = vunpack.c.l.b16 %v453
      %v501 = vunpack.c.h.b16 %v453
      %v502 = vunpack.c.l.b16 %v454
      %v503 = vunpack.c.h.b16 %v454
      %v504 = vunpack.c.l.b16 %v455
      %v505 = vunpack.c.h.b16 %v455
      %v506 = vunpack.c.l.b16 %v456
      %v507 = vunpack.c.h.b16 %v456
      %v508 = vunpack.c.l.b16 %v457
      %v509 = vunpack.c.h.b16 %v457
      %v510 = vunpack.c.l.b16 %v458
      %v511 = vunpack.c.h.b16 %v458
      %v512 = vunpack.c.l.b16 %v459
      %v513 = vunpack.c.h.b16 %v459
      %v514 = vpack.c.b16 %v484, %v482
      %v515 = vpack.c.b16 %v485, %v483
      %v516 = vpack.c.b16 %v488, %v486
      %v517 = vpack.c.b16 %v489, %v487
      %v518 = vpack.c.b16 %v492, %v490
      %v519 = vpack.c.b16 %v493, %v491
      %v520 = vpack.c.b16 %v496, %v494
      %v521 = vpack.c.b16 %v497, %v495
      %v522 = vpack.c.b16 %v500, %v498
      %v523 = vpack.c.b16 %v501, %v499
      %v524 = vpack.c.b16 %v504, %v502
      %v525 = vpack.c.b16 %v505, %v503
      %v526 = vpack.c.b16 %v508, %v506
      %v527 = vpack.c.b16 %v509, %v507
      %v528 = vpack.c.b16 %v512, %v510
      %v529 = vpack.c.b16 %v513, %v511
      %546 = vmatpush.bf16.msra.mxu0 %v528
      %547 = vmatpush.bf16.msra.mxu0 %v526
      %548 = vmatpush.bf16.msra.mxu0 %v524
      %549 = vmatpush.bf16.msra.mxu0 %v522
      %550 = vmatpush.bf16.msra.mxu0 %v520
      %551 = vmatpush.bf16.msra.mxu0 %v518
      %552 = vmatpush.bf16.msra.mxu0 %v516
      %553 = vmatpush.bf16.msra.mxu0 %v514
      %554 = vmatmul.bf16.gmra.mxu0 %v440
      %v555 = vpop.f32.mrf.mxu0
      %v556 = vadd.f32 %v462, %v555
      %v557 = vpop.f32.mrf.mxu0
      %v558 = vadd.f32 %v462, %v557
      %559 = vmatmul.bf16.gmra.mxu0 %v441
      %v560 = vpop.f32.mrf.mxu0
      %v561 = vadd.f32 %v462, %v560
      %v562 = vpop.f32.mrf.mxu0
      %v563 = vadd.f32 %v462, %v562
      %564 = vmatmul.bf16.gmra.mxu0 %v442
      %v565 = vpop.f32.mrf.mxu0
      %v566 = vadd.f32 %v462, %v565
      %v567 = vpop.f32.mrf.mxu0
      %v568 = vadd.f32 %v462, %v567
      %569 = vmatmul.bf16.gmra.mxu0 %v443
      %v570 = vpop.f32.mrf.mxu0
      %v571 = vadd.f32 %v462, %v570
      %v572 = vpop.f32.mrf.mxu0
      %v573 = vadd.f32 %v462, %v572
      %574 = vdwg.mxu0
      %575 = vmatpush.bf16.msra.mxu0 %v529
      %576 = vmatpush.bf16.msra.mxu0 %v527
      %577 = vmatpush.bf16.msra.mxu0 %v525
      %578 = vmatpush.bf16.msra.mxu0 %v523
      %579 = vmatpush.bf16.msra.mxu0 %v521
      %580 = vmatpush.bf16.msra.mxu0 %v519
      %581 = vmatpush.bf16.msra.mxu0 %v517
      %582 = vmatpush.bf16.msra.mxu0 %v515
      %583 = vmatmul.bf16.gmra.mxu0 %v440
      %v584 = vpop.f32.mrf.mxu0
      %v585 = vadd.f32 %v463, %v584
      %v586 = vpop.f32.mrf.mxu0
      %v587 = vadd.f32 %v463, %v586
      %588 = vmatmul.bf16.gmra.mxu0 %v441
      %v589 = vpop.f32.mrf.mxu0
      %v590 = vadd.f32 %v463, %v589
      %v591 = vpop.f32.mrf.mxu0
      %v592 = vadd.f32 %v463, %v591
      %593 = vmatmul.bf16.gmra.mxu0 %v442
      %v594 = vpop.f32.mrf.mxu0
      %v595 = vadd.f32 %v463, %v594
      %v596 = vpop.f32.mrf.mxu0
      %v597 = vadd.f32 %v463, %v596
      %598 = vmatmul.bf16.gmra.mxu0 %v443
      %v599 = vpop.f32.mrf.mxu0
      %v600 = vadd.f32 %v463, %v599
      %v601 = vpop.f32.mrf.mxu0
      %v602 = vadd.f32 %v463, %v601
      %603 = vdwg.mxu0
      %vm604 = vcmp.gt.f32.partialorder %v556, 0.0
      %vm605 = vcmp.gt.f32.partialorder %v558, 0.0
      %vm606 = vcmp.gt.f32.partialorder %v561, 0.0
      %vm607 = vcmp.gt.f32.partialorder %v563, 0.0
      %vm608 = vcmp.gt.f32.partialorder %v566, 0.0
      %vm609 = vcmp.gt.f32.partialorder %v568, 0.0
      %vm610 = vcmp.gt.f32.partialorder %v571, 0.0
      %vm611 = vcmp.gt.f32.partialorder %v573, 0.0
      %v612 = vmin.f32 %v556, 0.0
      %v613 = vmin.f32 %v558, 0.0
      %v614 = vmin.f32 %v561, 0.0
      %v615 = vmin.f32 %v563, 0.0
      %v616 = vmin.f32 %v566, 0.0
      %v617 = vmin.f32 %v568, 0.0
      %v618 = vmin.f32 %v571, 0.0
      %v619 = vmin.f32 %v573, 0.0
      %v620 = vmul.f32 %v612, 1.442695
      %v621 = vpow.pop %v620
      %v622 = vmul.f32 %v613, 1.442695
      %v623 = vpow.pop %v622
      %v624 = vmul.f32 %v614, 1.442695
      %v625 = vpow.pop %v624
      %v626 = vmul.f32 %v615, 1.442695
      %v627 = vpow.pop %v626
      %v628 = vmul.f32 %v616, 1.442695
      %v629 = vpow.pop %v628
      %v630 = vmul.f32 %v617, 1.442695
      %v631 = vpow.pop %v630
      %v632 = vmul.f32 %v618, 1.442695
      %v633 = vpow.pop %v632
      %v634 = vmul.f32 %v619, 1.442695
      %v635 = vpow.pop %v634
      %v636 = vsub.f32 %v621, 1.0
      %v637 = vsub.f32 %v623, 1.0
      %v638 = vsub.f32 %v625, 1.0
      %v639 = vsub.f32 %v627, 1.0
      %v640 = vsub.f32 %v629, 1.0
      %v641 = vsub.f32 %v631, 1.0
      %v642 = vsub.f32 %v633, 1.0
      %v643 = vsub.f32 %v635, 1.0
      %v644 = vsel %vm604, %v556, %v636
      %v645 = vsel %vm605, %v558, %v637
      %v646 = vsel %vm606, %v561, %v638
      %v647 = vsel %vm607, %v563, %v639
      %v648 = vsel %vm608, %v566, %v640
      %v649 = vsel %vm609, %v568, %v641
      %v650 = vsel %vm610, %v571, %v642
      %v651 = vsel %vm611, %v573, %v643
      %vm652 = vcmask 64512
      %653 = vst.msk [vmem:[%s395] sm:$0xff] %vm652, %v585
      %654 = vst.msk [vmem:[%s395 + $0x8] sm:$0xff] %vm652, %v587
      %655 = vst.msk [vmem:[%s395 + $0x10] sm:$0xff] %vm652, %v590
      %656 = vst.msk [vmem:[%s395 + $0x18] sm:$0xff] %vm652, %v592
      %657 = vst.msk [vmem:[%s395 + $0x20] sm:$0xff] %vm652, %v595
      %658 = vst.msk [vmem:[%s395 + $0x28] sm:$0xff] %vm652, %v597
      %659 = vst.msk [vmem:[%s395 + $0x30] sm:$0xff] %vm652, %v600
      %660 = vst.msk [vmem:[%s395 + $0x38] sm:$0xff] %vm652, %v602
      %v661 = vpack.c.bf16 %v644, %v644
      %v662 = vpack.c.bf16 %v645, %v645
      %v663 = vpack.c.bf16 %v646, %v646
      %v664 = vpack.c.bf16 %v647, %v647
      %v665 = vpack.c.bf16 %v648, %v648
      %v666 = vpack.c.bf16 %v649, %v649
      %v667 = vpack.c.bf16 %v650, %v650
      %v668 = vpack.c.bf16 %v651, %v651
      %v677 = vunpack.c.l.b16 %v404
      %v678 = vunpack.c.l.b16 %v405
      %v679 = vunpack.c.l.b16 %v406
      %v680 = vunpack.c.l.b16 %v407
      %v681 = vunpack.c.l.b16 %v408
      %v682 = vunpack.c.l.b16 %v409
      %v683 = vunpack.c.l.b16 %v410
      %v684 = vunpack.c.l.b16 %v411
      %v685 = vpack.c.b16 %v678, %v677
      %v686 = vpack.c.b16 %v680, %v679
      %v687 = vpack.c.b16 %v682, %v681
      %v688 = vpack.c.b16 %v684, %v683
      %v701 = vunpack.c.l.b16 %v661
      %v702 = vunpack.c.l.b16 %v662
      %v703 = vunpack.c.l.b16 %v663
      %v704 = vunpack.c.l.b16 %v664
      %v705 = vunpack.c.l.b16 %v665
      %v706 = vunpack.c.l.b16 %v666
      %v707 = vunpack.c.l.b16 %v667
      %v708 = vunpack.c.l.b16 %v668
      %v709 = vpack.c.b16 %v702, %v701
      %v710 = vpack.c.b16 %v704, %v703
      %v711 = vpack.c.b16 %v706, %v705
      %v712 = vpack.c.b16 %v708, %v707
      %v717 = vld [vmem:[%s4] sm:$0xf]
      %v718 = vld [vmem:[%s4 + $0x4] sm:$0xf]
      %v719 = vld [vmem:[%s4 + $0x8] sm:$0xf]
      %v720 = vld [vmem:[%s4 + $0xc] sm:$0xf]
      %v721 = vld [vmem:[%s4 + $0x10] sm:$0xf]
      %v722 = vld [vmem:[%s4 + $0x14] sm:$0xf]
      %v723 = vld [vmem:[%s4 + $0x18] sm:$0xf]
      %v724 = vld [vmem:[%s4 + $0x1c] sm:$0xf]
      %v725 = vld [vmem:[%s4 + $0x20] sm:$0xf]
      %v726 = vld [vmem:[%s4 + $0x24] sm:$0xf]
      %v727 = vld [vmem:[%s4 + $0x28] sm:$0xf]
      %v728 = vld [vmem:[%s4 + $0x2c] sm:$0xf]
      %v729 = vld [vmem:[%s4 + $0x30] sm:$0xf]
      %v730 = vld [vmem:[%s4 + $0x34] sm:$0xf]
      %v731 = vld [vmem:[%s4 + $0x38] sm:$0xf]
      %v732 = vld [vmem:[%s4 + $0x3c] sm:$0xf]
      %v733 = vld [vmem:[%s4 + $0x40] sm:$0xf]
      %v734 = vld [vmem:[%s4 + $0x44] sm:$0xf]
      %v735 = vld [vmem:[%s4 + $0x48] sm:$0xf]
      %v736 = vld [vmem:[%s4 + $0x4c] sm:$0xf]
      %v737 = vld [vmem:[%s4 + $0x50] sm:$0xf]
      %v738 = vld [vmem:[%s4 + $0x54] sm:$0xf]
      %v739 = vld [vmem:[%s4 + $0x58] sm:$0xf]
      %v740 = vld [vmem:[%s4 + $0x5c] sm:$0xf]
      %v741 = vld [vmem:[%s4 + $0x60] sm:$0xf]
      %v742 = vld [vmem:[%s4 + $0x64] sm:$0xf]
      %v743 = vld [vmem:[%s4 + $0x68] sm:$0xf]
      %v744 = vld [vmem:[%s4 + $0x6c] sm:$0xf]
      %v745 = vld [vmem:[%s4 + $0x70] sm:$0xf]
      %v746 = vld [vmem:[%s4 + $0x74] sm:$0xf]
      %v747 = vld [vmem:[%s4 + $0x78] sm:$0xf]
      %v748 = vld [vmem:[%s4 + $0x7c] sm:$0xf]
      %v749 = vld [vmem:[%s5] sm:$0x1]
      %v751 = vperm.slane %v749, 0
      %v785 = vunpack.c.l.b16 %v717
      %v786 = vunpack.c.l.b16 %v718
      %v787 = vunpack.c.l.b16 %v719
      %v788 = vunpack.c.l.b16 %v720
      %v789 = vunpack.c.l.b16 %v721
      %v790 = vunpack.c.l.b16 %v722
      %v791 = vunpack.c.l.b16 %v723
      %v792 = vunpack.c.l.b16 %v724
      %v793 = vunpack.c.l.b16 %v725
      %v794 = vunpack.c.l.b16 %v726
      %v795 = vunpack.c.l.b16 %v727
      %v796 = vunpack.c.l.b16 %v728
      %v797 = vunpack.c.l.b16 %v729
      %v798 = vunpack.c.l.b16 %v730
      %v799 = vunpack.c.l.b16 %v731
      %v800 = vunpack.c.l.b16 %v732
      %v801 = vunpack.c.l.b16 %v733
      %v802 = vunpack.c.l.b16 %v734
      %v803 = vunpack.c.l.b16 %v735
      %v804 = vunpack.c.l.b16 %v736
      %v805 = vunpack.c.l.b16 %v737
      %v806 = vunpack.c.l.b16 %v738
      %v807 = vunpack.c.l.b16 %v739
      %v808 = vunpack.c.l.b16 %v740
      %v809 = vunpack.c.l.b16 %v741
      %v810 = vunpack.c.l.b16 %v742
      %v811 = vunpack.c.l.b16 %v743
      %v812 = vunpack.c.l.b16 %v744
      %v813 = vunpack.c.l.b16 %v745
      %v814 = vunpack.c.l.b16 %v746
      %v815 = vunpack.c.l.b16 %v747
      %v816 = vunpack.c.l.b16 %v748
      %v817 = vpack.c.b16 %v786, %v785
      %v818 = vpack.c.b16 %v788, %v787
      %v819 = vpack.c.b16 %v790, %v789
      %v820 = vpack.c.b16 %v792, %v791
      %v821 = vpack.c.b16 %v794, %v793
      %v822 = vpack.c.b16 %v796, %v795
      %v823 = vpack.c.b16 %v798, %v797
      %v824 = vpack.c.b16 %v800, %v799
      %v825 = vpack.c.b16 %v802, %v801
      %v826 = vpack.c.b16 %v804, %v803
      %v827 = vpack.c.b16 %v806, %v805
      %v828 = vpack.c.b16 %v808, %v807
      %v829 = vpack.c.b16 %v810, %v809
      %v830 = vpack.c.b16 %v812, %v811
      %v831 = vpack.c.b16 %v814, %v813
      %v832 = vpack.c.b16 %v816, %v815
      %849 = vmatpush.bf16.msra.mxu0 %v824
      %850 = vmatpush.bf16.msra.mxu0 %v823
      %851 = vmatpush.bf16.msra.mxu0 %v822
      %852 = vmatpush.bf16.msra.mxu0 %v821
      %853 = vmatpush.bf16.msra.mxu0 %v820
      %854 = vmatpush.bf16.msra.mxu0 %v819
      %855 = vmatpush.bf16.msra.mxu0 %v818
      %856 = vmatpush.bf16.msra.mxu0 %v817
      %857 = vmatmul.bf16.gmra.mxu0 %v685
      %v858 = vpop.f32.mrf.mxu0
      %v859 = vadd.f32 %v751, %v858
      %v860 = vpop.f32.mrf.mxu0
      %v861 = vadd.f32 %v751, %v860
      %862 = vmatmul.bf16.gmra.mxu0 %v686
      %v863 = vpop.f32.mrf.mxu0
      %v864 = vadd.f32 %v751, %v863
      %v865 = vpop.f32.mrf.mxu0
      %v866 = vadd.f32 %v751, %v865
      %867 = vmatmul.bf16.gmra.mxu0 %v687
      %v868 = vpop.f32.mrf.mxu0
      %v869 = vadd.f32 %v751, %v868
      %v870 = vpop.f32.mrf.mxu0
      %v871 = vadd.f32 %v751, %v870
      %872 = vmatmul.bf16.gmra.mxu0 %v688
      %v873 = vpop.f32.mrf.mxu0
      %v874 = vadd.f32 %v751, %v873
      %v875 = vpop.f32.mrf.mxu0
      %v876 = vadd.f32 %v751, %v875
      %877 = vdwg.mxu0
      %878 = vmatpush.bf16.msra.mxu0 %v832
      %879 = vmatpush.bf16.msra.mxu0 %v831
      %880 = vmatpush.bf16.msra.mxu0 %v830
      %881 = vmatpush.bf16.msra.mxu0 %v829
      %882 = vmatpush.bf16.msra.mxu0 %v828
      %883 = vmatpush.bf16.msra.mxu0 %v827
      %884 = vmatpush.bf16.msra.mxu0 %v826
      %885 = vmatpush.bf16.msra.mxu0 %v825
      %886 = vmatmul.bf16.gmra.mxu0 %v709
      %v887 = vpop.f32.mrf.mxu0
      %v888 = vadd.f32 %v859, %v887
      %v889 = vpop.f32.mrf.mxu0
      %v890 = vadd.f32 %v861, %v889
      %891 = vmatmul.bf16.gmra.mxu0 %v710
      %v892 = vpop.f32.mrf.mxu0
      %v893 = vadd.f32 %v864, %v892
      %v894 = vpop.f32.mrf.mxu0
      %v895 = vadd.f32 %v866, %v894
      %896 = vmatmul.bf16.gmra.mxu0 %v711
      %v897 = vpop.f32.mrf.mxu0
      %v898 = vadd.f32 %v869, %v897
      %v899 = vpop.f32.mrf.mxu0
      %v900 = vadd.f32 %v871, %v899
      %901 = vmatmul.bf16.gmra.mxu0 %v712
      %v902 = vpop.f32.mrf.mxu0
      %v903 = vadd.f32 %v874, %v902
      %v904 = vpop.f32.mrf.mxu0
      %v905 = vadd.f32 %v876, %v904
      %906 = vdwg.mxu0
      %vm907 = vcmp.gt.f32.partialorder %v888, 0.0
      %vm908 = vcmp.gt.f32.partialorder %v890, 0.0
      %vm909 = vcmp.gt.f32.partialorder %v893, 0.0
      %vm910 = vcmp.gt.f32.partialorder %v895, 0.0
      %vm911 = vcmp.gt.f32.partialorder %v898, 0.0
      %vm912 = vcmp.gt.f32.partialorder %v900, 0.0
      %vm913 = vcmp.gt.f32.partialorder %v903, 0.0
      %vm914 = vcmp.gt.f32.partialorder %v905, 0.0
      %v915 = vmin.f32 %v888, 0.0
      %v916 = vmin.f32 %v890, 0.0
      %v917 = vmin.f32 %v893, 0.0
      %v918 = vmin.f32 %v895, 0.0
      %v919 = vmin.f32 %v898, 0.0
      %v920 = vmin.f32 %v900, 0.0
      %v921 = vmin.f32 %v903, 0.0
      %v922 = vmin.f32 %v905, 0.0
      %v923 = vmul.f32 %v915, 1.442695
      %v924 = vpow.pop %v923
      %v925 = vmul.f32 %v916, 1.442695
      %v926 = vpow.pop %v925
      %v927 = vmul.f32 %v917, 1.442695
      %v928 = vpow.pop %v927
      %v929 = vmul.f32 %v918, 1.442695
      %v930 = vpow.pop %v929
      %v931 = vmul.f32 %v919, 1.442695
      %v932 = vpow.pop %v931
      %v933 = vmul.f32 %v920, 1.442695
      %v934 = vpow.pop %v933
      %v935 = vmul.f32 %v921, 1.442695
      %v936 = vpow.pop %v935
      %v937 = vmul.f32 %v922, 1.442695
      %v938 = vpow.pop %v937
      %v939 = vsub.f32 %v924, 1.0
      %v940 = vsub.f32 %v926, 1.0
      %v941 = vsub.f32 %v928, 1.0
      %v942 = vsub.f32 %v930, 1.0
      %v943 = vsub.f32 %v932, 1.0
      %v944 = vsub.f32 %v934, 1.0
      %v945 = vsub.f32 %v936, 1.0
      %v946 = vsub.f32 %v938, 1.0
      %v947 = vsel %vm907, %v888, %v939
      %v948 = vsel %vm908, %v890, %v940
      %v949 = vsel %vm909, %v893, %v941
      %v950 = vsel %vm910, %v895, %v942
      %v951 = vsel %vm911, %v898, %v943
      %v952 = vsel %vm912, %v900, %v944
      %v953 = vsel %vm913, %v903, %v945
      %v954 = vsel %vm914, %v905, %v946
      %v955 = vpack.c.bf16 %v947, %v947
      %v956 = vpack.c.bf16 %v948, %v948
      %v957 = vpack.c.bf16 %v949, %v949
      %v958 = vpack.c.bf16 %v950, %v950
      %v959 = vpack.c.bf16 %v951, %v951
      %v960 = vpack.c.bf16 %v952, %v952
      %v961 = vpack.c.bf16 %v953, %v953
      %v962 = vpack.c.bf16 %v954, %v954
      %963 = vst [vmem:[%s385] sm:$0xf] %v955
      %964 = vst [vmem:[%s385 + $0x4] sm:$0xf] %v956
      %965 = vst [vmem:[%s385 + $0x8] sm:$0xf] %v957
      %966 = vst [vmem:[%s385 + $0xc] sm:$0xf] %v958
      %967 = vst [vmem:[%s385 + $0x10] sm:$0xf] %v959
      %968 = vst [vmem:[%s385 + $0x14] sm:$0xf] %v960
      %969 = vst [vmem:[%s385 + $0x18] sm:$0xf] %v961
      %970 = vst [vmem:[%s385 + $0x1c] sm:$0xf] %v962
      %v971 = vunpack.c.l.bf16 %v955
      %v972 = vunpack.c.l.bf16 %v956
      %v973 = vunpack.c.l.bf16 %v957
      %v974 = vunpack.c.l.bf16 %v958
      %v975 = vunpack.c.l.bf16 %v959
      %v976 = vunpack.c.l.bf16 %v960
      %v977 = vunpack.c.l.bf16 %v961
      %v978 = vunpack.c.l.bf16 %v962
      %v979 = vadd.f32 %v971, %v972
      %v980 = vadd.f32 %v979, %v973
      %v981 = vadd.f32 %v980, %v974
      %v982 = vadd.f32 %v981, %v975
      %v983 = vadd.f32 %v982, %v976
      %v984 = vadd.f32 %v983, %v977
      %v985 = vadd.f32 %v984, %v978
      %v986 = vrot.slane %v985, 4
      %v987 = vadd.f32 %v985, %v986
      %v988 = vrot.slane %v987, 2
      %v989 = vadd.f32 %v987, %v988
      %v990 = vrot.slane %v989, 1
      %v991 = vadd.f32 %v989, %v990
      %v992 = vrcp.pop 64.0
      %v993 = vmul.f32 64.0, %v992
      %v994 = vsub.f32 1.0, %v993
      %v995 = vmul.f32 %v992, %v994
      %v996 = vadd.f32 %v992, %v995
      %vm997 = vweird.f32 %v992
      %v998 = vsel %vm997, %v992, %v996
      %v999 = vmul.f32 %v991, %v998
      %v1000 = vsub.f32 %v971, %v999
      %v1001 = vsub.f32 %v972, %v999
      %v1002 = vsub.f32 %v973, %v999
      %v1003 = vsub.f32 %v974, %v999
      %v1004 = vsub.f32 %v975, %v999
      %v1005 = vsub.f32 %v976, %v999
      %v1006 = vsub.f32 %v977, %v999
      %v1007 = vsub.f32 %v978, %v999
      %1008 = vst [vmem:[%s403] sm:$0x1] %v999
      %v1009 = vmul.f32 %v1000, %v1000
      %v1010 = vmul.f32 %v1001, %v1001
      %v1011 = vmul.f32 %v1002, %v1002
      %v1012 = vmul.f32 %v1003, %v1003
      %v1013 = vmul.f32 %v1004, %v1004
      %v1014 = vmul.f32 %v1005, %v1005
      %v1015 = vmul.f32 %v1006, %v1006
      %v1016 = vmul.f32 %v1007, %v1007
      %v1017 = vadd.f32 %v1009, %v1010
      %v1018 = vadd.f32 %v1017, %v1011
      %v1019 = vadd.f32 %v1018, %v1012
      %v1020 = vadd.f32 %v1019, %v1013
      %v1021 = vadd.f32 %v1020, %v1014
      %v1022 = vadd.f32 %v1021, %v1015
      %v1023 = vadd.f32 %v1022, %v1016
      %v1024 = vrot.slane %v1023, 4
      %v1025 = vadd.f32 %v1023, %v1024
      %v1026 = vrot.slane %v1025, 2
      %v1027 = vadd.f32 %v1025, %v1026
      %v1028 = vrot.slane %v1027, 1
      %v1029 = vadd.f32 %v1027, %v1028
      %1030 = vst [vmem:[%s403 + $0x1] sm:$0x1] %v1029
      %s1031 = smul.u32 8, %s25
      %p1032 = scmp.lt.s32.totalorder %s24, 1
      %s1033 = scalar_select %p1032, %s24, 1
      %p1034 = scmp.lt.s32.totalorder %s1031, 7
      %s1035 = scalar_select %p1034, %s1031, 7
      %s1036 = smul.addr %s1033, 8
      %s1037 = sadd.s32 %s1035, %s1036
      %s1038 = smul.addr %s1037, 4
      %s1039 = scalar_lea.vmem %s6, %s1038
      %s1040 = smul.u32 8, %s25
      %p1041 = scmp.lt.s32.totalorder %s24, 1
      %s1042 = scalar_select %p1041, %s24, 1
      %p1043 = scmp.lt.s32.totalorder %s1040, 7
      %s1044 = scalar_select %p1043, %s1040, 7
      %s1045 = smul.addr %s1042, 8
      %s1046 = sadd.s32 %s1044, %s1045
      %s1047 = smul.addr %s1046, 8
      %s1048 = scalar_lea.vmem %s7, %s1047
      %p1049 = scmp.lt.s32.totalorder %s24, 1
      %s1050 = scalar_select %p1049, %s24, 1
      %p1051 = scmp.lt.s32.totalorder %s25, 0
      %s1052 = scalar_select %p1051, %s25, 0
      %s1053 = sadd.s32 %s1052, %s1050
      %s1054 = smul.addr %s1053, 2
      %s1055 = scalar_lea.vmem %s8, %s1054
      // Predicated region
      $region45: #{block_v2_forward.15} parent=43 // pred_check
        %p1056 = pneg %p190
      $region46: #{block_v2_forward.15} parent=43 // pred_check_branch
        %1058 = sbr.rel (%p1056) target = $region48
      $region47: #{block_v2_forward.15} parent=43 // pred_region
        %s1059 = smul.u32 8, %s25
      $region48: #{block_v2_forward.15} parent=43 // pred_fallthru
        _
      // Predicated region
      $region49: #{block_v2_forward.15} parent=43 // pred_check
        %p1060 = pneg %p218
      $region50: #{block_v2_forward.15} parent=43 // pred_check_branch
        %1062 = sbr.rel (%p1060) target = $region52
      $region51: #{block_v2_forward.15} parent=43 // pred_region
        %s1063 = smul.u32 8, %s25
      $region52: #{block_v2_forward.15} parent=43 // pred_fallthru
        _
      // Predicated region
      $region53: #{block_v2_forward.15} parent=43 // pred_check
        %p1064 = pneg %p246
      $region54: #{block_v2_forward.15} parent=43 // pred_check_branch
        %1066 = sbr.rel (%p1064) target = $region56
      $region55: #{block_v2_forward.15} parent=43 // pred_region
        _
      $region56: #{block_v2_forward.15} parent=43 // pred_fallthru
        _
    $region44: #{block_v2_forward.15} parent=5 // pred_fallthru
      _
    %p1067 = scmp.le.s32.totalorder 2, %s15
    // Predicated region
    $region57: #{block_v2_forward.15} parent=5 // pred_check
      %p1068 = pneg %p1067
    $region58: #{block_v2_forward.15} parent=5 // pred_check_branch
      %1070 = sbr.rel (%p1068) target = $region60
    $region59: #{block_v2_forward.15} parent=5 // pred_region
      %s1071 = ssub.s32 %s15, 2
      // Predicated region
      $region61: #{block_v2_forward.15} parent=59 // pred_check
        %p1072 = pneg %p196
      $region62: #{block_v2_forward.15} parent=59 // pred_check_branch
        %1074 = sbr.rel (%p1072) target = $region64
      $region63: #{block_v2_forward.15} parent=59 // pred_region
        %s1075 = smul.u32 8, %s27
        %p1076 = scmp.lt.s32.totalorder %s26, 1
        %s1077 = scalar_select %p1076, %s26, 1
        %p1078 = scmp.lt.s32.totalorder %s1075, 7
        %s1079 = scalar_select %p1078, %s1075, 7
        %s1080 = smul.addr %s1077, 8
        %s1081 = sadd.s32 %s1079, %s1080
        %s1082 = smul.addr %s1081, 4
        %s1083 = scalar_lea.vmem %s6, %s1082
      $region64: #{block_v2_forward.15} parent=59 // pred_fallthru
        _
      // Predicated region
      $region65: #{block_v2_forward.15} parent=59 // pred_check
        %p1084 = pneg %p224
      $region66: #{block_v2_forward.15} parent=59 // pred_check_branch
        %1086 = sbr.rel (%p1084) target = $region68
      $region67: #{block_v2_forward.15} parent=59 // pred_region
        %s1087 = smul.u32 8, %s27
        %p1088 = scmp.lt.s32.totalorder %s26, 1
        %s1089 = scalar_select %p1088, %s26, 1
        %p1090 = scmp.lt.s32.totalorder %s1087, 7
        %s1091 = scalar_select %p1090, %s1087, 7
        %s1092 = smul.addr %s1089, 8
        %s1093 = sadd.s32 %s1091, %s1092
        %s1094 = smul.addr %s1093, 8
        %s1095 = scalar_lea.vmem %s7, %s1094
      $region68: #{block_v2_forward.15} parent=59 // pred_fallthru
        _
      // Predicated region
      $region69: #{block_v2_forward.15} parent=59 // pred_check
        %p1096 = pneg %p252
      $region70: #{block_v2_forward.15} parent=59 // pred_check_branch
        %1098 = sbr.rel (%p1096) target = $region72
      $region71: #{block_v2_forward.15} parent=59 // pred_region
        %p1099 = scmp.lt.s32.totalorder %s26, 1
        %s1100 = scalar_select %p1099, %s26, 1
        %p1101 = scmp.lt.s32.totalorder %s27, 0
        %s1102 = scalar_select %p1101, %s27, 0
        %s1103 = sadd.s32 %s1102, %s1100
        %s1104 = smul.addr %s1103, 2
        %s1105 = scalar_lea.vmem %s8, %s1104
      $region72: #{block_v2_forward.15} parent=59 // pred_fallthru
        _
    $region60: #{block_v2_forward.15} parent=5 // pred_fallthru
      _
  $region6: #{block_v2_forward.15} parent=0 // loop_footer
    %s19 = sadd.s32 1, %s15
  $region7: #{block_v2_forward.15} parent=0 // loop_footer_branch
    %14 = sbr.rel target = $region3
  $region8: #{block_v2_forward.15} parent=0 // loop_exit
    _

// kernel: block_v2_forward.16
$region0: #{block_v2_forward.16}
  #allocation0 [shape = 'u32[]', space=smem, size = 0x4, offset = 0x4, fixed_abs, tag = 'smem constant byte address 0x4 - core index']
  #allocation1 [shape = 'u32[72,128]{1,0:T(1,128)}', space=vmem, size = 0x9000, scoped, tag = 'internal scratch']
  %s0 = inlined_call_operand.vmem [shape: f32[2,8,8,8], index: 0, kind: input, shape index: {}]
  %s1 = inlined_call_operand.vmem [shape: f32[2,8,8], index: 1, kind: output, shape index: {}]
  %s2 = sld [smem:[#allocation0]]
  $region52: #{block_v2_forward.16} parent=0
    _
  %s4 = ssub.s32 1, %s2
  %s5 = scalar_select 0, %s4, %s2
  loop: start=0, step=1, limit=4
  $region2: #{block_v2_forward.16} parent=0 // loop_pre_header
    _
  $region3: #{block_v2_forward.16} parent=0 // loop_header
    %s7 = sphi 0, %s11
    %p8 = scmp.ge.s32.totalorder %s7, 4
    %s14 = sphi 0, %s26
    %s15 = sphi 0, %s22
    %s16 = sphi 0, %s14
    %s17 = sphi 0, %s15
    %s18 = sphi 0, %s16
    %s19 = sphi 0, %s17
    %s31 = sphi 0, %s33
    %s34 = sphi 0, %s31
    %s35 = sphi 0, %s34
    %s51 = sphi 0, %s35
    %s57 = sphi 0, %s59
    %s60 = sphi 0, %s57
    %s61 = sphi 0, %s60
    %s77 = sphi 0, %s61
  $region4: #{block_v2_forward.16} parent=0 // loop_header_branch
    %10 = sbr.rel (%p8) target = $region8
  $region5: #{block_v2_forward.16} parent=0 // loop_body
    %s12 = ssub.s32 %s7, 1
    %s13 = ssub.s32 %s7, 2
    %s20 = sadd.s32 1, %s15
    %p21 = scmp.ge.s32.totalorder %s20, 1
    %s22 = scalar_select %p21, 0, %s20
    %s23 = sadd.s32 1, %s14
    %s24 = scalar_select %p21, %s23, %s14
    %p25 = scmp.ge.s32.totalorder %s24, 2
    %s26 = scalar_select %p25, 0, %s24
    %s27 = ssub.s32 %s14, %s26
    %s28 = ssub.s32 %s15, %s22
    %s29 = sor.u32 %s27, %s28
    %p30 = scmp.eq.s32.totalorder %s29, 0
    %s32 = sadd.s32 %s31, 1
    %s33 = scalar_select %p30, %s31, %s32
    %p36 = pneg %p30
    %p37 = scmp.eq.s32.totalorder %s7, 1
    %p38 = por %p36, %p37
    %p39 = scmp.ne.s32.totalorder %s31, %s34
    %p40 = scmp.eq.s32.totalorder %s7, 0
    %p41 = por %p39, %p40
    %p42 = scmp.ne.s32.totalorder %s31, %s34
    %p43 = scmp.eq.s32.totalorder %s12, 1
    %p44 = por %p42, %p43
    %p45 = scmp.ne.s32.totalorder %s34, %s35
    %p46 = scmp.eq.s32.totalorder %s12, 0
    %p47 = por %p45, %p46
    %p48 = scmp.ne.s32.totalorder %s34, %s35
    %p49 = scmp.eq.s32.totalorder %s13, 1
    %p50 = por %p48, %p49
    %p52 = scmp.ne.s32.totalorder %s35, %s51
    %p53 = scmp.eq.s32.totalorder %s13, 0
    %p54 = por %p52, %p53
    %s55 = ssub.s32 %s14, %s26
    %p56 = scmp.eq.s32.totalorder %s55, 0
    %s58 = sadd.s32 %s57, 1
    %s59 = scalar_select %p56, %s57, %s58
    %p62 = pneg %p56
    %p63 = scmp.eq.s32.totalorder %s7, 1
    %p64 = por %p62, %p63
    %p65 = scmp.ne.s32.totalorder %s57, %s60
    %p66 = scmp.eq.s32.totalorder %s7, 0
    %p67 = por %p65, %p66
    %p68 = scmp.ne.s32.totalorder %s57, %s60
    %p69 = scmp.eq.s32.totalorder %s12, 1
    %p70 = por %p68, %p69
    %p71 = scmp.ne.s32.totalorder %s60, %s61
    %p72 = scmp.eq.s32.totalorder %s12, 0
    %p73 = por %p71, %p72
    %p74 = scmp.ne.s32.totalorder %s60, %s61
    %p75 = scmp.eq.s32.totalorder %s13, 1
    %p76 = por %p74, %p75
    %p78 = scmp.ne.s32.totalorder %s61, %s77
    %p79 = scmp.eq.s32.totalorder %s13, 0
    %p80 = por %p78, %p79
    %p81 = scmp.le.s32.totalorder 1, %s7
    %p82 = scmp.lt.s32.totalorder %s7, 3
    %p83 = pnand %p81, %p82
    %p84 = pneg %p83
    // Predicated region
    $region9: #{block_v2_forward.16} parent=5 // pred_check
      _
    $region10: #{block_v2_forward.16} parent=5 // pred_check_branch
      %86 = sbr.rel (%p83) target = $region12
    $region11: #{block_v2_forward.16} parent=5 // pred_region
      %s87 = ssub.s32 %s7, 1
    $region12: #{block_v2_forward.16} parent=5 // pred_fallthru
      _
    %p88 = scmp.lt.s32.totalorder %s7, 2
    // Predicated region
    $region13: #{block_v2_forward.16} parent=5 // pred_check
      %p89 = pneg %p88
    $region14: #{block_v2_forward.16} parent=5 // pred_check_branch
      %91 = sbr.rel (%p89) target = $region16
    $region15: #{block_v2_forward.16} parent=5 // pred_region
      // Predicated region
      $region17: #{block_v2_forward.16} parent=15 // pred_check
        %p92 = pneg %p41
      $region18: #{block_v2_forward.16} parent=15 // pred_check_branch
        %94 = sbr.rel (%p92) target = $region20
      $region19: #{block_v2_forward.16} parent=15 // pred_region
        %s95 = smul.u32 8, %s15
        %p96 = scmp.lt.s32.totalorder %s14, 1
        %s97 = scalar_select %p96, %s14, 1
        %p98 = scmp.lt.s32.totalorder %s95, 7
        %s99 = scalar_select %p98, %s95, 7
        %s100 = smul.addr %s97, 8
        %s101 = sadd.s32 %s99, %s100
        %s102 = smul.addr %s101, 8
        %s103 = scalar_lea.vmem %s0, %s102
        %s104 = smul.u32 8, %s15
      $region20: #{block_v2_forward.16} parent=15 // pred_fallthru
        _
    $region16: #{block_v2_forward.16} parent=5 // pred_fallthru
      _
    %p105 = scmp.le.s32.totalorder 1, %s7
    %p106 = scmp.lt.s32.totalorder %s7, 3
    %p107 = pnand %p105, %p106
    %p108 = pneg %p107
    // Predicated region
    $region21: #{block_v2_forward.16} parent=5 // pred_check
      _
    $region22: #{block_v2_forward.16} parent=5 // pred_check_branch
      %110 = sbr.rel (%p107) target = $region24
    $region23: #{block_v2_forward.16} parent=5 // pred_region
      %s111 = ssub.s32 %s7, 1
      %s112 = smul.u32 8, %s17
      %p113 = scmp.lt.s32.totalorder %s16, 1
      %s114 = scalar_select %p113, %s16, 1
      %p115 = scmp.lt.s32.totalorder %s112, 7
      %s116 = scalar_select %p115, %s112, 7
      %s117 = smul.addr %s114, 8
      %s118 = sadd.s32 %s116, %s117
      %s119 = smul.addr %s118, 8
      %s120 = scalar_lea.vmem %s0, %s119
      %p121 = pneg %p47
      %p122 = pneg %p44
      %p123 = pneg %p73
      %p124 = pneg %p70
      %p125 = scmp.lt.s32.totalorder %s16, 1
      %s126 = scalar_select %p125, %s16, 1
      %s127 = smul.addr %s126, 8
      %s128 = scalar_lea.vmem %s1, %s127
      %s129 = smul.u32 8, %s17
      %p130 = scmp.lt.s32.totalorder %s16, 1
      %s131 = scalar_select %p130, %s16, 1
      %p132 = scmp.lt.s32.totalorder %s129, 7
      %s133 = scalar_select %p132, %s129, 7
      %s134 = smul.addr %s131, 8
      %s135 = sadd.s32 %s133, %s134
      %s136 = smul.addr %s135, 8
      %s137 = scalar_lea.vmem %s0, %s136
      %s138 = smul.u32 8, %s17
      %p139 = scmp.lt.s32.totalorder %s16, 1
      %s140 = scalar_select %p139, %s16, 1
      %s141 = smul.addr %s140, 8
      %s142 = scalar_lea.vmem %s1, %s141
      %p143 = scmp.eq.s32.totalorder %s17, 0
      // Predicated region
      $region25: #{block_v2_forward.16} parent=23 // pred_check
        %p144 = pneg %p143
      $region26: #{block_v2_forward.16} parent=23 // pred_check_branch
        %146 = sbr.rel (%p144) target = $region28
      $region27: #{block_v2_forward.16} parent=23 // pred_region
        %vm147 = vcmask 64512
        %148 = vst.msk [vmem:[%s142] sm:$0xff] %vm147, 0.0
      $region28: #{block_v2_forward.16} parent=23 // pred_fallthru
        _
      %v149 = vlaneseq
      %v150 = vshrl.u32 %v149, 7
      loop: start=0, step=1, limit=8
      $region29: #{block_v2_forward.16} parent=23 // loop_pre_header
        _
      $region30: #{block_v2_forward.16} parent=23 // loop_header
        %s152 = sphi 0, %s156
        %p153 = scmp.ge.s32.totalorder %s152, 8
      $region31: #{block_v2_forward.16} parent=23 // loop_header_branch
        %155 = sbr.rel (%p153) target = $region35
      $region32: #{block_v2_forward.16} parent=23 // loop_body
        %s157 = smul.u32 %s152, 8
        %s158 = scalar_lea.vmem %s137, %s157
        %v159 = vld [vmem:[%s158] sm:$0xff]
        %v160 = vmul.f32 %v159, %v159
        %vm161 = vcmask 64512
        %v162 = vsel %vm161, %v160, 0.0
        %v163 = vrot.slane %v162, 4
        %v164 = vadd.f32 %v162, %v163
        %v165 = vrot.slane %v164, 2
        %v166 = vadd.f32 %v164, %v165
        %v167 = vrot.slane %v166, 1
        %v168 = vadd.f32 %v166, %v167
        %vm169 = vcmp.eq.s32.totalorder %v150, 0
        %vm170 = vcmp.eq.s32.totalorder %v150, 1
        %v171 = vsel %vm170, 1.0, 0.0
        %v172 = vsel %vm169, 1, 0
        %vm173 = vcmp.eq.s32.totalorder %v172, 1
        %v174 = vsel %vm173, %v168, %v171
        %v175 = vsel %vm170, 1, 0
        %vm176 = vcmp.eq.s32.totalorder %v175, 1
        %v177 = vsel %vm176, %v168, 0.0
        %v178 = vsel %vm173, 1.0, %v177
        %v179 = vmul.f32 %v159, -2.0
        %180 = vxpose.xlu0.b32.start [1/16] %v159, 128
        %181 = vxpose.xlu0.b32.cont [2/16] %v174, 128
        %182 = vxpose.xlu0.b32.cont [3/16] 0.0, 128
        %183 = vxpose.xlu0.b32.cont [4/16] 0.0, 128
        %184 = vxpose.xlu0.b32.cont [5/16] 0.0, 128
        %185 = vxpose.xlu0.b32.cont [6/16] 0.0, 128
        %186 = vxpose.xlu0.b32.cont [7/16] 0.0, 128
        %187 = vxpose.xlu0.b32.cont [8/16] 0.0, 128
        %188 = vxpose.xlu0.b32.cont [9/16] 0.0, 128
        %189 = vxpose.xlu0.b32.cont [10/16] 0.0, 128
        %190 = vxpose.xlu0.b32.cont [11/16] 0.0, 128
        %191 = vxpose.xlu0.b32.cont [12/16] 0.0, 128
        %192 = vxpose.xlu0.b32.cont [13/16] 0.0, 128
        %193 = vxpose.xlu0.b32.cont [14/16] 0.0, 128
        %194 = vxpose.xlu0.b32.cont [15/16] 0.0, 128
        %195 = vxpose.xlu0.b32.end [16/16] 0.0, 128
        %v196 = vpop.trf.xlu0
        %v197 = vpop.trf.xlu0
        %v198 = vpop.trf.xlu0
        %v199 = vpop.trf.xlu0
        %v200 = vpop.trf.xlu0
        %v201 = vpop.trf.xlu0
        %v202 = vpop.trf.xlu0
        %v203 = vpop.trf.xlu0
        %v204 = vpop.trf.xlu0
        %v205 = vpop.trf.xlu0
        %v206 = vpop.trf.xlu0
        %v207 = vpop.trf.xlu0
        %v208 = vpop.trf.xlu0
        %v209 = vpop.trf.xlu0
        %v210 = vpop.trf.xlu0
        %v211 = vpop.trf.xlu0
        %vm212 = vcmask 130048
        %v214 = vsel %vm212, %v196, 0
        %216 = vmatpush.msra.mxu0 0.0
        %217 = vmatpush.msra.mxu0 0.0
        %218 = vmatpush.msra.mxu0 0.0
        %219 = vmatpush.msra.mxu0 0.0
        %220 = vmatpush.msra.mxu0 0.0
        %221 = vmatpush.msra.mxu0 0.0
        %222 = vmatpush.msra.mxu0 0.0
        %223 = vmatpush.msra.mxu0 0.0
        %224 = vmatpush.msra.mxu0 0.0
        %225 = vmatpush.msra.mxu0 0.0
        %226 = vmatpush.msra.mxu0 0.0
        %227 = vmatpush.msra.mxu0 0.0
        %228 = vmatpush.msra.mxu0 0.0
        %229 = vmatpush.msra.mxu0 0.0
        %230 = vmatpush.msra.mxu0 %v178
        %231 = vmatpush.msra.mxu0 %v179
        %232 = vmatmul.f32.gmra.mxu0 %v214
        %v233 = vpop.f32.mrf.mxu0
        %v234 = vadd.f32 0.0, %v233
        %235 = vdwg.mxu0
        %v236 = vld [vmem:[%s142] sm:$0xff]
        %v237 = vmax.f32 %v234, 0.0
        %v238 = vadd.f32 %v237, 1e-08
        %v239 = vrsqrt.pop %v238
        %v240 = vmul.f32 %v239, %v238
        %v241 = vmul.f32 %v240, %v239
        %v242 = vmul.f32 0.5, %v241
        %v243 = vsub.f32 1.5, %v242
        %v244 = vmul.f32 %v239, %v243
        %v245 = vmul.f32 %v238, %v244
        %vm246 = vcmp.eq.f32.partialorder %v238, inf
        %v247 = vsel %vm246, %v238, %v245
        %vm248 = vcmp.eq.f32.partialorder %v238, 0.0
        %v249 = vand.u32 %v238, 2147483648
        %v250 = vsel %vm248, %v249, %v247
        %v251 = vadd.f32 %v236, %v250
        %252 = vst.msk [vmem:[%s142] sm:$0xff] %vm161, %v251
      $region33: #{block_v2_forward.16} parent=23 // loop_footer
        %s156 = sadd.s32 1, %s152
      $region34: #{block_v2_forward.16} parent=23 // loop_footer_branch
        %151 = sbr.rel target = $region30
      $region35: #{block_v2_forward.16} parent=23 // loop_exit
        _
      // Predicated region
      $region36: #{block_v2_forward.16} parent=23 // pred_check
        %p253 = pneg %p143
      $region37: #{block_v2_forward.16} parent=23 // pred_check_branch
        %255 = sbr.rel (%p253) target = $region39
      $region38: #{block_v2_forward.16} parent=23 // pred_region
        %v256 = vld [vmem:[%s142] sm:$0xff]
        %v257 = vmul.f32 %v256, 0.125
        %vm258 = vcmask 64512
        %259 = vst.msk [vmem:[%s142] sm:$0xff] %vm258, %v257
      $region39: #{block_v2_forward.16} parent=23 // pred_fallthru
        _
      %p260 = scmp.lt.s32.totalorder %s16, 1
      %s261 = scalar_select %p260, %s16, 1
      %s262 = smul.addr %s261, 8
      %s263 = scalar_lea.vmem %s1, %s262
      // Predicated region
      $region40: #{block_v2_forward.16} parent=23 // pred_check
        %p264 = pneg %p70
      $region41: #{block_v2_forward.16} parent=23 // pred_check_branch
        %266 = sbr.rel (%p264) target = $region43
      $region42: #{block_v2_forward.16} parent=23 // pred_region
        _
      $region43: #{block_v2_forward.16} parent=23 // pred_fallthru
        _
    $region24: #{block_v2_forward.16} parent=5 // pred_fallthru
      _
    %p267 = scmp.le.s32.totalorder 2, %s7
    // Predicated region
    $region44: #{block_v2_forward.16} parent=5 // pred_check
      %p268 = pneg %p267
    $region45: #{block_v2_forward.16} parent=5 // pred_check_branch
      %270 = sbr.rel (%p268) target = $region47
    $region46: #{block_v2_forward.16} parent=5 // pred_region
      %s271 = ssub.s32 %s7, 2
      // Predicated region
      $region48: #{block_v2_forward.16} parent=46 // pred_check
        %p272 = pneg %p76
      $region49: #{block_v2_forward.16} parent=46 // pred_check_branch
        %274 = sbr.rel (%p272) target = $region51
      $region50: #{block_v2_forward.16} parent=46 // pred_region
        %p275 = scmp.lt.s32.totalorder %s18, 1
        %s276 = scalar_select %p275, %s18, 1
        %s277 = smul.addr %s276, 8
        %s278 = scalar_lea.vmem %s1, %s277
      $region51: #{block_v2_forward.16} parent=46 // pred_fallthru
        _
    $region47: #{block_v2_forward.16} parent=5 // pred_fallthru
      _
  $region6: #{block_v2_forward.16} parent=0 // loop_footer
    %s11 = sadd.s32 1, %s7
  $region7: #{block_v2_forward.16} parent=0 // loop_footer_branch
    %6 = sbr.rel target = $region3
  $region8: #{block_v2_forward.16} parent=0 // loop_exit
    _

// kernel: squeeze.26
$region0: #{squeeze.26}
  %s0 = inlined_call_operand.vmem [shape: f32[2,64], index: 0, kind: input, shape index: {}]
  %s1 = inlined_call_operand.hbm [shape: f32[2,8,8], index: 1, kind: output, shape index: {}]
  $region1: #{squeeze.26} parent=0
    #allocation0 [shape = 'u8[8192]{0}', space=vmem, size = 0x2000, scoped, tag = 'operand span for operand 1']
    #allocation1 [shape = 's32[1]{0}', space=sflag, size = 0x4, scoped, tag = 'scoped memory for squeeze.26']
    #allocation2 [shape = 'u8[4096]{0}', space=vmem, size = 0x1000, scoped, tag = 'scoped mem for input reshape']
    %2 = vsyncpa [#allocation1], 0
    %s4 = ssub.s32 4, 1
    %v5 = vld [vmem:[%s0] sm:%s4]
    %6 = vst [vmem:[#allocation2] sm:%s4] %v5
    %v7 = vld [vmem:[#allocation2] sm:$0x3]
    %vm8 = vcmask 64512
    %9 = vst.msk [vmem:[#allocation0] ss:$8 sm:$0x3] %vm8, %v7
    %v10 = vld [vmem:[#allocation2] sm:$0x3]
    %11 = vrot.lane.b32.xlu0 %v10, 120
    %v12 = vpop.permute.xlu0 %11
    %vm13 = vcmask 64512
    %s14 = scalar_lea.vmem [#allocation0], 1
    %15 = vst.msk [vmem:[%s14] ss:$8 sm:$0x3] %vm13, %v12
    %v16 = vld [vmem:[#allocation2] sm:$0x3]
    %17 = vrot.lane.b32.xlu0 %v16, 112
    %v18 = vpop.permute.xlu0 %17
    %vm19 = vcmask 64512
    %s20 = scalar_lea.vmem [#allocation0], 2
    %21 = vst.msk [vmem:[%s20] ss:$8 sm:$0x3] %vm19, %v18
    %v22 = vld [vmem:[#allocation2] sm:$0x3]
    %23 = vrot.lane.b32.xlu0 %v22, 104
    %v24 = vpop.permute.xlu0 %23
    %vm25 = vcmask 64512
    %s26 = scalar_lea.vmem [#allocation0], 3
    %27 = vst.msk [vmem:[%s26] ss:$8 sm:$0x3] %vm25, %v24
    %v28 = vld [vmem:[#allocation2] sm:$0x3]
    %29 = vrot.lane.b32.xlu0 %v28, 96
    %v30 = vpop.permute.xlu0 %29
    %vm31 = vcmask 64512
    %s32 = scalar_lea.vmem [#allocation0], 4
    %33 = vst.msk [vmem:[%s32] ss:$8 sm:$0x3] %vm31, %v30
    %v34 = vld [vmem:[#allocation2] sm:$0x3]
    %35 = vrot.lane.b32.xlu0 %v34, 88
    %v36 = vpop.permute.xlu0 %35
    %vm37 = vcmask 64512
    %s38 = scalar_lea.vmem [#allocation0], 5
    %39 = vst.msk [vmem:[%s38] ss:$8 sm:$0x3] %vm37, %v36
    %v40 = vld [vmem:[#allocation2] sm:$0x3]
    %41 = vrot.lane.b32.xlu0 %v40, 80
    %v42 = vpop.permute.xlu0 %41
    %vm43 = vcmask 64512
    %s44 = scalar_lea.vmem [#allocation0], 6
    %45 = vst.msk [vmem:[%s44] ss:$8 sm:$0x3] %vm43, %v42
    %v46 = vld [vmem:[#allocation2] sm:$0x3]
    %47 = vrot.lane.b32.xlu0 %v46, 72
    %v48 = vpop.permute.xlu0 %47
    %vm49 = vcmask 64512
    %s50 = scalar_lea.vmem [#allocation0], 7
    %51 = vst.msk [vmem:[%s50] ss:$8 sm:$0x3] %vm49, %v48
    %53 = vsyncadd [#allocation1], 0
    %s55 = sshll.u32 [#allocation0], 4
    %s56 = int_to_ptr.vmem [resolvable:$true] %s55
    %s57 = sshll.u32 %s1, 4
    %s58 = int_to_ptr.hbm [resolvable:$true] %s57
    %60 = dma.vmem_to_hbm [thread:$0]  %s56, 256, %s58, [#allocation1]
    %62 = dma.done [#allocation1], 256
    %63 = vsyncpa [#allocation1], 1

// kernel: block_v2_forward.17
$region0: #{block_v2_forward.17}
  #allocation0 [shape = 'u32[]', space=smem, size = 0x4, offset = 0x4, fixed_abs, tag = 'smem constant byte address 0x4 - core index']
  #allocation1 [shape = 'u32[72,128]{1,0:T(1,128)}', space=vmem, size = 0x9000, scoped, tag = 'internal scratch']
  %s0 = inlined_call_operand.vmem [shape: bf16[2,64,128], index: 0, kind: input, shape index: {}]
  %s1 = inlined_call_operand.vmem [shape: f32[2,2,128], index: 1, kind: input, shape index: {}]
  %s2 = inlined_call_operand.vmem [shape: f32[2,64,1], index: 2, kind: input, shape index: {}]
  %s3 = inlined_call_operand.vmem [shape: bf16[128,256], index: 3, kind: input, shape index: {}]
  %s4 = inlined_call_operand.vmem [shape: f32[1,256], index: 4, kind: input, shape index: {}]
  %s5 = inlined_call_operand.vmem [shape: f32[1,256], index: 5, kind: input, shape index: {}]
  %s6 = inlined_call_operand.vmem [shape: bf16[256,128], index: 6, kind: input, shape index: {}]
  %s7 = inlined_call_operand.vmem [shape: f32[1,128], index: 7, kind: input, shape index: {}]
  %s8 = inlined_call_operand.vmem [shape: bf16[2,64,128], index: 8, kind: output, shape index: {0}]
  %s9 = inlined_call_operand.vmem [shape: f32[2,64,8], index: 9, kind: output, shape index: {1}]
  %s10 = inlined_call_operand.vmem [shape: f32[2,1,2,128], index: 10, kind: output, shape index: {2}]
  %11 = xla_tuple %s8, %s9, %s10
  %s12 = sld [smem:[#allocation0]]
  $region81: #{block_v2_forward.17} parent=0
    _
  %s14 = ssub.s32 1, %s12
  %s15 = scalar_select 0, %s14, %s12
  loop: start=0, step=1, limit=4
  $region2: #{block_v2_forward.17} parent=0 // loop_pre_header
    _
  $region3: #{block_v2_forward.17} parent=0 // loop_header
    %s17 = sphi 0, %s21
    %p18 = scmp.ge.s32.totalorder %s17, 4
    %s24 = sphi 0, %s36
    %s25 = sphi 0, %s32
    %s26 = sphi 0, %s24
    %s27 = sphi 0, %s25
    %s28 = sphi 0, %s26
    %s29 = sphi 0, %s27
    %s41 = sphi 0, %s43
    %s44 = sphi 0, %s41
    %s45 = sphi 0, %s44
    %s61 = sphi 0, %s45
    %s67 = sphi 0, %s69
    %s70 = sphi 0, %s67
    %s71 = sphi 0, %s70
    %s87 = sphi 0, %s71
    %s95 = sphi 0, %s97
    %s98 = sphi 0, %s95
    %s99 = sphi 0, %s98
    %s115 = sphi 0, %s99
    %s119 = sphi 0, %s119
    %s121 = sphi 0, %s119
    %s122 = sphi 0, %s121
    %s136 = sphi 0, %s122
    %s140 = sphi 0, %s140
    %s142 = sphi 0, %s140
    %s143 = sphi 0, %s142
    %s157 = sphi 0, %s143
    %s161 = sphi 0, %s161
    %s163 = sphi 0, %s161
    %s164 = sphi 0, %s163
    %s178 = sphi 0, %s164
    %s182 = sphi 0, %s182
    %s184 = sphi 0, %s182
    %s185 = sphi 0, %s184
    %s199 = sphi 0, %s185
    %s203 = sphi 0, %s203
    %s205 = sphi 0, %s203
    %s206 = sphi 0, %s205
    %s220 = sphi 0, %s206
    %s228 = sphi 0, %s230
    %s231 = sphi 0, %s228
    %s232 = sphi 0, %s231
    %s248 = sphi 0, %s232
    %s256 = sphi 0, %s258
    %s259 = sphi 0, %s256
    %s260 = sphi 0, %s259
    %s276 = sphi 0, %s260
    %s284 = sphi 0, %s286
    %s287 = sphi 0, %s284
    %s288 = sphi 0, %s287
    %s304 = sphi 0, %s288
  $region4: #{block_v2_forward.17} parent=0 // loop_header_branch
    %20 = sbr.rel (%p18) target = $region8
  $region5: #{block_v2_forward.17} parent=0 // loop_body
    %s22 = ssub.s32 %s17, 1
    %s23 = ssub.s32 %s17, 2
    %s30 = sadd.s32 1, %s25
    %p31 = scmp.ge.s32.totalorder %s30, 1
    %s32 = scalar_select %p31, 0, %s30
    %s33 = sadd.s32 1, %s24
    %s34 = scalar_select %p31, %s33, %s24
    %p35 = scmp.ge.s32.totalorder %s34, 2
    %s36 = scalar_select %p35, 0, %s34
    %s37 = ssub.s32 %s24, %s36
    %s38 = ssub.s32 %s25, %s32
    %s39 = sor.u32 %s37, %s38
    %p40 = scmp.eq.s32.totalorder %s39, 0
    %s42 = sadd.s32 %s41, 1
    %s43 = scalar_select %p40, %s41, %s42
    %p46 = pneg %p40
    %p47 = scmp.eq.s32.totalorder %s17, 1
    %p48 = por %p46, %p47
    %p49 = scmp.ne.s32.totalorder %s41, %s44
    %p50 = scmp.eq.s32.totalorder %s17, 0
    %p51 = por %p49, %p50
    %p52 = scmp.ne.s32.totalorder %s41, %s44
    %p53 = scmp.eq.s32.totalorder %s22, 1
    %p54 = por %p52, %p53
    %p55 = scmp.ne.s32.totalorder %s44, %s45
    %p56 = scmp.eq.s32.totalorder %s22, 0
    %p57 = por %p55, %p56
    %p58 = scmp.ne.s32.totalorder %s44, %s45
    %p59 = scmp.eq.s32.totalorder %s23, 1
    %p60 = por %p58, %p59
    %p62 = scmp.ne.s32.totalorder %s45, %s61
    %p63 = scmp.eq.s32.totalorder %s23, 0
    %p64 = por %p62, %p63
    %s65 = ssub.s32 %s24, %s36
    %p66 = scmp.eq.s32.totalorder %s65, 0
    %s68 = sadd.s32 %s67, 1
    %s69 = scalar_select %p66, %s67, %s68
    %p72 = pneg %p66
    %p73 = scmp.eq.s32.totalorder %s17, 1
    %p74 = por %p72, %p73
    %p75 = scmp.ne.s32.totalorder %s67, %s70
    %p76 = scmp.eq.s32.totalorder %s17, 0
    %p77 = por %p75, %p76
    %p78 = scmp.ne.s32.totalorder %s67, %s70
    %p79 = scmp.eq.s32.totalorder %s22, 1
    %p80 = por %p78, %p79
    %p81 = scmp.ne.s32.totalorder %s70, %s71
    %p82 = scmp.eq.s32.totalorder %s22, 0
    %p83 = por %p81, %p82
    %p84 = scmp.ne.s32.totalorder %s70, %s71
    %p85 = scmp.eq.s32.totalorder %s23, 1
    %p86 = por %p84, %p85
    %p88 = scmp.ne.s32.totalorder %s71, %s87
    %p89 = scmp.eq.s32.totalorder %s23, 0
    %p90 = por %p88, %p89
    %s91 = ssub.s32 %s24, %s36
    %s92 = ssub.s32 %s25, %s32
    %s93 = sor.u32 %s91, %s92
    %p94 = scmp.eq.s32.totalorder %s93, 0
    %s96 = sadd.s32 %s95, 1
    %s97 = scalar_select %p94, %s95, %s96
    %p100 = pneg %p94
    %p101 = scmp.eq.s32.totalorder %s17, 1
    %p102 = por %p100, %p101
    %p103 = scmp.ne.s32.totalorder %s95, %s98
    %p104 = scmp.eq.s32.totalorder %s17, 0
    %p105 = por %p103, %p104
    %p106 = scmp.ne.s32.totalorder %s95, %s98
    %p107 = scmp.eq.s32.totalorder %s22, 1
    %p108 = por %p106, %p107
    %p109 = scmp.ne.s32.totalorder %s98, %s99
    %p110 = scmp.eq.s32.totalorder %s22, 0
    %p111 = por %p109, %p110
    %p112 = scmp.ne.s32.totalorder %s98, %s99
    %p113 = scmp.eq.s32.totalorder %s23, 1
    %p114 = por %p112, %p113
    %p116 = scmp.ne.s32.totalorder %s99, %s115
    %p117 = scmp.eq.s32.totalorder %s23, 0
    %p118 = por %p116, %p117
    %s120 = sadd.s32 %s119, 1
    %p123 = scmp.eq.s32.totalorder %s17, 1
    %p124 = scmp.ne.s32.totalorder %s119, %s121
    %p125 = scmp.eq.s32.totalorder %s17, 0
    %p126 = por %p124, %p125
    %p127 = scmp.ne.s32.totalorder %s119, %s121
    %p128 = scmp.eq.s32.totalorder %s22, 1
    %p129 = por %p127, %p128
    %p130 = scmp.ne.s32.totalorder %s121, %s122
    %p131 = scmp.eq.s32.totalorder %s22, 0
    %p132 = por %p130, %p131
    %p133 = scmp.ne.s32.totalorder %s121, %s122
    %p134 = scmp.eq.s32.totalorder %s23, 1
    %p135 = por %p133, %p134
    %p137 = scmp.ne.s32.totalorder %s122, %s136
    %p138 = scmp.eq.s32.totalorder %s23, 0
    %p139 = por %p137, %p138
    %s141 = sadd.s32 %s140, 1
    %p144 = scmp.eq.s32.totalorder %s17, 1
    %p145 = scmp.ne.s32.totalorder %s140, %s142
    %p146 = scmp.eq.s32.totalorder %s17, 0
    %p147 = por %p145, %p146
    %p148 = scmp.ne.s32.totalorder %s140, %s142
    %p149 = scmp.eq.s32.totalorder %s22, 1
    %p150 = por %p148, %p149
    %p151 = scmp.ne.s32.totalorder %s142, %s143
    %p152 = scmp.eq.s32.totalorder %s22, 0
    %p153 = por %p151, %p152
    %p154 = scmp.ne.s32.totalorder %s142, %s143
    %p155 = scmp.eq.s32.totalorder %s23, 1
    %p156 = por %p154, %p155
    %p158 = scmp.ne.s32.totalorder %s143, %s157
    %p159 = scmp.eq.s32.totalorder %s23, 0
    %p160 = por %p158, %p159
    %s162 = sadd.s32 %s161, 1
    %p165 = scmp.eq.s32.totalorder %s17, 1
    %p166 = scmp.ne.s32.totalorder %s161, %s163
    %p167 = scmp.eq.s32.totalorder %s17, 0
    %p168 = por %p166, %p167
    %p169 = scmp.ne.s32.totalorder %s161, %s163
    %p170 = scmp.eq.s32.totalorder %s22, 1
    %p171 = por %p169, %p170
    %p172 = scmp.ne.s32.totalorder %s163, %s164
    %p173 = scmp.eq.s32.totalorder %s22, 0
    %p174 = por %p172, %p173
    %p175 = scmp.ne.s32.totalorder %s163, %s164
    %p176 = scmp.eq.s32.totalorder %s23, 1
    %p177 = por %p175, %p176
    %p179 = scmp.ne.s32.totalorder %s164, %s178
    %p180 = scmp.eq.s32.totalorder %s23, 0
    %p181 = por %p179, %p180
    %s183 = sadd.s32 %s182, 1
    %p186 = scmp.eq.s32.totalorder %s17, 1
    %p187 = scmp.ne.s32.totalorder %s182, %s184
    %p188 = scmp.eq.s32.totalorder %s17, 0
    %p189 = por %p187, %p188
    %p190 = scmp.ne.s32.totalorder %s182, %s184
    %p191 = scmp.eq.s32.totalorder %s22, 1
    %p192 = por %p190, %p191
    %p193 = scmp.ne.s32.totalorder %s184, %s185
    %p194 = scmp.eq.s32.totalorder %s22, 0
    %p195 = por %p193, %p194
    %p196 = scmp.ne.s32.totalorder %s184, %s185
    %p197 = scmp.eq.s32.totalorder %s23, 1
    %p198 = por %p196, %p197
    %p200 = scmp.ne.s32.totalorder %s185, %s199
    %p201 = scmp.eq.s32.totalorder %s23, 0
    %p202 = por %p200, %p201
    %s204 = sadd.s32 %s203, 1
    %p207 = scmp.eq.s32.totalorder %s17, 1
    %p208 = scmp.ne.s32.totalorder %s203, %s205
    %p209 = scmp.eq.s32.totalorder %s17, 0
    %p210 = por %p208, %p209
    %p211 = scmp.ne.s32.totalorder %s203, %s205
    %p212 = scmp.eq.s32.totalorder %s22, 1
    %p213 = por %p211, %p212
    %p214 = scmp.ne.s32.totalorder %s205, %s206
    %p215 = scmp.eq.s32.totalorder %s22, 0
    %p216 = por %p214, %p215
    %p217 = scmp.ne.s32.totalorder %s205, %s206
    %p218 = scmp.eq.s32.totalorder %s23, 1
    %p219 = por %p217, %p218
    %p221 = scmp.ne.s32.totalorder %s206, %s220
    %p222 = scmp.eq.s32.totalorder %s23, 0
    %p223 = por %p221, %p222
    %s224 = ssub.s32 %s24, %s36
    %s225 = ssub.s32 %s25, %s32
    %s226 = sor.u32 %s224, %s225
    %p227 = scmp.eq.s32.totalorder %s226, 0
    %s229 = sadd.s32 %s228, 1
    %s230 = scalar_select %p227, %s228, %s229
    %p233 = pneg %p227
    %p234 = scmp.eq.s32.totalorder %s17, 1
    %p235 = por %p233, %p234
    %p236 = scmp.ne.s32.totalorder %s228, %s231
    %p237 = scmp.eq.s32.totalorder %s17, 0
    %p238 = por %p236, %p237
    %p239 = scmp.ne.s32.totalorder %s228, %s231
    %p240 = scmp.eq.s32.totalorder %s22, 1
    %p241 = por %p239, %p240
    %p242 = scmp.ne.s32.totalorder %s231, %s232
    %p243 = scmp.eq.s32.totalorder %s22, 0
    %p244 = por %p242, %p243
    %p245 = scmp.ne.s32.totalorder %s231, %s232
    %p246 = scmp.eq.s32.totalorder %s23, 1
    %p247 = por %p245, %p246
    %p249 = scmp.ne.s32.totalorder %s232, %s248
    %p250 = scmp.eq.s32.totalorder %s23, 0
    %p251 = por %p249, %p250
    %s252 = ssub.s32 %s24, %s36
    %s253 = ssub.s32 %s25, %s32
    %s254 = sor.u32 %s252, %s253
    %p255 = scmp.eq.s32.totalorder %s254, 0
    %s257 = sadd.s32 %s256, 1
    %s258 = scalar_select %p255, %s256, %s257
    %p261 = pneg %p255
    %p262 = scmp.eq.s32.totalorder %s17, 1
    %p263 = por %p261, %p262
    %p264 = scmp.ne.s32.totalorder %s256, %s259
    %p265 = scmp.eq.s32.totalorder %s17, 0
    %p266 = por %p264, %p265
    %p267 = scmp.ne.s32.totalorder %s256, %s259
    %p268 = scmp.eq.s32.totalorder %s22, 1
    %p269 = por %p267, %p268
    %p270 = scmp.ne.s32.totalorder %s259, %s260
    %p271 = scmp.eq.s32.totalorder %s22, 0
    %p272 = por %p270, %p271
    %p273 = scmp.ne.s32.totalorder %s259, %s260
    %p274 = scmp.eq.s32.totalorder %s23, 1
    %p275 = por %p273, %p274
    %p277 = scmp.ne.s32.totalorder %s260, %s276
    %p278 = scmp.eq.s32.totalorder %s23, 0
    %p279 = por %p277, %p278
    %s280 = ssub.s32 %s24, %s36
    %s281 = ssub.s32 %s25, %s32
    %s282 = sor.u32 %s280, %s281
    %p283 = scmp.eq.s32.totalorder %s282, 0
    %s285 = sadd.s32 %s284, 1
    %s286 = scalar_select %p283, %s284, %s285
    %p289 = pneg %p283
    %p290 = scmp.eq.s32.totalorder %s17, 1
    %p291 = por %p289, %p290
    %p292 = scmp.ne.s32.totalorder %s284, %s287
    %p293 = scmp.eq.s32.totalorder %s17, 0
    %p294 = por %p292, %p293
    %p295 = scmp.ne.s32.totalorder %s284, %s287
    %p296 = scmp.eq.s32.totalorder %s22, 1
    %p297 = por %p295, %p296
    %p298 = scmp.ne.s32.totalorder %s287, %s288
    %p299 = scmp.eq.s32.totalorder %s22, 0
    %p300 = por %p298, %p299
    %p301 = scmp.ne.s32.totalorder %s287, %s288
    %p302 = scmp.eq.s32.totalorder %s23, 1
    %p303 = por %p301, %p302
    %p305 = scmp.ne.s32.totalorder %s288, %s304
    %p306 = scmp.eq.s32.totalorder %s23, 0
    %p307 = por %p305, %p306
    %p308 = scmp.le.s32.totalorder 1, %s17
    %p309 = scmp.lt.s32.totalorder %s17, 3
    %p310 = pnand %p308, %p309
    %p311 = pneg %p310
    // Predicated region
    $region9: #{block_v2_forward.17} parent=5 // pred_check
      _
    $region10: #{block_v2_forward.17} parent=5 // pred_check_branch
      %313 = sbr.rel (%p310) target = $region12
    $region11: #{block_v2_forward.17} parent=5 // pred_region
      %s314 = ssub.s32 %s17, 1
      // Predicated region
      $region13: #{block_v2_forward.17} parent=11 // pred_check
        %p315 = pneg %p132
      $region14: #{block_v2_forward.17} parent=11 // pred_check_branch
        %317 = sbr.rel (%p315) target = $region16
      $region15: #{block_v2_forward.17} parent=11 // pred_region
        _
      $region16: #{block_v2_forward.17} parent=11 // pred_fallthru
        _
      // Predicated region
      $region17: #{block_v2_forward.17} parent=11 // pred_check
        %p318 = pneg %p153
      $region18: #{block_v2_forward.17} parent=11 // pred_check_branch
        %320 = sbr.rel (%p318) target = $region20
      $region19: #{block_v2_forward.17} parent=11 // pred_region
        _
      $region20: #{block_v2_forward.17} parent=11 // pred_fallthru
        _
      // Predicated region
      $region21: #{block_v2_forward.17} parent=11 // pred_check
        %p321 = pneg %p174
      $region22: #{block_v2_forward.17} parent=11 // pred_check_branch
        %323 = sbr.rel (%p321) target = $region24
      $region23: #{block_v2_forward.17} parent=11 // pred_region
        _
      $region24: #{block_v2_forward.17} parent=11 // pred_fallthru
        _
      // Predicated region
      $region25: #{block_v2_forward.17} parent=11 // pred_check
        %p324 = pneg %p195
      $region26: #{block_v2_forward.17} parent=11 // pred_check_branch
        %326 = sbr.rel (%p324) target = $region28
      $region27: #{block_v2_forward.17} parent=11 // pred_region
        _
      $region28: #{block_v2_forward.17} parent=11 // pred_fallthru
        _
      // Predicated region
      $region29: #{block_v2_forward.17} parent=11 // pred_check
        %p327 = pneg %p216
      $region30: #{block_v2_forward.17} parent=11 // pred_check_branch
        %329 = sbr.rel (%p327) target = $region32
      $region31: #{block_v2_forward.17} parent=11 // pred_region
        _
      $region32: #{block_v2_forward.17} parent=11 // pred_fallthru
        _
    $region12: #{block_v2_forward.17} parent=5 // pred_fallthru
      _
    %p330 = scmp.lt.s32.totalorder %s17, 2
    // Predicated region
    $region33: #{block_v2_forward.17} parent=5 // pred_check
      %p331 = pneg %p330
    $region34: #{block_v2_forward.17} parent=5 // pred_check_branch
      %333 = sbr.rel (%p331) target = $region36
    $region35: #{block_v2_forward.17} parent=5 // pred_region
      // Predicated region
      $region37: #{block_v2_forward.17} parent=35 // pred_check
        %p334 = pneg %p51
      $region38: #{block_v2_forward.17} parent=35 // pred_check_branch
        %336 = sbr.rel (%p334) target = $region40
      $region39: #{block_v2_forward.17} parent=35 // pred_region
        %s337 = smul.u32 8, %s25
        %p338 = scmp.lt.s32.totalorder %s24, 1
        %s339 = scalar_select %p338, %s24, 1
        %p340 = scmp.lt.s32.totalorder %s337, 7
        %s341 = scalar_select %p340, %s337, 7
        %s342 = smul.addr %s339, 8
        %s343 = sadd.s32 %s341, %s342
        %s344 = smul.addr %s343, 4
        %s345 = scalar_lea.vmem %s0, %s344
        %s346 = smul.u32 8, %s25
      $region40: #{block_v2_forward.17} parent=35 // pred_fallthru
        _
      // Predicated region
      $region41: #{block_v2_forward.17} parent=35 // pred_check
        %p347 = pneg %p77
      $region42: #{block_v2_forward.17} parent=35 // pred_check_branch
        %349 = sbr.rel (%p347) target = $region44
      $region43: #{block_v2_forward.17} parent=35 // pred_region
        %p350 = scmp.lt.s32.totalorder %s24, 1
        %s351 = scalar_select %p350, %s24, 1
        %s352 = smul.addr %s351, 2
        %s353 = scalar_lea.vmem %s1, %s352
      $region44: #{block_v2_forward.17} parent=35 // pred_fallthru
        _
      // Predicated region
      $region45: #{block_v2_forward.17} parent=35 // pred_check
        %p354 = pneg %p105
      $region46: #{block_v2_forward.17} parent=35 // pred_check_branch
        %356 = sbr.rel (%p354) target = $region48
      $region47: #{block_v2_forward.17} parent=35 // pred_region
        %s357 = smul.u32 8, %s25
        %p358 = scmp.lt.s32.totalorder %s24, 1
        %s359 = scalar_select %p358, %s24, 1
        %p360 = scmp.lt.s32.totalorder %s357, 7
        %s361 = scalar_select %p360, %s357, 7
        %s362 = smul.addr %s359, 8
        %s363 = sadd.s32 %s361, %s362
        %s364 = smul.addr %s363, 8
        %s365 = scalar_lea.vmem %s2, %s364
        %s366 = smul.u32 8, %s25
      $region48: #{block_v2_forward.17} parent=35 // pred_fallthru
        _
    $region36: #{block_v2_forward.17} parent=5 // pred_fallthru
      _
    %p367 = scmp.le.s32.totalorder 1, %s17
    %p368 = scmp.lt.s32.totalorder %s17, 3
    %p369 = pnand %p367, %p368
    %p370 = pneg %p369
    // Predicated region
    $region49: #{block_v2_forward.17} parent=5 // pred_check
      _
    $region50: #{block_v2_forward.17} parent=5 // pred_check_branch
      %372 = sbr.rel (%p369) target = $region52
    $region51: #{block_v2_forward.17} parent=5 // pred_region
      %s373 = ssub.s32 %s17, 1
      %s374 = smul.u32 8, %s27
      %p375 = scmp.lt.s32.totalorder %s26, 1
      %s376 = scalar_select %p375, %s26, 1
      %p377 = scmp.lt.s32.totalorder %s374, 7
      %s378 = scalar_select %p377, %s374, 7
      %s379 = smul.addr %s376, 8
      %s380 = sadd.s32 %s378, %s379
      %s381 = smul.addr %s380, 4
      %s382 = scalar_lea.vmem %s0, %s381
      %p383 = pneg %p57
      %p384 = pneg %p54
      %p385 = scmp.lt.s32.totalorder %s26, 1
      %s386 = scalar_select %p385, %s26, 1
      %s387 = smul.addr %s386, 2
      %s388 = scalar_lea.vmem %s1, %s387
      %p389 = pneg %p83
      %p390 = pneg %p80
      %s391 = smul.u32 8, %s27
      %p392 = scmp.lt.s32.totalorder %s26, 1
      %s393 = scalar_select %p392, %s26, 1
      %p394 = scmp.lt.s32.totalorder %s391, 7
      %s395 = scalar_select %p394, %s391, 7
      %s396 = smul.addr %s393, 8
      %s397 = sadd.s32 %s395, %s396
      %s398 = smul.addr %s397, 8
      %s399 = scalar_lea.vmem %s2, %s398
      %p400 = pneg %p111
      %p401 = pneg %p108
      %p402 = pneg %p132
      %p403 = pneg %p129
      %p404 = pneg %p153
      %p405 = pneg %p150
      %p406 = pneg %p174
      %p407 = pneg %p171
      %p408 = pneg %p195
      %p409 = pneg %p192
      %p410 = pneg %p216
      %p411 = pneg %p213
      %p412 = pneg %p244
      %p413 = pneg %p241
      %s414 = smul.u32 8, %s27
      %p415 = scmp.lt.s32.totalorder %s26, 1
      %s416 = scalar_select %p415, %s26, 1
      %p417 = scmp.lt.s32.totalorder %s414, 7
      %s418 = scalar_select %p417, %s414, 7
      %s419 = smul.addr %s416, 8
      %s420 = sadd.s32 %s418, %s419
      %s421 = smul.addr %s420, 4
      %s422 = scalar_lea.vmem %s8, %s421
      %p423 = pneg %p272
      %p424 = pneg %p269
      %s425 = smul.u32 8, %s27
      %p426 = scmp.lt.s32.totalorder %s26, 1
      %s427 = scalar_select %p426, %s26, 1
      %p428 = scmp.lt.s32.totalorder %s425, 7
      %s429 = scalar_select %p428, %s425, 7
      %s430 = smul.addr %s427, 8
      %s431 = sadd.s32 %s429, %s430
      %s432 = smul.addr %s431, 8
      %s433 = scalar_lea.vmem %s9, %s432
      %p434 = pneg %p300
      %p435 = pneg %p297
      %p436 = scmp.lt.s32.totalorder %s26, 1
      %s437 = scalar_select %p436, %s26, 1
      %p438 = scmp.lt.s32.totalorder %s27, 0
      %s439 = scalar_select %p438, %s27, 0
      %s440 = sadd.s32 %s439, %s437
      %s441 = smul.addr %s440, 2
      %s442 = scalar_lea.vmem %s10, %s441
      %s443 = smul.u32 8, %s27
      %p444 = scmp.lt.s32.totalorder %s26, 1
      %s445 = scalar_select %p444, %s26, 1
      %p446 = scmp.lt.s32.totalorder %s443, 7
      %s447 = scalar_select %p446, %s443, 7
      %s448 = smul.addr %s445, 8
      %s449 = sadd.s32 %s447, %s448
      %s450 = smul.addr %s449, 4
      %s451 = scalar_lea.vmem %s0, %s450
      %s452 = smul.u32 8, %s27
      %p453 = scmp.lt.s32.totalorder %s26, 1
      %s454 = scalar_select %p453, %s26, 1
      %s455 = smul.addr %s454, 2
      %s456 = scalar_lea.vmem %s1, %s455
      %s457 = smul.u32 8, %s27
      %p458 = scmp.lt.s32.totalorder %s26, 1
      %s459 = scalar_select %p458, %s26, 1
      %p460 = scmp.lt.s32.totalorder %s457, 7
      %s461 = scalar_select %p460, %s457, 7
      %s462 = smul.addr %s459, 8
      %s463 = sadd.s32 %s461, %s462
      %s464 = smul.addr %s463, 8
      %s465 = scalar_lea.vmem %s2, %s464
      %s466 = smul.u32 8, %s27
      %s467 = smul.u32 8, %s27
      %p468 = scmp.lt.s32.totalorder %s26, 1
      %s469 = scalar_select %p468, %s26, 1
      %p470 = scmp.lt.s32.totalorder %s467, 7
      %s471 = scalar_select %p470, %s467, 7
      %s472 = smul.addr %s469, 8
      %s473 = sadd.s32 %s471, %s472
      %s474 = smul.addr %s473, 4
      %s475 = scalar_lea.vmem %s8, %s474
      %s476 = smul.u32 8, %s27
      %s477 = smul.u32 8, %s27
      %p478 = scmp.lt.s32.totalorder %s26, 1
      %s479 = scalar_select %p478, %s26, 1
      %p480 = scmp.lt.s32.totalorder %s477, 7
      %s481 = scalar_select %p480, %s477, 7
      %s482 = smul.addr %s479, 8
      %s483 = sadd.s32 %s481, %s482
      %s484 = smul.addr %s483, 8
      %s485 = scalar_lea.vmem %s9, %s484
      %s486 = smul.u32 8, %s27
      %p487 = scmp.lt.s32.totalorder %s26, 1
      %s488 = scalar_select %p487, %s26, 1
      %p489 = scmp.lt.s32.totalorder %s27, 0
      %s490 = scalar_select %p489, %s27, 0
      %s491 = sadd.s32 %s490, %s488
      %s492 = smul.addr %s491, 2
      %s493 = scalar_lea.vmem %s10, %s492
      %v494 = vld [vmem:[%s451] sm:$0xf]
      %v495 = vld [vmem:[%s451 + $0x4] sm:$0xf]
      %v496 = vld [vmem:[%s451 + $0x8] sm:$0xf]
      %v497 = vld [vmem:[%s451 + $0xc] sm:$0xf]
      %v498 = vld [vmem:[%s451 + $0x10] sm:$0xf]
      %v499 = vld [vmem:[%s451 + $0x14] sm:$0xf]
      %v500 = vld [vmem:[%s451 + $0x18] sm:$0xf]
      %v501 = vld [vmem:[%s451 + $0x1c] sm:$0xf]
      %v502 = vunpack.c.l.bf16 %v494
      %v503 = vunpack.c.l.bf16 %v495
      %v504 = vunpack.c.l.bf16 %v496
      %v505 = vunpack.c.l.bf16 %v497
      %v506 = vunpack.c.l.bf16 %v498
      %v507 = vunpack.c.l.bf16 %v499
      %v508 = vunpack.c.l.bf16 %v500
      %v509 = vunpack.c.l.bf16 %v501
      %v510 = vld [vmem:[%s456] sm:$0x1]
      %v511 = vperm.slane %v510, 0
      %v512 = vmul.f32 %v502, %v511
      %v513 = vmul.f32 %v503, %v511
      %v514 = vmul.f32 %v504, %v511
      %v515 = vmul.f32 %v505, %v511
      %v516 = vmul.f32 %v506, %v511
      %v517 = vmul.f32 %v507, %v511
      %v518 = vmul.f32 %v508, %v511
      %v519 = vmul.f32 %v509, %v511
      %v520 = vld [vmem:[%s456 + $0x1] sm:$0x1]
      %v521 = vperm.slane %v520, 0
      %v522 = vadd.f32 %v512, %v521
      %v523 = vadd.f32 %v513, %v521
      %v524 = vadd.f32 %v514, %v521
      %v525 = vadd.f32 %v515, %v521
      %v526 = vadd.f32 %v516, %v521
      %v527 = vadd.f32 %v517, %v521
      %v528 = vadd.f32 %v518, %v521
      %v529 = vadd.f32 %v519, %v521
      %v530 = vpack.c.bf16 %v523, %v522
      %v531 = vpack.c.bf16 %v525, %v524
      %v532 = vpack.c.bf16 %v527, %v526
      %v533 = vpack.c.bf16 %v529, %v528
      %v534 = vld [vmem:[%s3] sm:$0xff]
      %v535 = vld [vmem:[%s3 + $0x8] sm:$0xff]
      %v536 = vld [vmem:[%s3 + $0x10] sm:$0xff]
      %v537 = vld [vmem:[%s3 + $0x18] sm:$0xff]
      %v538 = vld [vmem:[%s3 + $0x20] sm:$0xff]
      %v539 = vld [vmem:[%s3 + $0x28] sm:$0xff]
      %v540 = vld [vmem:[%s3 + $0x30] sm:$0xff]
      %v541 = vld [vmem:[%s3 + $0x38] sm:$0xff]
      %v542 = vld [vmem:[%s3 + $0x40] sm:$0xff]
      %v543 = vld [vmem:[%s3 + $0x48] sm:$0xff]
      %v544 = vld [vmem:[%s3 + $0x50] sm:$0xff]
      %v545 = vld [vmem:[%s3 + $0x58] sm:$0xff]
      %v546 = vld [vmem:[%s3 + $0x60] sm:$0xff]
      %v547 = vld [vmem:[%s3 + $0x68] sm:$0xff]
      %v548 = vld [vmem:[%s3 + $0x70] sm:$0xff]
      %v549 = vld [vmem:[%s3 + $0x78] sm:$0xff]
      %v550 = vld [vmem:[%s5] sm:$0x3]
      %v552 = vperm.slane %v550, 0
      %v553 = vperm.slane %v550, 1
      %v572 = vunpack.c.l.b16 %v534
      %v573 = vunpack.c.h.b16 %v534
      %v574 = vunpack.c.l.b16 %v535
      %v575 = vunpack.c.h.b16 %v535
      %v576 = vunpack.c.l.b16 %v536
      %v577 = vunpack.c.h.b16 %v536
      %v578 = vunpack.c.l.b16 %v537
      %v579 = vunpack.c.h.b16 %v537
      %v580 = vunpack.c.l.b16 %v538
      %v581 = vunpack.c.h.b16 %v538
      %v582 = vunpack.c.l.b16 %v539
      %v583 = vunpack.c.h.b16 %v539
      %v584 = vunpack.c.l.b16 %v540
      %v585 = vunpack.c.h.b16 %v540
      %v586 = vunpack.c.l.b16 %v541
      %v587 = vunpack.c.h.b16 %v541
      %v588 = vunpack.c.l.b16 %v542
      %v589 = vunpack.c.h.b16 %v542
      %v590 = vunpack.c.l.b16 %v543
      %v591 = vunpack.c.h.b16 %v543
      %v592 = vunpack.c.l.b16 %v544
      %v593 = vunpack.c.h.b16 %v544
      %v594 = vunpack.c.l.b16 %v545
      %v595 = vunpack.c.h.b16 %v545
      %v596 = vunpack.c.l.b16 %v546
      %v597 = vunpack.c.h.b16 %v546
      %v598 = vunpack.c.l.b16 %v547
      %v599 = vunpack.c.h.b16 %v547
      %v600 = vunpack.c.l.b16 %v548
      %v601 = vunpack.c.h.b16 %v548
      %v602 = vunpack.c.l.b16 %v549
      %v603 = vunpack.c.h.b16 %v549
      %v604 = vpack.c.b16 %v574, %v572
      %v605 = vpack.c.b16 %v575, %v573
      %v606 = vpack.c.b16 %v578, %v576
      %v607 = vpack.c.b16 %v579, %v577
      %v608 = vpack.c.b16 %v582, %v580
      %v609 = vpack.c.b16 %v583, %v581
      %v610 = vpack.c.b16 %v586, %v584
      %v611 = vpack.c.b16 %v587, %v585
      %v612 = vpack.c.b16 %v590, %v588
      %v613 = vpack.c.b16 %v591, %v589
      %v614 = vpack.c.b16 %v594, %v592
      %v615 = vpack.c.b16 %v595, %v593
      %v616 = vpack.c.b16 %v598, %v596
      %v617 = vpack.c.b16 %v599, %v597
      %v618 = vpack.c.b16 %v602, %v600
      %v619 = vpack.c.b16 %v603, %v601
      %636 = vmatpush.bf16.msra.mxu0 %v618
      %637 = vmatpush.bf16.msra.mxu0 %v616
      %638 = vmatpush.bf16.msra.mxu0 %v614
      %639 = vmatpush.bf16.msra.mxu0 %v612
      %640 = vmatpush.bf16.msra.mxu0 %v610
      %641 = vmatpush.bf16.msra.mxu0 %v608
      %642 = vmatpush.bf16.msra.mxu0 %v606
      %643 = vmatpush.bf16.msra.mxu0 %v604
      %644 = vmatmul.bf16.gmra.mxu0 %v530
      %v645 = vpop.f32.mrf.mxu0
      %v646 = vadd.f32 %v552, %v645
      %v647 = vpop.f32.mrf.mxu0
      %v648 = vadd.f32 %v552, %v647
      %649 = vmatmul.bf16.gmra.mxu0 %v531
      %v650 = vpop.f32.mrf.mxu0
      %v651 = vadd.f32 %v552, %v650
      %v652 = vpop.f32.mrf.mxu0
      %v653 = vadd.f32 %v552, %v652
      %654 = vmatmul.bf16.gmra.mxu0 %v532
      %v655 = vpop.f32.mrf.mxu0
      %v656 = vadd.f32 %v552, %v655
      %v657 = vpop.f32.mrf.mxu0
      %v658 = vadd.f32 %v552, %v657
      %659 = vmatmul.bf16.gmra.mxu0 %v533
      %v660 = vpop.f32.mrf.mxu0
      %v661 = vadd.f32 %v552, %v660
      %v662 = vpop.f32.mrf.mxu0
      %v663 = vadd.f32 %v552, %v662
      %664 = vdwg.mxu0
      %665 = vmatpush.bf16.msra.mxu0 %v619
      %666 = vmatpush.bf16.msra.mxu0 %v617
      %667 = vmatpush.bf16.msra.mxu0 %v615
      %668 = vmatpush.bf16.msra.mxu0 %v613
      %669 = vmatpush.bf16.msra.mxu0 %v611
      %670 = vmatpush.bf16.msra.mxu0 %v609
      %671 = vmatpush.bf16.msra.mxu0 %v607
      %672 = vmatpush.bf16.msra.mxu0 %v605
      %673 = vmatmul.bf16.gmra.mxu0 %v530
      %v674 = vpop.f32.mrf.mxu0
      %v675 = vadd.f32 %v553, %v674
      %v676 = vpop.f32.mrf.mxu0
      %v677 = vadd.f32 %v553, %v676
      %678 = vmatmul.bf16.gmra.mxu0 %v531
      %v679 = vpop.f32.mrf.mxu0
      %v680 = vadd.f32 %v553, %v679
      %v681 = vpop.f32.mrf.mxu0
      %v682 = vadd.f32 %v553, %v681
      %683 = vmatmul.bf16.gmra.mxu0 %v532
      %v684 = vpop.f32.mrf.mxu0
      %v685 = vadd.f32 %v553, %v684
      %v686 = vpop.f32.mrf.mxu0
      %v687 = vadd.f32 %v553, %v686
      %688 = vmatmul.bf16.gmra.mxu0 %v533
      %v689 = vpop.f32.mrf.mxu0
      %v690 = vadd.f32 %v553, %v689
      %v691 = vpop.f32.mrf.mxu0
      %v692 = vadd.f32 %v553, %v691
      %693 = vdwg.mxu0
      %v694 = vld [vmem:[%s465] sm:$0xff]
      %v695 = vld [vmem:[%s465 + $0x8] sm:$0xff]
      %v696 = vld [vmem:[%s465 + $0x10] sm:$0xff]
      %v697 = vld [vmem:[%s465 + $0x18] sm:$0xff]
      %v698 = vld [vmem:[%s465 + $0x20] sm:$0xff]
      %v699 = vld [vmem:[%s465 + $0x28] sm:$0xff]
      %v700 = vld [vmem:[%s465 + $0x30] sm:$0xff]
      %v701 = vld [vmem:[%s465 + $0x38] sm:$0xff]
      %v702 = vld [vmem:[%s4] sm:$0x3]
      %704 = vset.pattern.permute.xlu0 0
      %705 = vperm.xlu0 %704, %v694
      %v706 = vpop.permute.xlu0 %705
      %709 = vset.pattern.permute.xlu0 0
      %710 = vperm.xlu0 %709, %v695
      %v711 = vpop.permute.xlu0 %710
      %714 = vset.pattern.permute.xlu0 0
      %715 = vperm.xlu0 %714, %v696
      %v716 = vpop.permute.xlu0 %715
      %719 = vset.pattern.permute.xlu0 0
      %720 = vperm.xlu0 %719, %v697
      %v721 = vpop.permute.xlu0 %720
      %724 = vset.pattern.permute.xlu0 0
      %725 = vperm.xlu0 %724, %v698
      %v726 = vpop.permute.xlu0 %725
      %729 = vset.pattern.permute.xlu0 0
      %730 = vperm.xlu0 %729, %v699
      %v731 = vpop.permute.xlu0 %730
      %734 = vset.pattern.permute.xlu0 0
      %735 = vperm.xlu0 %734, %v700
      %v736 = vpop.permute.xlu0 %735
      %739 = vset.pattern.permute.xlu0 0
      %740 = vperm.xlu0 %739, %v701
      %v741 = vpop.permute.xlu0 %740
      %v744 = vperm.slane %v702, 0
      %v745 = vperm.slane %v702, 1
      %v748 = vmul.f32 %v706, %v744
      %v749 = vmul.f32 %v706, %v745
      %v750 = vmul.f32 %v711, %v744
      %v751 = vmul.f32 %v711, %v745
      %v752 = vmul.f32 %v716, %v744
      %v753 = vmul.f32 %v716, %v745
      %v754 = vmul.f32 %v721, %v744
      %v755 = vmul.f32 %v721, %v745
      %v756 = vmul.f32 %v726, %v744
      %v757 = vmul.f32 %v726, %v745
      %v758 = vmul.f32 %v731, %v744
      %v759 = vmul.f32 %v731, %v745
      %v760 = vmul.f32 %v736, %v744
      %v761 = vmul.f32 %v736, %v745
      %v762 = vmul.f32 %v741, %v744
      %v763 = vmul.f32 %v741, %v745
      %v764 = vadd.f32 %v646, %v748
      %v765 = vadd.f32 %v675, %v749
      %v766 = vadd.f32 %v648, %v750
      %v767 = vadd.f32 %v677, %v751
      %v768 = vadd.f32 %v651, %v752
      %v769 = vadd.f32 %v680, %v753
      %v770 = vadd.f32 %v653, %v754
      %v771 = vadd.f32 %v682, %v755
      %v772 = vadd.f32 %v656, %v756
      %v773 = vadd.f32 %v685, %v757
      %v774 = vadd.f32 %v658, %v758
      %v775 = vadd.f32 %v687, %v759
      %v776 = vadd.f32 %v661, %v760
      %v777 = vadd.f32 %v690, %v761
      %v778 = vadd.f32 %v663, %v762
      %v779 = vadd.f32 %v692, %v763
      %vm780 = vcmp.gt.f32.partialorder %v764, 0.0
      %vm781 = vcmp.gt.f32.partialorder %v766, 0.0
      %vm782 = vcmp.gt.f32.partialorder %v768, 0.0
      %vm783 = vcmp.gt.f32.partialorder %v770, 0.0
      %vm784 = vcmp.gt.f32.partialorder %v772, 0.0
      %vm785 = vcmp.gt.f32.partialorder %v774, 0.0
      %vm786 = vcmp.gt.f32.partialorder %v776, 0.0
      %vm787 = vcmp.gt.f32.partialorder %v778, 0.0
      %v788 = vmin.f32 %v764, 0.0
      %v789 = vmin.f32 %v766, 0.0
      %v790 = vmin.f32 %v768, 0.0
      %v791 = vmin.f32 %v770, 0.0
      %v792 = vmin.f32 %v772, 0.0
      %v793 = vmin.f32 %v774, 0.0
      %v794 = vmin.f32 %v776, 0.0
      %v795 = vmin.f32 %v778, 0.0
      %v796 = vmul.f32 %v788, 1.442695
      %v797 = vpow.pop %v796
      %v798 = vmul.f32 %v789, 1.442695
      %v799 = vpow.pop %v798
      %v800 = vmul.f32 %v790, 1.442695
      %v801 = vpow.pop %v800
      %v802 = vmul.f32 %v791, 1.442695
      %v803 = vpow.pop %v802
      %v804 = vmul.f32 %v792, 1.442695
      %v805 = vpow.pop %v804
      %v806 = vmul.f32 %v793, 1.442695
      %v807 = vpow.pop %v806
      %v808 = vmul.f32 %v794, 1.442695
      %v809 = vpow.pop %v808
      %v810 = vmul.f32 %v795, 1.442695
      %v811 = vpow.pop %v810
      %v812 = vsub.f32 %v797, 1.0
      %v813 = vsub.f32 %v799, 1.0
      %v814 = vsub.f32 %v801, 1.0
      %v815 = vsub.f32 %v803, 1.0
      %v816 = vsub.f32 %v805, 1.0
      %v817 = vsub.f32 %v807, 1.0
      %v818 = vsub.f32 %v809, 1.0
      %v819 = vsub.f32 %v811, 1.0
      %v820 = vsel %vm780, %v764, %v812
      %v821 = vsel %vm781, %v766, %v813
      %v822 = vsel %vm782, %v768, %v814
      %v823 = vsel %vm783, %v770, %v815
      %v824 = vsel %vm784, %v772, %v816
      %v825 = vsel %vm785, %v774, %v817
      %v826 = vsel %vm786, %v776, %v818
      %v827 = vsel %vm787, %v778, %v819
      %vm828 = vcmask 64512
      %829 = vst.msk [vmem:[%s485] sm:$0xff] %vm828, %v765
      %830 = vst.msk [vmem:[%s485 + $0x8] sm:$0xff] %vm828, %v767
      %831 = vst.msk [vmem:[%s485 + $0x10] sm:$0xff] %vm828, %v769
      %832 = vst.msk [vmem:[%s485 + $0x18] sm:$0xff] %vm828, %v771
      %833 = vst.msk [vmem:[%s485 + $0x20] sm:$0xff] %vm828, %v773
      %834 = vst.msk [vmem:[%s485 + $0x28] sm:$0xff] %vm828, %v775
      %835 = vst.msk [vmem:[%s485 + $0x30] sm:$0xff] %vm828, %v777
      %836 = vst.msk [vmem:[%s485 + $0x38] sm:$0xff] %vm828, %v779
      %v837 = vpack.c.bf16 %v820, %v820
      %v838 = vpack.c.bf16 %v821, %v821
      %v839 = vpack.c.bf16 %v822, %v822
      %v840 = vpack.c.bf16 %v823, %v823
      %v841 = vpack.c.bf16 %v824, %v824
      %v842 = vpack.c.bf16 %v825, %v825
      %v843 = vpack.c.bf16 %v826, %v826
      %v844 = vpack.c.bf16 %v827, %v827
      %v853 = vunpack.c.l.b16 %v494
      %v854 = vunpack.c.l.b16 %v495
      %v855 = vunpack.c.l.b16 %v496
      %v856 = vunpack.c.l.b16 %v497
      %v857 = vunpack.c.l.b16 %v498
      %v858 = vunpack.c.l.b16 %v499
      %v859 = vunpack.c.l.b16 %v500
      %v860 = vunpack.c.l.b16 %v501
      %v861 = vpack.c.b16 %v854, %v853
      %v862 = vpack.c.b16 %v856, %v855
      %v863 = vpack.c.b16 %v858, %v857
      %v864 = vpack.c.b16 %v860, %v859
      %v877 = vunpack.c.l.b16 %v837
      %v878 = vunpack.c.l.b16 %v838
      %v879 = vunpack.c.l.b16 %v839
      %v880 = vunpack.c.l.b16 %v840
      %v881 = vunpack.c.l.b16 %v841
      %v882 = vunpack.c.l.b16 %v842
      %v883 = vunpack.c.l.b16 %v843
      %v884 = vunpack.c.l.b16 %v844
      %v885 = vpack.c.b16 %v878, %v877
      %v886 = vpack.c.b16 %v880, %v879
      %v887 = vpack.c.b16 %v882, %v881
      %v888 = vpack.c.b16 %v884, %v883
      %v893 = vld [vmem:[%s6] sm:$0xf]
      %v894 = vld [vmem:[%s6 + $0x4] sm:$0xf]
      %v895 = vld [vmem:[%s6 + $0x8] sm:$0xf]
      %v896 = vld [vmem:[%s6 + $0xc] sm:$0xf]
      %v897 = vld [vmem:[%s6 + $0x10] sm:$0xf]
      %v898 = vld [vmem:[%s6 + $0x14] sm:$0xf]
      %v899 = vld [vmem:[%s6 + $0x18] sm:$0xf]
      %v900 = vld [vmem:[%s6 + $0x1c] sm:$0xf]
      %v901 = vld [vmem:[%s6 + $0x20] sm:$0xf]
      %v902 = vld [vmem:[%s6 + $0x24] sm:$0xf]
      %v903 = vld [vmem:[%s6 + $0x28] sm:$0xf]
      %v904 = vld [vmem:[%s6 + $0x2c] sm:$0xf]
      %v905 = vld [vmem:[%s6 + $0x30] sm:$0xf]
      %v906 = vld [vmem:[%s6 + $0x34] sm:$0xf]
      %v907 = vld [vmem:[%s6 + $0x38] sm:$0xf]
      %v908 = vld [vmem:[%s6 + $0x3c] sm:$0xf]
      %v909 = vld [vmem:[%s6 + $0x40] sm:$0xf]
      %v910 = vld [vmem:[%s6 + $0x44] sm:$0xf]
      %v911 = vld [vmem:[%s6 + $0x48] sm:$0xf]
      %v912 = vld [vmem:[%s6 + $0x4c] sm:$0xf]
      %v913 = vld [vmem:[%s6 + $0x50] sm:$0xf]
      %v914 = vld [vmem:[%s6 + $0x54] sm:$0xf]
      %v915 = vld [vmem:[%s6 + $0x58] sm:$0xf]
      %v916 = vld [vmem:[%s6 + $0x5c] sm:$0xf]
      %v917 = vld [vmem:[%s6 + $0x60] sm:$0xf]
      %v918 = vld [vmem:[%s6 + $0x64] sm:$0xf]
      %v919 = vld [vmem:[%s6 + $0x68] sm:$0xf]
      %v920 = vld [vmem:[%s6 + $0x6c] sm:$0xf]
      %v921 = vld [vmem:[%s6 + $0x70] sm:$0xf]
      %v922 = vld [vmem:[%s6 + $0x74] sm:$0xf]
      %v923 = vld [vmem:[%s6 + $0x78] sm:$0xf]
      %v924 = vld [vmem:[%s6 + $0x7c] sm:$0xf]
      %v925 = vld [vmem:[%s7] sm:$0x1]
      %v927 = vperm.slane %v925, 0
      %v961 = vunpack.c.l.b16 %v893
      %v962 = vunpack.c.l.b16 %v894
      %v963 = vunpack.c.l.b16 %v895
      %v964 = vunpack.c.l.b16 %v896
      %v965 = vunpack.c.l.b16 %v897
      %v966 = vunpack.c.l.b16 %v898
      %v967 = vunpack.c.l.b16 %v899
      %v968 = vunpack.c.l.b16 %v900
      %v969 = vunpack.c.l.b16 %v901
      %v970 = vunpack.c.l.b16 %v902
      %v971 = vunpack.c.l.b16 %v903
      %v972 = vunpack.c.l.b16 %v904
      %v973 = vunpack.c.l.b16 %v905
      %v974 = vunpack.c.l.b16 %v906
      %v975 = vunpack.c.l.b16 %v907
      %v976 = vunpack.c.l.b16 %v908
      %v977 = vunpack.c.l.b16 %v909
      %v978 = vunpack.c.l.b16 %v910
      %v979 = vunpack.c.l.b16 %v911
      %v980 = vunpack.c.l.b16 %v912
      %v981 = vunpack.c.l.b16 %v913
      %v982 = vunpack.c.l.b16 %v914
      %v983 = vunpack.c.l.b16 %v915
      %v984 = vunpack.c.l.b16 %v916
      %v985 = vunpack.c.l.b16 %v917
      %v986 = vunpack.c.l.b16 %v918
      %v987 = vunpack.c.l.b16 %v919
      %v988 = vunpack.c.l.b16 %v920
      %v989 = vunpack.c.l.b16 %v921
      %v990 = vunpack.c.l.b16 %v922
      %v991 = vunpack.c.l.b16 %v923
      %v992 = vunpack.c.l.b16 %v924
      %v993 = vpack.c.b16 %v962, %v961
      %v994 = vpack.c.b16 %v964, %v963
      %v995 = vpack.c.b16 %v966, %v965
      %v996 = vpack.c.b16 %v968, %v967
      %v997 = vpack.c.b16 %v970, %v969
      %v998 = vpack.c.b16 %v972, %v971
      %v999 = vpack.c.b16 %v974, %v973
      %v1000 = vpack.c.b16 %v976, %v975
      %v1001 = vpack.c.b16 %v978, %v977
      %v1002 = vpack.c.b16 %v980, %v979
      %v1003 = vpack.c.b16 %v982, %v981
      %v1004 = vpack.c.b16 %v984, %v983
      %v1005 = vpack.c.b16 %v986, %v985
      %v1006 = vpack.c.b16 %v988, %v987
      %v1007 = vpack.c.b16 %v990, %v989
      %v1008 = vpack.c.b16 %v992, %v991
      %1025 = vmatpush.bf16.msra.mxu0 %v1000
      %1026 = vmatpush.bf16.msra.mxu0 %v999
      %1027 = vmatpush.bf16.msra.mxu0 %v998
      %1028 = vmatpush.bf16.msra.mxu0 %v997
      %1029 = vmatpush.bf16.msra.mxu0 %v996
      %1030 = vmatpush.bf16.msra.mxu0 %v995
      %1031 = vmatpush.bf16.msra.mxu0 %v994
      %1032 = vmatpush.bf16.msra.mxu0 %v993
      %1033 = vmatmul.bf16.gmra.mxu0 %v861
      %v1034 = vpop.f32.mrf.mxu0
      %v1035 = vadd.f32 %v927, %v1034
      %v1036 = vpop.f32.mrf.mxu0
      %v1037 = vadd.f32 %v927, %v1036
      %1038 = vmatmul.bf16.gmra.mxu0 %v862
      %v1039 = vpop.f32.mrf.mxu0
      %v1040 = vadd.f32 %v927, %v1039
      %v1041 = vpop.f32.mrf.mxu0
      %v1042 = vadd.f32 %v927, %v1041
      %1043 = vmatmul.bf16.gmra.mxu0 %v863
      %v1044 = vpop.f32.mrf.mxu0
      %v1045 = vadd.f32 %v927, %v1044
      %v1046 = vpop.f32.mrf.mxu0
      %v1047 = vadd.f32 %v927, %v1046
      %1048 = vmatmul.bf16.gmra.mxu0 %v864
      %v1049 = vpop.f32.mrf.mxu0
      %v1050 = vadd.f32 %v927, %v1049
      %v1051 = vpop.f32.mrf.mxu0
      %v1052 = vadd.f32 %v927, %v1051
      %1053 = vdwg.mxu0
      %1054 = vmatpush.bf16.msra.mxu0 %v1008
      %1055 = vmatpush.bf16.msra.mxu0 %v1007
      %1056 = vmatpush.bf16.msra.mxu0 %v1006
      %1057 = vmatpush.bf16.msra.mxu0 %v1005
      %1058 = vmatpush.bf16.msra.mxu0 %v1004
      %1059 = vmatpush.bf16.msra.mxu0 %v1003
      %1060 = vmatpush.bf16.msra.mxu0 %v1002
      %1061 = vmatpush.bf16.msra.mxu0 %v1001
      %1062 = vmatmul.bf16.gmra.mxu0 %v885
      %v1063 = vpop.f32.mrf.mxu0
      %v1064 = vadd.f32 %v1035, %v1063
      %v1065 = vpop.f32.mrf.mxu0
      %v1066 = vadd.f32 %v1037, %v1065
      %1067 = vmatmul.bf16.gmra.mxu0 %v886
      %v1068 = vpop.f32.mrf.mxu0
      %v1069 = vadd.f32 %v1040, %v1068
      %v1070 = vpop.f32.mrf.mxu0
      %v1071 = vadd.f32 %v1042, %v1070
      %1072 = vmatmul.bf16.gmra.mxu0 %v887
      %v1073 = vpop.f32.mrf.mxu0
      %v1074 = vadd.f32 %v1045, %v1073
      %v1075 = vpop.f32.mrf.mxu0
      %v1076 = vadd.f32 %v1047, %v1075
      %1077 = vmatmul.bf16.gmra.mxu0 %v888
      %v1078 = vpop.f32.mrf.mxu0
      %v1079 = vadd.f32 %v1050, %v1078
      %v1080 = vpop.f32.mrf.mxu0
      %v1081 = vadd.f32 %v1052, %v1080
      %1082 = vdwg.mxu0
      %vm1083 = vcmp.gt.f32.partialorder %v1064, 0.0
      %vm1084 = vcmp.gt.f32.partialorder %v1066, 0.0
      %vm1085 = vcmp.gt.f32.partialorder %v1069, 0.0
      %vm1086 = vcmp.gt.f32.partialorder %v1071, 0.0
      %vm1087 = vcmp.gt.f32.partialorder %v1074, 0.0
      %vm1088 = vcmp.gt.f32.partialorder %v1076, 0.0
      %vm1089 = vcmp.gt.f32.partialorder %v1079, 0.0
      %vm1090 = vcmp.gt.f32.partialorder %v1081, 0.0
      %v1091 = vmin.f32 %v1064, 0.0
      %v1092 = vmin.f32 %v1066, 0.0
      %v1093 = vmin.f32 %v1069, 0.0
      %v1094 = vmin.f32 %v1071, 0.0
      %v1095 = vmin.f32 %v1074, 0.0
      %v1096 = vmin.f32 %v1076, 0.0
      %v1097 = vmin.f32 %v1079, 0.0
      %v1098 = vmin.f32 %v1081, 0.0
      %v1099 = vmul.f32 %v1091, 1.442695
      %v1100 = vpow.pop %v1099
      %v1101 = vmul.f32 %v1092, 1.442695
      %v1102 = vpow.pop %v1101
      %v1103 = vmul.f32 %v1093, 1.442695
      %v1104 = vpow.pop %v1103
      %v1105 = vmul.f32 %v1094, 1.442695
      %v1106 = vpow.pop %v1105
      %v1107 = vmul.f32 %v1095, 1.442695
      %v1108 = vpow.pop %v1107
      %v1109 = vmul.f32 %v1096, 1.442695
      %v1110 = vpow.pop %v1109
      %v1111 = vmul.f32 %v1097, 1.442695
      %v1112 = vpow.pop %v1111
      %v1113 = vmul.f32 %v1098, 1.442695
      %v1114 = vpow.pop %v1113
      %v1115 = vsub.f32 %v1100, 1.0
      %v1116 = vsub.f32 %v1102, 1.0
      %v1117 = vsub.f32 %v1104, 1.0
      %v1118 = vsub.f32 %v1106, 1.0
      %v1119 = vsub.f32 %v1108, 1.0
      %v1120 = vsub.f32 %v1110, 1.0
      %v1121 = vsub.f32 %v1112, 1.0
      %v1122 = vsub.f32 %v1114, 1.0
      %v1123 = vsel %vm1083, %v1064, %v1115
      %v1124 = vsel %vm1084, %v1066, %v1116
      %v1125 = vsel %vm1085, %v1069, %v1117
      %v1126 = vsel %vm1086, %v1071, %v1118
      %v1127 = vsel %vm1087, %v1074, %v1119
      %v1128 = vsel %vm1088, %v1076, %v1120
      %v1129 = vsel %vm1089, %v1079, %v1121
      %v1130 = vsel %vm1090, %v1081, %v1122
      %v1131 = vpack.c.bf16 %v1123, %v1123
      %v1132 = vpack.c.bf16 %v1124, %v1124
      %v1133 = vpack.c.bf16 %v1125, %v1125
      %v1134 = vpack.c.bf16 %v1126, %v1126
      %v1135 = vpack.c.bf16 %v1127, %v1127
      %v1136 = vpack.c.bf16 %v1128, %v1128
      %v1137 = vpack.c.bf16 %v1129, %v1129
      %v1138 = vpack.c.bf16 %v1130, %v1130
      %1139 = vst [vmem:[%s475] sm:$0xf] %v1131
      %1140 = vst [vmem:[%s475 + $0x4] sm:$0xf] %v1132
      %1141 = vst [vmem:[%s475 + $0x8] sm:$0xf] %v1133
      %1142 = vst [vmem:[%s475 + $0xc] sm:$0xf] %v1134
      %1143 = vst [vmem:[%s475 + $0x10] sm:$0xf] %v1135
      %1144 = vst [vmem:[%s475 + $0x14] sm:$0xf] %v1136
      %1145 = vst [vmem:[%s475 + $0x18] sm:$0xf] %v1137
      %1146 = vst [vmem:[%s475 + $0x1c] sm:$0xf] %v1138
      %v1147 = vunpack.c.l.bf16 %v1131
      %v1148 = vunpack.c.l.bf16 %v1132
      %v1149 = vunpack.c.l.bf16 %v1133
      %v1150 = vunpack.c.l.bf16 %v1134
      %v1151 = vunpack.c.l.bf16 %v1135
      %v1152 = vunpack.c.l.bf16 %v1136
      %v1153 = vunpack.c.l.bf16 %v1137
      %v1154 = vunpack.c.l.bf16 %v1138
      %v1155 = vadd.f32 %v1147, %v1148
      %v1156 = vadd.f32 %v1155, %v1149
      %v1157 = vadd.f32 %v1156, %v1150
      %v1158 = vadd.f32 %v1157, %v1151
      %v1159 = vadd.f32 %v1158, %v1152
      %v1160 = vadd.f32 %v1159, %v1153
      %v1161 = vadd.f32 %v1160, %v1154
      %v1162 = vrot.slane %v1161, 4
      %v1163 = vadd.f32 %v1161, %v1162
      %v1164 = vrot.slane %v1163, 2
      %v1165 = vadd.f32 %v1163, %v1164
      %v1166 = vrot.slane %v1165, 1
      %v1167 = vadd.f32 %v1165, %v1166
      %v1168 = vrcp.pop 64.0
      %v1169 = vmul.f32 64.0, %v1168
      %v1170 = vsub.f32 1.0, %v1169
      %v1171 = vmul.f32 %v1168, %v1170
      %v1172 = vadd.f32 %v1168, %v1171
      %vm1173 = vweird.f32 %v1168
      %v1174 = vsel %vm1173, %v1168, %v1172
      %v1175 = vmul.f32 %v1167, %v1174
      %v1176 = vsub.f32 %v1147, %v1175
      %v1177 = vsub.f32 %v1148, %v1175
      %v1178 = vsub.f32 %v1149, %v1175
      %v1179 = vsub.f32 %v1150, %v1175
      %v1180 = vsub.f32 %v1151, %v1175
      %v1181 = vsub.f32 %v1152, %v1175
      %v1182 = vsub.f32 %v1153, %v1175
      %v1183 = vsub.f32 %v1154, %v1175
      %1184 = vst [vmem:[%s493] sm:$0x1] %v1175
      %v1185 = vmul.f32 %v1176, %v1176
      %v1186 = vmul.f32 %v1177, %v1177
      %v1187 = vmul.f32 %v1178, %v1178
      %v1188 = vmul.f32 %v1179, %v1179
      %v1189 = vmul.f32 %v1180, %v1180
      %v1190 = vmul.f32 %v1181, %v1181
      %v1191 = vmul.f32 %v1182, %v1182
      %v1192 = vmul.f32 %v1183, %v1183
      %v1193 = vadd.f32 %v1185, %v1186
      %v1194 = vadd.f32 %v1193, %v1187
      %v1195 = vadd.f32 %v1194, %v1188
      %v1196 = vadd.f32 %v1195, %v1189
      %v1197 = vadd.f32 %v1196, %v1190
      %v1198 = vadd.f32 %v1197, %v1191
      %v1199 = vadd.f32 %v1198, %v1192
      %v1200 = vrot.slane %v1199, 4
      %v1201 = vadd.f32 %v1199, %v1200
      %v1202 = vrot.slane %v1201, 2
      %v1203 = vadd.f32 %v1201, %v1202
      %v1204 = vrot.slane %v1203, 1
      %v1205 = vadd.f32 %v1203, %v1204
      %1206 = vst [vmem:[%s493 + $0x1] sm:$0x1] %v1205
      %s1207 = smul.u32 8, %s27
      %p1208 = scmp.lt.s32.totalorder %s26, 1
      %s1209 = scalar_select %p1208, %s26, 1
      %p1210 = scmp.lt.s32.totalorder %s1207, 7
      %s1211 = scalar_select %p1210, %s1207, 7
      %s1212 = smul.addr %s1209, 8
      %s1213 = sadd.s32 %s1211, %s1212
      %s1214 = smul.addr %s1213, 4
      %s1215 = scalar_lea.vmem %s8, %s1214
      %s1216 = smul.u32 8, %s27
      %p1217 = scmp.lt.s32.totalorder %s26, 1
      %s1218 = scalar_select %p1217, %s26, 1
      %p1219 = scmp.lt.s32.totalorder %s1216, 7
      %s1220 = scalar_select %p1219, %s1216, 7
      %s1221 = smul.addr %s1218, 8
      %s1222 = sadd.s32 %s1220, %s1221
      %s1223 = smul.addr %s1222, 8
      %s1224 = scalar_lea.vmem %s9, %s1223
      %p1225 = scmp.lt.s32.totalorder %s26, 1
      %s1226 = scalar_select %p1225, %s26, 1
      %p1227 = scmp.lt.s32.totalorder %s27, 0
      %s1228 = scalar_select %p1227, %s27, 0
      %s1229 = sadd.s32 %s1228, %s1226
      %s1230 = smul.addr %s1229, 2
      %s1231 = scalar_lea.vmem %s10, %s1230
      // Predicated region
      $region53: #{block_v2_forward.17} parent=51 // pred_check
        %p1232 = pneg %p241
      $region54: #{block_v2_forward.17} parent=51 // pred_check_branch
        %1234 = sbr.rel (%p1232) target = $region56
      $region55: #{block_v2_forward.17} parent=51 // pred_region
        %s1235 = smul.u32 8, %s27
      $region56: #{block_v2_forward.17} parent=51 // pred_fallthru
        _
      // Predicated region
      $region57: #{block_v2_forward.17} parent=51 // pred_check
        %p1236 = pneg %p269
      $region58: #{block_v2_forward.17} parent=51 // pred_check_branch
        %1238 = sbr.rel (%p1236) target = $region60
      $region59: #{block_v2_forward.17} parent=51 // pred_region
        %s1239 = smul.u32 8, %s27
      $region60: #{block_v2_forward.17} parent=51 // pred_fallthru
        _
      // Predicated region
      $region61: #{block_v2_forward.17} parent=51 // pred_check
        %p1240 = pneg %p297
      $region62: #{block_v2_forward.17} parent=51 // pred_check_branch
        %1242 = sbr.rel (%p1240) target = $region64
      $region63: #{block_v2_forward.17} parent=51 // pred_region
        _
      $region64: #{block_v2_forward.17} parent=51 // pred_fallthru
        _
    $region52: #{block_v2_forward.17} parent=5 // pred_fallthru
      _
    %p1243 = scmp.le.s32.totalorder 2, %s17
    // Predicated region
    $region65: #{block_v2_forward.17} parent=5 // pred_check
      %p1244 = pneg %p1243
    $region66: #{block_v2_forward.17} parent=5 // pred_check_branch
      %1246 = sbr.rel (%p1244) target = $region68
    $region67: #{block_v2_forward.17} parent=5 // pred_region
      %s1247 = ssub.s32 %s17, 2
      // Predicated region
      $region69: #{block_v2_forward.17} parent=67 // pred_check
        %p1248 = pneg %p247
      $region70: #{block_v2_forward.17} parent=67 // pred_check_branch
        %1250 = sbr.rel (%p1248) target = $region72
      $region71: #{block_v2_forward.17} parent=67 // pred_region
        %s1251 = smul.u32 8, %s29
        %p1252 = scmp.lt.s32.totalorder %s28, 1
        %s1253 = scalar_select %p1252, %s28, 1
        %p1254 = scmp.lt.s32.totalorder %s1251, 7
        %s1255 = scalar_select %p1254, %s1251, 7
        %s1256 = smul.addr %s1253, 8
        %s1257 = sadd.s32 %s1255, %s1256
        %s1258 = smul.addr %s1257, 4
        %s1259 = scalar_lea.vmem %s8, %s1258
      $region72: #{block_v2_forward.17} parent=67 // pred_fallthru
        _
      // Predicated region
      $region73: #{block_v2_forward.17} parent=67 // pred_check
        %p1260 = pneg %p275
      $region74: #{block_v2_forward.17} parent=67 // pred_check_branch
        %1262 = sbr.rel (%p1260) target = $region76
      $region75: #{block_v2_forward.17} parent=67 // pred_region
        %s1263 = smul.u32 8, %s29
        %p1264 = scmp.lt.s32.totalorder %s28, 1
        %s1265 = scalar_select %p1264, %s28, 1
        %p1266 = scmp.lt.s32.totalorder %s1263, 7
        %s1267 = scalar_select %p1266, %s1263, 7
        %s1268 = smul.addr %s1265, 8
        %s1269 = sadd.s32 %s1267, %s1268
        %s1270 = smul.addr %s1269, 8
        %s1271 = scalar_lea.vmem %s9, %s1270
      $region76: #{block_v2_forward.17} parent=67 // pred_fallthru
        _
      // Predicated region
      $region77: #{block_v2_forward.17} parent=67 // pred_check
        %p1272 = pneg %p303
      $region78: #{block_v2_forward.17} parent=67 // pred_check_branch
        %1274 = sbr.rel (%p1272) target = $region80
      $region79: #{block_v2_forward.17} parent=67 // pred_region
        %p1275 = scmp.lt.s32.totalorder %s28, 1
        %s1276 = scalar_select %p1275, %s28, 1
        %p1277 = scmp.lt.s32.totalorder %s29, 0
        %s1278 = scalar_select %p1277, %s29, 0
        %s1279 = sadd.s32 %s1278, %s1276
        %s1280 = smul.addr %s1279, 2
        %s1281 = scalar_lea.vmem %s10, %s1280
      $region80: #{block_v2_forward.17} parent=67 // pred_fallthru
        _
    $region68: #{block_v2_forward.17} parent=5 // pred_fallthru
      _
  $region6: #{block_v2_forward.17} parent=0 // loop_footer
    %s21 = sadd.s32 1, %s17
  $region7: #{block_v2_forward.17} parent=0 // loop_footer_branch
    %16 = sbr.rel target = $region3
  $region8: #{block_v2_forward.17} parent=0 // loop_exit
    _

// kernel: block_v2_forward.27
$region0: #{block_v2_forward.27}
  #allocation0 [shape = 'u32[]', space=smem, size = 0x4, offset = 0x4, fixed_abs, tag = 'smem constant byte address 0x4 - core index']
  #allocation1 [shape = 'u32[72,128]{1,0:T(1,128)}', space=vmem, size = 0x9000, scoped, tag = 'internal scratch']
  %s0 = inlined_call_operand.vmem [shape: bf16[2,64,128], index: 0, kind: input, shape index: {}]
  %s1 = inlined_call_operand.vmem [shape: f32[2,2,128], index: 1, kind: input, shape index: {}]
  %s2 = inlined_call_operand.vmem [shape: f32[2,64,1], index: 2, kind: input, shape index: {}]
  %s3 = inlined_call_operand.vmem [shape: bf16[128,256], index: 3, kind: input, shape index: {}]
  %s4 = inlined_call_operand.vmem [shape: f32[1,256], index: 4, kind: input, shape index: {}]
  %s5 = inlined_call_operand.vmem [shape: f32[1,256], index: 5, kind: input, shape index: {}]
  %s6 = inlined_call_operand.hbm [shape: f32[2,64,128], index: 6, kind: output, shape index: {0}]
  %s7 = inlined_call_operand.vmem [shape: f32[2,64,8], index: 7, kind: output, shape index: {1}]
  %8 = xla_tuple %s6, %s7
  %s9 = sld [smem:[#allocation0]]
  $region65: #{block_v2_forward.27} parent=0
    _
  %s11 = ssub.s32 1, %s9
  %s12 = scalar_select 0, %s11, %s9
  $region1: #{block_v2_forward.27} parent=0
    #allocation2 [shape = 'u8[65536]{0}', space=vmem, size = 0x10000, scoped, tag = 'output window, operand 0']
    #allocation3 [shape = 's32[2]{0}', space=sflag, size = 0x8, scoped, tag = 'scoped memory for block_v2_forward.27']
    %13 = vsyncpa [#allocation3], 0
    %s14 = scalar_lea.sflag [#allocation3], 1
    %15 = vsyncpa %s14, 0
    loop: start=0, step=1, limit=4
    $region2: #{block_v2_forward.27} parent=1 // loop_pre_header
      _
    $region3: #{block_v2_forward.27} parent=1 // loop_header
      %s17 = sphi 0, %s21
      %p18 = scmp.ge.s32.totalorder %s17, 4
      %s24 = sphi 0, %s36
      %s25 = sphi 0, %s32
      %s26 = sphi 0, %s24
      %s27 = sphi 0, %s25
      %s28 = sphi 0, %s26
      %s29 = sphi 0, %s27
      %s41 = sphi 0, %s43
      %s44 = sphi 0, %s41
      %s45 = sphi 0, %s44
      %s61 = sphi 0, %s45
      %s67 = sphi 0, %s69
      %s70 = sphi 0, %s67
      %s71 = sphi 0, %s70
      %s87 = sphi 0, %s71
      %s95 = sphi 0, %s97
      %s98 = sphi 0, %s95
      %s99 = sphi 0, %s98
      %s115 = sphi 0, %s99
      %s119 = sphi 0, %s119
      %s121 = sphi 0, %s119
      %s122 = sphi 0, %s121
      %s136 = sphi 0, %s122
      %s140 = sphi 0, %s140
      %s142 = sphi 0, %s140
      %s143 = sphi 0, %s142
      %s157 = sphi 0, %s143
      %s161 = sphi 0, %s161
      %s163 = sphi 0, %s161
      %s164 = sphi 0, %s163
      %s178 = sphi 0, %s164
      %s186 = sphi 0, %s188
      %s189 = sphi 0, %s186
      %s190 = sphi 0, %s189
      %s206 = sphi 0, %s190
      %s214 = sphi 0, %s216
      %s217 = sphi 0, %s214
      %s218 = sphi 0, %s217
      %s234 = sphi 0, %s218
    $region4: #{block_v2_forward.27} parent=1 // loop_header_branch
      %20 = sbr.rel (%p18) target = $region8
    $region5: #{block_v2_forward.27} parent=1 // loop_body
      %s22 = ssub.s32 %s17, 1
      %s23 = ssub.s32 %s17, 2
      %s30 = sadd.s32 1, %s25
      %p31 = scmp.ge.s32.totalorder %s30, 1
      %s32 = scalar_select %p31, 0, %s30
      %s33 = sadd.s32 1, %s24
      %s34 = scalar_select %p31, %s33, %s24
      %p35 = scmp.ge.s32.totalorder %s34, 2
      %s36 = scalar_select %p35, 0, %s34
      %s37 = ssub.s32 %s24, %s36
      %s38 = ssub.s32 %s25, %s32
      %s39 = sor.u32 %s37, %s38
      %p40 = scmp.eq.s32.totalorder %s39, 0
      %s42 = sadd.s32 %s41, 1
      %s43 = scalar_select %p40, %s41, %s42
      %p46 = pneg %p40
      %p47 = scmp.eq.s32.totalorder %s17, 1
      %p48 = por %p46, %p47
      %p49 = scmp.ne.s32.totalorder %s41, %s44
      %p50 = scmp.eq.s32.totalorder %s17, 0
      %p51 = por %p49, %p50
      %p52 = scmp.ne.s32.totalorder %s41, %s44
      %p53 = scmp.eq.s32.totalorder %s22, 1
      %p54 = por %p52, %p53
      %p55 = scmp.ne.s32.totalorder %s44, %s45
      %p56 = scmp.eq.s32.totalorder %s22, 0
      %p57 = por %p55, %p56
      %p58 = scmp.ne.s32.totalorder %s44, %s45
      %p59 = scmp.eq.s32.totalorder %s23, 1
      %p60 = por %p58, %p59
      %p62 = scmp.ne.s32.totalorder %s45, %s61
      %p63 = scmp.eq.s32.totalorder %s23, 0
      %p64 = por %p62, %p63
      %s65 = ssub.s32 %s24, %s36
      %p66 = scmp.eq.s32.totalorder %s65, 0
      %s68 = sadd.s32 %s67, 1
      %s69 = scalar_select %p66, %s67, %s68
      %p72 = pneg %p66
      %p73 = scmp.eq.s32.totalorder %s17, 1
      %p74 = por %p72, %p73
      %p75 = scmp.ne.s32.totalorder %s67, %s70
      %p76 = scmp.eq.s32.totalorder %s17, 0
      %p77 = por %p75, %p76
      %p78 = scmp.ne.s32.totalorder %s67, %s70
      %p79 = scmp.eq.s32.totalorder %s22, 1
      %p80 = por %p78, %p79
      %p81 = scmp.ne.s32.totalorder %s70, %s71
      %p82 = scmp.eq.s32.totalorder %s22, 0
      %p83 = por %p81, %p82
      %p84 = scmp.ne.s32.totalorder %s70, %s71
      %p85 = scmp.eq.s32.totalorder %s23, 1
      %p86 = por %p84, %p85
      %p88 = scmp.ne.s32.totalorder %s71, %s87
      %p89 = scmp.eq.s32.totalorder %s23, 0
      %p90 = por %p88, %p89
      %s91 = ssub.s32 %s24, %s36
      %s92 = ssub.s32 %s25, %s32
      %s93 = sor.u32 %s91, %s92
      %p94 = scmp.eq.s32.totalorder %s93, 0
      %s96 = sadd.s32 %s95, 1
      %s97 = scalar_select %p94, %s95, %s96
      %p100 = pneg %p94
      %p101 = scmp.eq.s32.totalorder %s17, 1
      %p102 = por %p100, %p101
      %p103 = scmp.ne.s32.totalorder %s95, %s98
      %p104 = scmp.eq.s32.totalorder %s17, 0
      %p105 = por %p103, %p104
      %p106 = scmp.ne.s32.totalorder %s95, %s98
      %p107 = scmp.eq.s32.totalorder %s22, 1
      %p108 = por %p106, %p107
      %p109 = scmp.ne.s32.totalorder %s98, %s99
      %p110 = scmp.eq.s32.totalorder %s22, 0
      %p111 = por %p109, %p110
      %p112 = scmp.ne.s32.totalorder %s98, %s99
      %p113 = scmp.eq.s32.totalorder %s23, 1
      %p114 = por %p112, %p113
      %p116 = scmp.ne.s32.totalorder %s99, %s115
      %p117 = scmp.eq.s32.totalorder %s23, 0
      %p118 = por %p116, %p117
      %s120 = sadd.s32 %s119, 1
      %p123 = scmp.eq.s32.totalorder %s17, 1
      %p124 = scmp.ne.s32.totalorder %s119, %s121
      %p125 = scmp.eq.s32.totalorder %s17, 0
      %p126 = por %p124, %p125
      %p127 = scmp.ne.s32.totalorder %s119, %s121
      %p128 = scmp.eq.s32.totalorder %s22, 1
      %p129 = por %p127, %p128
      %p130 = scmp.ne.s32.totalorder %s121, %s122
      %p131 = scmp.eq.s32.totalorder %s22, 0
      %p132 = por %p130, %p131
      %p133 = scmp.ne.s32.totalorder %s121, %s122
      %p134 = scmp.eq.s32.totalorder %s23, 1
      %p135 = por %p133, %p134
      %p137 = scmp.ne.s32.totalorder %s122, %s136
      %p138 = scmp.eq.s32.totalorder %s23, 0
      %p139 = por %p137, %p138
      %s141 = sadd.s32 %s140, 1
      %p144 = scmp.eq.s32.totalorder %s17, 1
      %p145 = scmp.ne.s32.totalorder %s140, %s142
      %p146 = scmp.eq.s32.totalorder %s17, 0
      %p147 = por %p145, %p146
      %p148 = scmp.ne.s32.totalorder %s140, %s142
      %p149 = scmp.eq.s32.totalorder %s22, 1
      %p150 = por %p148, %p149
      %p151 = scmp.ne.s32.totalorder %s142, %s143
      %p152 = scmp.eq.s32.totalorder %s22, 0
      %p153 = por %p151, %p152
      %p154 = scmp.ne.s32.totalorder %s142, %s143
      %p155 = scmp.eq.s32.totalorder %s23, 1
      %p156 = por %p154, %p155
      %p158 = scmp.ne.s32.totalorder %s143, %s157
      %p159 = scmp.eq.s32.totalorder %s23, 0
      %p160 = por %p158, %p159
      %s162 = sadd.s32 %s161, 1
      %p165 = scmp.eq.s32.totalorder %s17, 1
      %p166 = scmp.ne.s32.totalorder %s161, %s163
      %p167 = scmp.eq.s32.totalorder %s17, 0
      %p168 = por %p166, %p167
      %p169 = scmp.ne.s32.totalorder %s161, %s163
      %p170 = scmp.eq.s32.totalorder %s22, 1
      %p171 = por %p169, %p170
      %p172 = scmp.ne.s32.totalorder %s163, %s164
      %p173 = scmp.eq.s32.totalorder %s22, 0
      %p174 = por %p172, %p173
      %p175 = scmp.ne.s32.totalorder %s163, %s164
      %p176 = scmp.eq.s32.totalorder %s23, 1
      %p177 = por %p175, %p176
      %p179 = scmp.ne.s32.totalorder %s164, %s178
      %p180 = scmp.eq.s32.totalorder %s23, 0
      %p181 = por %p179, %p180
      %s182 = ssub.s32 %s24, %s36
      %s183 = ssub.s32 %s25, %s32
      %s184 = sor.u32 %s182, %s183
      %p185 = scmp.eq.s32.totalorder %s184, 0
      %s187 = sadd.s32 %s186, 1
      %s188 = scalar_select %p185, %s186, %s187
      %p191 = pneg %p185
      %p192 = scmp.eq.s32.totalorder %s17, 1
      %p193 = por %p191, %p192
      %p194 = scmp.ne.s32.totalorder %s186, %s189
      %p195 = scmp.eq.s32.totalorder %s17, 0
      %p196 = por %p194, %p195
      %p197 = scmp.ne.s32.totalorder %s186, %s189
      %p198 = scmp.eq.s32.totalorder %s22, 1
      %p199 = por %p197, %p198
      %p200 = scmp.ne.s32.totalorder %s189, %s190
      %p201 = scmp.eq.s32.totalorder %s22, 0
      %p202 = por %p200, %p201
      %p203 = scmp.ne.s32.totalorder %s189, %s190
      %p204 = scmp.eq.s32.totalorder %s23, 1
      %p205 = por %p203, %p204
      %p207 = scmp.ne.s32.totalorder %s190, %s206
      %p208 = scmp.eq.s32.totalorder %s23, 0
      %p209 = por %p207, %p208
      %s210 = ssub.s32 %s24, %s36
      %s211 = ssub.s32 %s25, %s32
      %s212 = sor.u32 %s210, %s211
      %p213 = scmp.eq.s32.totalorder %s212, 0
      %s215 = sadd.s32 %s214, 1
      %s216 = scalar_select %p213, %s214, %s215
      %p219 = pneg %p213
      %p220 = scmp.eq.s32.totalorder %s17, 1
      %p221 = por %p219, %p220
      %p222 = scmp.ne.s32.totalorder %s214, %s217
      %p223 = scmp.eq.s32.totalorder %s17, 0
      %p224 = por %p222, %p223
      %p225 = scmp.ne.s32.totalorder %s214, %s217
      %p226 = scmp.eq.s32.totalorder %s22, 1
      %p227 = por %p225, %p226
      %p228 = scmp.ne.s32.totalorder %s217, %s218
      %p229 = scmp.eq.s32.totalorder %s22, 0
      %p230 = por %p228, %p229
      %p231 = scmp.ne.s32.totalorder %s217, %s218
      %p232 = scmp.eq.s32.totalorder %s23, 1
      %p233 = por %p231, %p232
      %p235 = scmp.ne.s32.totalorder %s218, %s234
      %p236 = scmp.eq.s32.totalorder %s23, 0
      %p237 = por %p235, %p236
      %p238 = scmp.le.s32.totalorder 1, %s17
      %p239 = scmp.lt.s32.totalorder %s17, 3
      %p240 = pnand %p238, %p239
      %p241 = pneg %p240
      // Predicated region
      $region9: #{block_v2_forward.27} parent=5 // pred_check
        _
      $region10: #{block_v2_forward.27} parent=5 // pred_check_branch
        %243 = sbr.rel (%p240) target = $region12
      $region11: #{block_v2_forward.27} parent=5 // pred_region
        %s244 = ssub.s32 %s17, 1
        // Predicated region
        $region13: #{block_v2_forward.27} parent=11 // pred_check
          %p245 = pneg %p132
        $region14: #{block_v2_forward.27} parent=11 // pred_check_branch
          %247 = sbr.rel (%p245) target = $region16
        $region15: #{block_v2_forward.27} parent=11 // pred_region
          _
        $region16: #{block_v2_forward.27} parent=11 // pred_fallthru
          _
        // Predicated region
        $region17: #{block_v2_forward.27} parent=11 // pred_check
          %p248 = pneg %p153
        $region18: #{block_v2_forward.27} parent=11 // pred_check_branch
          %250 = sbr.rel (%p248) target = $region20
        $region19: #{block_v2_forward.27} parent=11 // pred_region
          _
        $region20: #{block_v2_forward.27} parent=11 // pred_fallthru
          _
        // Predicated region
        $region21: #{block_v2_forward.27} parent=11 // pred_check
          %p251 = pneg %p174
        $region22: #{block_v2_forward.27} parent=11 // pred_check_branch
          %253 = sbr.rel (%p251) target = $region24
        $region23: #{block_v2_forward.27} parent=11 // pred_region
          _
        $region24: #{block_v2_forward.27} parent=11 // pred_fallthru
          _
      $region12: #{block_v2_forward.27} parent=5 // pred_fallthru
        _
      %p254 = scmp.lt.s32.totalorder %s17, 2
      // Predicated region
      $region25: #{block_v2_forward.27} parent=5 // pred_check
        %p255 = pneg %p254
      $region26: #{block_v2_forward.27} parent=5 // pred_check_branch
        %257 = sbr.rel (%p255) target = $region28
      $region27: #{block_v2_forward.27} parent=5 // pred_region
        // Predicated region
        $region29: #{block_v2_forward.27} parent=27 // pred_check
          %p258 = pneg %p51
        $region30: #{block_v2_forward.27} parent=27 // pred_check_branch
          %260 = sbr.rel (%p258) target = $region32
        $region31: #{block_v2_forward.27} parent=27 // pred_region
          %s261 = smul.u32 8, %s25
          %p262 = scmp.lt.s32.totalorder %s24, 1
          %s263 = scalar_select %p262, %s24, 1
          %p264 = scmp.lt.s32.totalorder %s261, 7
          %s265 = scalar_select %p264, %s261, 7
          %s266 = smul.addr %s263, 8
          %s267 = sadd.s32 %s265, %s266
          %s268 = smul.addr %s267, 4
          %s269 = scalar_lea.vmem %s0, %s268
          %s270 = smul.u32 8, %s25
        $region32: #{block_v2_forward.27} parent=27 // pred_fallthru
          _
        // Predicated region
        $region33: #{block_v2_forward.27} parent=27 // pred_check
          %p271 = pneg %p77
        $region34: #{block_v2_forward.27} parent=27 // pred_check_branch
          %273 = sbr.rel (%p271) target = $region36
        $region35: #{block_v2_forward.27} parent=27 // pred_region
          %p274 = scmp.lt.s32.totalorder %s24, 1
          %s275 = scalar_select %p274, %s24, 1
          %s276 = smul.addr %s275, 2
          %s277 = scalar_lea.vmem %s1, %s276
        $region36: #{block_v2_forward.27} parent=27 // pred_fallthru
          _
        // Predicated region
        $region37: #{block_v2_forward.27} parent=27 // pred_check
          %p278 = pneg %p105
        $region38: #{block_v2_forward.27} parent=27 // pred_check_branch
          %280 = sbr.rel (%p278) target = $region40
        $region39: #{block_v2_forward.27} parent=27 // pred_region
          %s281 = smul.u32 8, %s25
          %p282 = scmp.lt.s32.totalorder %s24, 1
          %s283 = scalar_select %p282, %s24, 1
          %p284 = scmp.lt.s32.totalorder %s281, 7
          %s285 = scalar_select %p284, %s281, 7
          %s286 = smul.addr %s283, 8
          %s287 = sadd.s32 %s285, %s286
          %s288 = smul.addr %s287, 8
          %s289 = scalar_lea.vmem %s2, %s288
          %s290 = smul.u32 8, %s25
        $region40: #{block_v2_forward.27} parent=27 // pred_fallthru
          _
      $region28: #{block_v2_forward.27} parent=5 // pred_fallthru
        _
      %p291 = scmp.le.s32.totalorder 1, %s17
      %p292 = scmp.lt.s32.totalorder %s17, 3
      %p293 = pnand %p291, %p292
      %p294 = pneg %p293
      // Predicated region
      $region41: #{block_v2_forward.27} parent=5 // pred_check
        _
      $region42: #{block_v2_forward.27} parent=5 // pred_check_branch
        %296 = sbr.rel (%p293) target = $region44
      $region43: #{block_v2_forward.27} parent=5 // pred_region
        %s297 = ssub.s32 %s17, 1
        %s298 = smul.u32 8, %s27
        %p299 = scmp.lt.s32.totalorder %s26, 1
        %s300 = scalar_select %p299, %s26, 1
        %p301 = scmp.lt.s32.totalorder %s298, 7
        %s302 = scalar_select %p301, %s298, 7
        %s303 = smul.addr %s300, 8
        %s304 = sadd.s32 %s302, %s303
        %s305 = smul.addr %s304, 4
        %s306 = scalar_lea.vmem %s0, %s305
        %p307 = pneg %p57
        %p308 = pneg %p54
        %p309 = scmp.lt.s32.totalorder %s26, 1
        %s310 = scalar_select %p309, %s26, 1
        %s311 = smul.addr %s310, 2
        %s312 = scalar_lea.vmem %s1, %s311
        %p313 = pneg %p83
        %p314 = pneg %p80
        %s315 = smul.u32 8, %s27
        %p316 = scmp.lt.s32.totalorder %s26, 1
        %s317 = scalar_select %p316, %s26, 1
        %p318 = scmp.lt.s32.totalorder %s315, 7
        %s319 = scalar_select %p318, %s315, 7
        %s320 = smul.addr %s317, 8
        %s321 = sadd.s32 %s319, %s320
        %s322 = smul.addr %s321, 8
        %s323 = scalar_lea.vmem %s2, %s322
        %p324 = pneg %p111
        %p325 = pneg %p108
        %p326 = pneg %p132
        %p327 = pneg %p129
        %p328 = pneg %p153
        %p329 = pneg %p150
        %p330 = pneg %p174
        %p331 = pneg %p171
        %p332 = pneg %p202
        %p333 = pneg %p199
        %s334 = sand.u32 %s189, 1
        %s335 = scalar_lea.sflag [#allocation3], %s334
        %s336 = sand.u32 %s189, 1
        %s337 = smul.addr %s336, 64
        %s338 = scalar_lea.vmem [#allocation2], %s337
        %p339 = pneg %p230
        %p340 = pneg %p227
        %s341 = smul.u32 8, %s27
        %p342 = scmp.lt.s32.totalorder %s26, 1
        %s343 = scalar_select %p342, %s26, 1
        %p344 = scmp.lt.s32.totalorder %s341, 7
        %s345 = scalar_select %p344, %s341, 7
        %s346 = smul.addr %s343, 8
        %s347 = sadd.s32 %s345, %s346
        %s348 = smul.addr %s347, 8
        %s349 = scalar_lea.vmem %s7, %s348
        %s350 = smul.u32 8, %s27
        %p351 = scmp.lt.s32.totalorder %s26, 1
        %s352 = scalar_select %p351, %s26, 1
        %p353 = scmp.lt.s32.totalorder %s350, 7
        %s354 = scalar_select %p353, %s350, 7
        %s355 = smul.addr %s352, 8
        %s356 = sadd.s32 %s354, %s355
        %s357 = smul.addr %s356, 4
        %s358 = scalar_lea.vmem %s0, %s357
        %s359 = smul.u32 8, %s27
        %p360 = scmp.lt.s32.totalorder %s26, 1
        %s361 = scalar_select %p360, %s26, 1
        %s362 = smul.addr %s361, 2
        %s363 = scalar_lea.vmem %s1, %s362
        %s364 = smul.u32 8, %s27
        %p365 = scmp.lt.s32.totalorder %s26, 1
        %s366 = scalar_select %p365, %s26, 1
        %p367 = scmp.lt.s32.totalorder %s364, 7
        %s368 = scalar_select %p367, %s364, 7
        %s369 = smul.addr %s366, 8
        %s370 = sadd.s32 %s368, %s369
        %s371 = smul.addr %s370, 8
        %s372 = scalar_lea.vmem %s2, %s371
        %s373 = smul.u32 8, %s27
        %s374 = smul.u32 8, %s27
        %s375 = smul.u32 8, %s27
        %p376 = scmp.lt.s32.totalorder %s26, 1
        %s377 = scalar_select %p376, %s26, 1
        %p378 = scmp.lt.s32.totalorder %s375, 7
        %s379 = scalar_select %p378, %s375, 7
        %s380 = smul.addr %s377, 8
        %s381 = sadd.s32 %s379, %s380
        %s382 = smul.addr %s381, 8
        %s383 = scalar_lea.vmem %s7, %s382
        %s384 = smul.u32 8, %s27
        %v385 = vld [vmem:[%s358] sm:$0xf]
        %v386 = vld [vmem:[%s358 + $0x4] sm:$0xf]
        %v387 = vld [vmem:[%s358 + $0x8] sm:$0xf]
        %v388 = vld [vmem:[%s358 + $0xc] sm:$0xf]
        %v389 = vld [vmem:[%s358 + $0x10] sm:$0xf]
        %v390 = vld [vmem:[%s358 + $0x14] sm:$0xf]
        %v391 = vld [vmem:[%s358 + $0x18] sm:$0xf]
        %v392 = vld [vmem:[%s358 + $0x1c] sm:$0xf]
        %v393 = vunpack.c.l.bf16 %v385
        %v394 = vunpack.c.l.bf16 %v386
        %v395 = vunpack.c.l.bf16 %v387
        %v396 = vunpack.c.l.bf16 %v388
        %v397 = vunpack.c.l.bf16 %v389
        %v398 = vunpack.c.l.bf16 %v390
        %v399 = vunpack.c.l.bf16 %v391
        %v400 = vunpack.c.l.bf16 %v392
        %v401 = vld [vmem:[%s363] sm:$0x1]
        %v402 = vperm.slane %v401, 0
        %v403 = vmul.f32 %v393, %v402
        %v404 = vmul.f32 %v394, %v402
        %v405 = vmul.f32 %v395, %v402
        %v406 = vmul.f32 %v396, %v402
        %v407 = vmul.f32 %v397, %v402
        %v408 = vmul.f32 %v398, %v402
        %v409 = vmul.f32 %v399, %v402
        %v410 = vmul.f32 %v400, %v402
        %v411 = vld [vmem:[%s363 + $0x1] sm:$0x1]
        %v412 = vperm.slane %v411, 0
        %v413 = vadd.f32 %v403, %v412
        %v414 = vadd.f32 %v404, %v412
        %v415 = vadd.f32 %v405, %v412
        %v416 = vadd.f32 %v406, %v412
        %v417 = vadd.f32 %v407, %v412
        %v418 = vadd.f32 %v408, %v412
        %v419 = vadd.f32 %v409, %v412
        %v420 = vadd.f32 %v410, %v412
        %v421 = vpack.c.bf16 %v414, %v413
        %v422 = vpack.c.bf16 %v416, %v415
        %v423 = vpack.c.bf16 %v418, %v417
        %v424 = vpack.c.bf16 %v420, %v419
        %v425 = vld [vmem:[%s3] sm:$0xff]
        %v426 = vld [vmem:[%s3 + $0x8] sm:$0xff]
        %v427 = vld [vmem:[%s3 + $0x10] sm:$0xff]
        %v428 = vld [vmem:[%s3 + $0x18] sm:$0xff]
        %v429 = vld [vmem:[%s3 + $0x20] sm:$0xff]
        %v430 = vld [vmem:[%s3 + $0x28] sm:$0xff]
        %v431 = vld [vmem:[%s3 + $0x30] sm:$0xff]
        %v432 = vld [vmem:[%s3 + $0x38] sm:$0xff]
        %v433 = vld [vmem:[%s3 + $0x40] sm:$0xff]
        %v434 = vld [vmem:[%s3 + $0x48] sm:$0xff]
        %v435 = vld [vmem:[%s3 + $0x50] sm:$0xff]
        %v436 = vld [vmem:[%s3 + $0x58] sm:$0xff]
        %v437 = vld [vmem:[%s3 + $0x60] sm:$0xff]
        %v438 = vld [vmem:[%s3 + $0x68] sm:$0xff]
        %v439 = vld [vmem:[%s3 + $0x70] sm:$0xff]
        %v440 = vld [vmem:[%s3 + $0x78] sm:$0xff]
        %v441 = vld [vmem:[%s5] sm:$0x3]
        %v443 = vperm.slane %v441, 0
        %v444 = vperm.slane %v441, 1
        %v463 = vunpack.c.l.b16 %v425
        %v464 = vunpack.c.h.b16 %v425
        %v465 = vunpack.c.l.b16 %v426
        %v466 = vunpack.c.h.b16 %v426
        %v467 = vunpack.c.l.b16 %v427
        %v468 = vunpack.c.h.b16 %v427
        %v469 = vunpack.c.l.b16 %v428
        %v470 = vunpack.c.h.b16 %v428
        %v471 = vunpack.c.l.b16 %v429
        %v472 = vunpack.c.h.b16 %v429
        %v473 = vunpack.c.l.b16 %v430
        %v474 = vunpack.c.h.b16 %v430
        %v475 = vunpack.c.l.b16 %v431
        %v476 = vunpack.c.h.b16 %v431
        %v477 = vunpack.c.l.b16 %v432
        %v478 = vunpack.c.h.b16 %v432
        %v479 = vunpack.c.l.b16 %v433
        %v480 = vunpack.c.h.b16 %v433
        %v481 = vunpack.c.l.b16 %v434
        %v482 = vunpack.c.h.b16 %v434
        %v483 = vunpack.c.l.b16 %v435
        %v484 = vunpack.c.h.b16 %v435
        %v485 = vunpack.c.l.b16 %v436
        %v486 = vunpack.c.h.b16 %v436
        %v487 = vunpack.c.l.b16 %v437
        %v488 = vunpack.c.h.b16 %v437
        %v489 = vunpack.c.l.b16 %v438
        %v490 = vunpack.c.h.b16 %v438
        %v491 = vunpack.c.l.b16 %v439
        %v492 = vunpack.c.h.b16 %v439
        %v493 = vunpack.c.l.b16 %v440
        %v494 = vunpack.c.h.b16 %v440
        %v495 = vpack.c.b16 %v465, %v463
        %v496 = vpack.c.b16 %v466, %v464
        %v497 = vpack.c.b16 %v469, %v467
        %v498 = vpack.c.b16 %v470, %v468
        %v499 = vpack.c.b16 %v473, %v471
        %v500 = vpack.c.b16 %v474, %v472
        %v501 = vpack.c.b16 %v477, %v475
        %v502 = vpack.c.b16 %v478, %v476
        %v503 = vpack.c.b16 %v481, %v479
        %v504 = vpack.c.b16 %v482, %v480
        %v505 = vpack.c.b16 %v485, %v483
        %v506 = vpack.c.b16 %v486, %v484
        %v507 = vpack.c.b16 %v489, %v487
        %v508 = vpack.c.b16 %v490, %v488
        %v509 = vpack.c.b16 %v493, %v491
        %v510 = vpack.c.b16 %v494, %v492
        %527 = vmatpush.bf16.msra.mxu0 %v509
        %528 = vmatpush.bf16.msra.mxu0 %v507
        %529 = vmatpush.bf16.msra.mxu0 %v505
        %530 = vmatpush.bf16.msra.mxu0 %v503
        %531 = vmatpush.bf16.msra.mxu0 %v501
        %532 = vmatpush.bf16.msra.mxu0 %v499
        %533 = vmatpush.bf16.msra.mxu0 %v497
        %534 = vmatpush.bf16.msra.mxu0 %v495
        %535 = vmatmul.bf16.gmra.mxu0 %v421
        %v536 = vpop.f32.mrf.mxu0
        %v537 = vadd.f32 %v443, %v536
        %v538 = vpop.f32.mrf.mxu0
        %v539 = vadd.f32 %v443, %v538
        %540 = vmatmul.bf16.gmra.mxu0 %v422
        %v541 = vpop.f32.mrf.mxu0
        %v542 = vadd.f32 %v443, %v541
        %v543 = vpop.f32.mrf.mxu0
        %v544 = vadd.f32 %v443, %v543
        %545 = vmatmul.bf16.gmra.mxu0 %v423
        %v546 = vpop.f32.mrf.mxu0
        %v547 = vadd.f32 %v443, %v546
        %v548 = vpop.f32.mrf.mxu0
        %v549 = vadd.f32 %v443, %v548
        %550 = vmatmul.bf16.gmra.mxu0 %v424
        %v551 = vpop.f32.mrf.mxu0
        %v552 = vadd.f32 %v443, %v551
        %v553 = vpop.f32.mrf.mxu0
        %v554 = vadd.f32 %v443, %v553
        %555 = vdwg.mxu0
        %556 = vmatpush.bf16.msra.mxu0 %v510
        %557 = vmatpush.bf16.msra.mxu0 %v508
        %558 = vmatpush.bf16.msra.mxu0 %v506
        %559 = vmatpush.bf16.msra.mxu0 %v504
        %560 = vmatpush.bf16.msra.mxu0 %v502
        %561 = vmatpush.bf16.msra.mxu0 %v500
        %562 = vmatpush.bf16.msra.mxu0 %v498
        %563 = vmatpush.bf16.msra.mxu0 %v496
        %564 = vmatmul.bf16.gmra.mxu0 %v421
        %v565 = vpop.f32.mrf.mxu0
        %v566 = vadd.f32 %v444, %v565
        %v567 = vpop.f32.mrf.mxu0
        %v568 = vadd.f32 %v444, %v567
        %569 = vmatmul.bf16.gmra.mxu0 %v422
        %v570 = vpop.f32.mrf.mxu0
        %v571 = vadd.f32 %v444, %v570
        %v572 = vpop.f32.mrf.mxu0
        %v573 = vadd.f32 %v444, %v572
        %574 = vmatmul.bf16.gmra.mxu0 %v423
        %v575 = vpop.f32.mrf.mxu0
        %v576 = vadd.f32 %v444, %v575
        %v577 = vpop.f32.mrf.mxu0
        %v578 = vadd.f32 %v444, %v577
        %579 = vmatmul.bf16.gmra.mxu0 %v424
        %v580 = vpop.f32.mrf.mxu0
        %v581 = vadd.f32 %v444, %v580
        %v582 = vpop.f32.mrf.mxu0
        %v583 = vadd.f32 %v444, %v582
        %584 = vdwg.mxu0
        %v585 = vld [vmem:[%s372] sm:$0xff]
        %v586 = vld [vmem:[%s372 + $0x8] sm:$0xff]
        %v587 = vld [vmem:[%s372 + $0x10] sm:$0xff]
        %v588 = vld [vmem:[%s372 + $0x18] sm:$0xff]
        %v589 = vld [vmem:[%s372 + $0x20] sm:$0xff]
        %v590 = vld [vmem:[%s372 + $0x28] sm:$0xff]
        %v591 = vld [vmem:[%s372 + $0x30] sm:$0xff]
        %v592 = vld [vmem:[%s372 + $0x38] sm:$0xff]
        %v593 = vld [vmem:[%s4] sm:$0x3]
        %595 = vset.pattern.permute.xlu0 0
        %596 = vperm.xlu0 %595, %v585
        %v597 = vpop.permute.xlu0 %596
        %600 = vset.pattern.permute.xlu0 0
        %601 = vperm.xlu0 %600, %v586
        %v602 = vpop.permute.xlu0 %601
        %605 = vset.pattern.permute.xlu0 0
        %606 = vperm.xlu0 %605, %v587
        %v607 = vpop.permute.xlu0 %606
        %610 = vset.pattern.permute.xlu0 0
        %611 = vperm.xlu0 %610, %v588
        %v612 = vpop.permute.xlu0 %611
        %615 = vset.pattern.permute.xlu0 0
        %616 = vperm.xlu0 %615, %v589
        %v617 = vpop.permute.xlu0 %616
        %620 = vset.pattern.permute.xlu0 0
        %621 = vperm.xlu0 %620, %v590
        %v622 = vpop.permute.xlu0 %621
        %625 = vset.pattern.permute.xlu0 0
        %626 = vperm.xlu0 %625, %v591
        %v627 = vpop.permute.xlu0 %626
        %630 = vset.pattern.permute.xlu0 0
        %631 = vperm.xlu0 %630, %v592
        %v632 = vpop.permute.xlu0 %631
        %v635 = vperm.slane %v593, 0
        %v636 = vperm.slane %v593, 1
        %v639 = vmul.f32 %v597, %v635
        %v640 = vmul.f32 %v597, %v636
        %v641 = vmul.f32 %v602, %v635
        %v642 = vmul.f32 %v602, %v636
        %v643 = vmul.f32 %v607, %v635
        %v644 = vmul.f32 %v607, %v636
        %v645 = vmul.f32 %v612, %v635
        %v646 = vmul.f32 %v612, %v636
        %v647 = vmul.f32 %v617, %v635
        %v648 = vmul.f32 %v617, %v636
        %v649 = vmul.f32 %v622, %v635
        %v650 = vmul.f32 %v622, %v636
        %v651 = vmul.f32 %v627, %v635
        %v652 = vmul.f32 %v627, %v636
        %v653 = vmul.f32 %v632, %v635
        %v654 = vmul.f32 %v632, %v636
        %v655 = vadd.f32 %v537, %v639
        %v656 = vadd.f32 %v566, %v640
        %v657 = vadd.f32 %v539, %v641
        %v658 = vadd.f32 %v568, %v642
        %v659 = vadd.f32 %v542, %v643
        %v660 = vadd.f32 %v571, %v644
        %v661 = vadd.f32 %v544, %v645
        %v662 = vadd.f32 %v573, %v646
        %v663 = vadd.f32 %v547, %v647
        %v664 = vadd.f32 %v576, %v648
        %v665 = vadd.f32 %v549, %v649
        %v666 = vadd.f32 %v578, %v650
        %v667 = vadd.f32 %v552, %v651
        %v668 = vadd.f32 %v581, %v652
        %v669 = vadd.f32 %v554, %v653
        %v670 = vadd.f32 %v583, %v654
        %vm671 = vcmp.gt.f32.partialorder %v655, 0.0
        %vm672 = vcmp.gt.f32.partialorder %v657, 0.0
        %vm673 = vcmp.gt.f32.partialorder %v659, 0.0
        %vm674 = vcmp.gt.f32.partialorder %v661, 0.0
        %vm675 = vcmp.gt.f32.partialorder %v663, 0.0
        %vm676 = vcmp.gt.f32.partialorder %v665, 0.0
        %vm677 = vcmp.gt.f32.partialorder %v667, 0.0
        %vm678 = vcmp.gt.f32.partialorder %v669, 0.0
        %v679 = vmin.f32 %v655, 0.0
        %v680 = vmin.f32 %v657, 0.0
        %v681 = vmin.f32 %v659, 0.0
        %v682 = vmin.f32 %v661, 0.0
        %v683 = vmin.f32 %v663, 0.0
        %v684 = vmin.f32 %v665, 0.0
        %v685 = vmin.f32 %v667, 0.0
        %v686 = vmin.f32 %v669, 0.0
        %v687 = vmul.f32 %v679, 1.442695
        %v688 = vpow.pop %v687
        %v689 = vmul.f32 %v680, 1.442695
        %v690 = vpow.pop %v689
        %v691 = vmul.f32 %v681, 1.442695
        %v692 = vpow.pop %v691
        %v693 = vmul.f32 %v682, 1.442695
        %v694 = vpow.pop %v693
        %v695 = vmul.f32 %v683, 1.442695
        %v696 = vpow.pop %v695
        %v697 = vmul.f32 %v684, 1.442695
        %v698 = vpow.pop %v697
        %v699 = vmul.f32 %v685, 1.442695
        %v700 = vpow.pop %v699
        %v701 = vmul.f32 %v686, 1.442695
        %v702 = vpow.pop %v701
        %v703 = vsub.f32 %v688, 1.0
        %v704 = vsub.f32 %v690, 1.0
        %v705 = vsub.f32 %v692, 1.0
        %v706 = vsub.f32 %v694, 1.0
        %v707 = vsub.f32 %v696, 1.0
        %v708 = vsub.f32 %v698, 1.0
        %v709 = vsub.f32 %v700, 1.0
        %v710 = vsub.f32 %v702, 1.0
        %v711 = vsel %vm671, %v655, %v703
        %v712 = vsel %vm672, %v657, %v704
        %v713 = vsel %vm673, %v659, %v705
        %v714 = vsel %vm674, %v661, %v706
        %v715 = vsel %vm675, %v663, %v707
        %v716 = vsel %vm676, %v665, %v708
        %v717 = vsel %vm677, %v667, %v709
        %v718 = vsel %vm678, %v669, %v710
        %719 = vst [vmem:[%s338] sm:$0xff] %v711
        %720 = vst [vmem:[%s338 + $0x8] sm:$0xff] %v712
        %721 = vst [vmem:[%s338 + $0x10] sm:$0xff] %v713
        %722 = vst [vmem:[%s338 + $0x18] sm:$0xff] %v714
        %723 = vst [vmem:[%s338 + $0x20] sm:$0xff] %v715
        %724 = vst [vmem:[%s338 + $0x28] sm:$0xff] %v716
        %725 = vst [vmem:[%s338 + $0x30] sm:$0xff] %v717
        %726 = vst [vmem:[%s338 + $0x38] sm:$0xff] %v718
        %vm727 = vcmask 64512
        %728 = vst.msk [vmem:[%s383] sm:$0xff] %vm727, %v656
        %729 = vst.msk [vmem:[%s383 + $0x8] sm:$0xff] %vm727, %v658
        %730 = vst.msk [vmem:[%s383 + $0x10] sm:$0xff] %vm727, %v660
        %731 = vst.msk [vmem:[%s383 + $0x18] sm:$0xff] %vm727, %v662
        %732 = vst.msk [vmem:[%s383 + $0x20] sm:$0xff] %vm727, %v664
        %733 = vst.msk [vmem:[%s383 + $0x28] sm:$0xff] %vm727, %v666
        %734 = vst.msk [vmem:[%s383 + $0x30] sm:$0xff] %vm727, %v668
        %735 = vst.msk [vmem:[%s383 + $0x38] sm:$0xff] %vm727, %v670
        %s736 = sand.u32 %s189, 1
        %s737 = scalar_lea.sflag [#allocation3], %s736
        %s738 = sand.u32 %s189, 1
        %s739 = smul.addr %s738, 64
        %s740 = scalar_lea.vmem [#allocation2], %s739
        %s741 = smul.u32 8, %s27
        %p742 = scmp.lt.s32.totalorder %s26, 1
        %s743 = scalar_select %p742, %s26, 1
        %p744 = scmp.lt.s32.totalorder %s741, 7
        %s745 = scalar_select %p744, %s741, 7
        %s746 = smul.addr %s743, 8
        %s747 = sadd.s32 %s745, %s746
        %s748 = smul.addr %s747, 8
        %s749 = scalar_lea.vmem %s7, %s748
        // Predicated region
        $region45: #{block_v2_forward.27} parent=43 // pred_check
          %p750 = pneg %p199
        $region46: #{block_v2_forward.27} parent=43 // pred_check_branch
          %752 = sbr.rel (%p750) target = $region48
        $region47: #{block_v2_forward.27} parent=43 // pred_region
          %s753 = smul.u32 8, %s27
          %755 = vsyncadd %s737, 0
          %s756 = smul.addr %s26, 8
          %s757 = sadd.s32 %s753, %s756
          %s758 = smul.addr %s757, 8
          %s759 = scalar_lea.hbm %s6, %s758
          %s760 = sshll.u32 %s740, 4
          %s761 = int_to_ptr.vmem [resolvable:$true] %s760
          %s762 = sshll.u32 %s759, 4
          %s763 = int_to_ptr.hbm [resolvable:$true] %s762
          %768 = dma.vmem_to_hbm [thread:$0]  %s761, 1024, %s763, %s737, 128, 128, 8
        $region48: #{block_v2_forward.27} parent=43 // pred_fallthru
          _
        // Predicated region
        $region49: #{block_v2_forward.27} parent=43 // pred_check
          %p769 = pneg %p227
        $region50: #{block_v2_forward.27} parent=43 // pred_check_branch
          %771 = sbr.rel (%p769) target = $region52
        $region51: #{block_v2_forward.27} parent=43 // pred_region
          %s772 = smul.u32 8, %s27
        $region52: #{block_v2_forward.27} parent=43 // pred_fallthru
          _
      $region44: #{block_v2_forward.27} parent=5 // pred_fallthru
        _
      %p773 = scmp.le.s32.totalorder 2, %s17
      // Predicated region
      $region53: #{block_v2_forward.27} parent=5 // pred_check
        %p774 = pneg %p773
      $region54: #{block_v2_forward.27} parent=5 // pred_check_branch
        %776 = sbr.rel (%p774) target = $region56
      $region55: #{block_v2_forward.27} parent=5 // pred_region
        %s777 = ssub.s32 %s17, 2
        // Predicated region
        $region57: #{block_v2_forward.27} parent=55 // pred_check
          %p778 = pneg %p205
        $region58: #{block_v2_forward.27} parent=55 // pred_check_branch
          %780 = sbr.rel (%p778) target = $region60
        $region59: #{block_v2_forward.27} parent=55 // pred_region
          %s781 = sand.u32 %s190, 1
          %s782 = scalar_lea.sflag [#allocation3], %s781
          %s783 = sand.u32 %s190, 1
          %s784 = smul.addr %s783, 64
          %s785 = scalar_lea.vmem [#allocation2], %s784
          %787 = dma.done %s782, 1024
        $region60: #{block_v2_forward.27} parent=55 // pred_fallthru
          _
        // Predicated region
        $region61: #{block_v2_forward.27} parent=55 // pred_check
          %p788 = pneg %p233
        $region62: #{block_v2_forward.27} parent=55 // pred_check_branch
          %790 = sbr.rel (%p788) target = $region64
        $region63: #{block_v2_forward.27} parent=55 // pred_region
          %s791 = smul.u32 8, %s29
          %p792 = scmp.lt.s32.totalorder %s28, 1
          %s793 = scalar_select %p792, %s28, 1
          %p794 = scmp.lt.s32.totalorder %s791, 7
          %s795 = scalar_select %p794, %s791, 7
          %s796 = smul.addr %s793, 8
          %s797 = sadd.s32 %s795, %s796
          %s798 = smul.addr %s797, 8
          %s799 = scalar_lea.vmem %s7, %s798
        $region64: #{block_v2_forward.27} parent=55 // pred_fallthru
          _
      $region56: #{block_v2_forward.27} parent=5 // pred_fallthru
        _
    $region6: #{block_v2_forward.27} parent=1 // loop_footer
      %s21 = sadd.s32 1, %s17
    $region7: #{block_v2_forward.27} parent=1 // loop_footer_branch
      %16 = sbr.rel target = $region3
    $region8: #{block_v2_forward.27} parent=1 // loop_exit
      _
    %800 = vsyncpa [#allocation3], 1
    %s801 = scalar_lea.sflag [#allocation3], 1
    %802 = vsyncpa %s801, 1

</llo_original>
